<compile_context>
chip_gen: v7x
topology: tpu7x:2x2x1
jax: 0.10.0
libtpu: 0.0.40
codegen_flags: <defaults>
</compile_context>

<pallas_src>
import functools
import math

import jax
import jax.numpy as jnp
from jax import lax
from jax.experimental import pallas as pl
from jax.experimental.pallas import tpu as pltpu

_NEG = -1e30     # additive bias for cross-batch / padding key columns
O_PAD = 128      # lane-dense padded output width (real out_features = 21)


# ----------------------------------------------------------------------------
# Fused decoder kernel: whole batch, all layers, output Linear in one call
# ----------------------------------------------------------------------------
def _decoder_kernel(num_heads, num_layers, attention_window,
                    end_ref,                       # SMEM (B,) int32 (scalar prefetch)
                    x_ref, cond_ref,               # (B,T_x,E), (B,T_c,E) f32
                    wqkv_ref, bqkv_ref,            # (L,E,3E) bf16, (L,1,3E) f32
                    wo_ref, bo_ref,                # (L,E,E) bf16,  (L,1,E) f32
                    wout_ref, bout_ref,            # (E,O_PAD) bf16, (1,O_PAD) f32
                    out_ref,                       # (B*S_max, O_PAD) f32
                    seq_ref, ctx_ref):             # VMEM scratch (B*S_max, E) f32 x2
    B, T_x, E = x_ref.shape
    T_c = cond_ref.shape[1]
    H = num_heads
    dh = E // H
    S_max = T_x + num_layers * T_c
    BS = B * S_max

    # ---- init growing sequence buffer: batch b occupies rows [b*S_max, (b+1)*S_max)
    seq_ref[...] = jnp.zeros_like(seq_ref)
    conds = []
    for b in range(B):
        seq_ref[b * S_max:b * S_max + T_x, :] = x_ref[b].astype(jnp.float32)
        conds.append(cond_ref[b].astype(jnp.float32))

    # ---- mask pieces hoisted out of the layer loop (JAX does not CSE these)
    pos = lax.broadcasted_iota(jnp.int32, (1, BS), 1)          # stacked key position
    off = pos                                                  # position within batch block
    key_end = jnp.zeros(pos.shape, jnp.int32)                  # end_ind of owning batch
    for b in range(B):
        if b > 0:
            off = jnp.where(pos >= b * S_max, pos - b * S_max, off)
        key_end = jnp.where(pos >= b * S_max, end_ref[b], key_end)
    row_pos = lax.broadcasted_iota(jnp.int32, (BS, BS), 0)
    col_pos = lax.broadcasted_iota(jnp.int32, (BS, BS), 1)
    row_blk = jnp.zeros((BS, BS), jnp.int32)
    col_blk = jnp.zeros((BS, BS), jnp.int32)
    for b in range(1, B):
        row_blk = jnp.where(row_pos >= b * S_max, b, row_blk)
        col_blk = jnp.where(col_pos >= b * S_max, b, col_blk)
    cross_bias = jnp.where(row_blk == col_blk, 0.0, _NEG).astype(jnp.float32)

    x_val = None
    for layer in range(num_layers):                            # static unroll (L=2)
        input_time = T_x + layer * T_c
        s_len = input_time + T_c

        # Append this layer's condition block into each batch's row block.
        for b in range(B):
            seq_ref[b * S_max + input_time:b * S_max + s_len, :] = conds[b]

        # Additive bias: faithful 0/1 window mask (PyTorch adds the float mask),
        # -1e30 on cross-batch and not-yet-valid (padding) key columns.
        idx = jnp.where(off < input_time, off, off - input_time)
        window = ((idx >= key_end - attention_window) &
                  (idx < key_end)).astype(jnp.float32)
        key_bias = jnp.where(off < s_len, window, _NEG)        # (1, BS)
        bias = cross_bias + key_bias                           # (BS, BS)

        # Fused QKV projection on the combined slab (softmax scale pre-folded
        # into the q columns; columns are head-adjacent: [q_h | k_h | v_h]).
        seq_bf = seq_ref[...].astype(jnp.bfloat16)
        qkv = (jnp.dot(seq_bf, wqkv_ref[layer],
                       preferred_element_type=jnp.float32)
               + bqkv_ref[layer]).astype(jnp.bfloat16)         # (BS, 3E)

        for h in range(H):                                     # static unroll (H=4)
            base = h * 3 * dh
            qh = qkv[:, base:base + dh]
            kh = qkv[:, base + dh:base + 2 * dh]
            vh = qkv[:, base + 2 * dh:base + 3 * dh]

            # Block-diagonal scores, contracting last dims (no explicit .T).
            s = lax.dot_general(qh, kh, (((1,), (1,)), ((), ())),
                                preferred_element_type=jnp.float32) + bias
            m = jnp.max(s, axis=-1, keepdims=True)
            p = jnp.exp(s - m)
            p = p / jnp.sum(p, axis=-1, keepdims=True)         # exact divide

            ctx_ref[:, h * dh:(h + 1) * dh] = jnp.dot(
                p.astype(jnp.bfloat16), vh, preferred_element_type=jnp.float32)

        # Single full-width output projection per layer (no per-head accumulate).
        new_x = (jnp.dot(ctx_ref[...].astype(jnp.bfloat16), wo_ref[layer],
                         preferred_element_type=jnp.float32) + bo_ref[layer])
        x_val = new_x
        if layer < num_layers - 1:
            seq_ref[...] = new_x                               # next layer's "x" part

    # Output Linear on the full slab; lane-dense (O_PAD=128) single store.
    out = (jnp.dot(x_val.astype(jnp.bfloat16), wout_ref[...],
                   preferred_element_type=jnp.float32) + bout_ref[...])
    out_ref[...] = out.astype(out_ref.dtype)


# ----------------------------------------------------------------------------
# Wrapper: one pallas_call for the whole decoder (single grid step)
# ----------------------------------------------------------------------------
def mapnet_decoder_forward(x, condition, end_inds, params, num_heads,
                           attention_window, out_features=21):
    """x: (B, T_x, E), condition: (B, T_c, E), end_inds: (B,) int.
    Returns (B, T_x + num_layers*T_c, out_features)."""
    B, T_x, E = x.shape
    T_c = condition.shape[1]
    num_layers = params["wqkv"].shape[0]
    S_max = T_x + num_layers * T_c
    BS = B * S_max

    kernel = functools.partial(_decoder_kernel, num_heads, num_layers, attention_window)

    grid_spec = pltpu.PrefetchScalarGridSpec(
        num_scalar_prefetch=1,                    # end_inds -> SMEM
        grid=(1,),                                # single invocation (batch fused)
        in_specs=[
            pl.BlockSpec((B, T_x, E), lambda i, e: (0, 0, 0)),              # x
            pl.BlockSpec((B, T_c, E), lambda i, e: (0, 0, 0)),              # condition
            pl.BlockSpec((num_layers, E, 3 * E), lambda i, e: (0, 0, 0)),   # Wqkv (bf16)
            pl.BlockSpec((num_layers, 1, 3 * E), lambda i, e: (0, 0, 0)),   # bqkv
            pl.BlockSpec((num_layers, E, E), lambda i, e: (0, 0, 0)),       # Wo   (bf16)
            pl.BlockSpec((num_layers, 1, E), lambda i, e: (0, 0, 0)),       # bo
            pl.BlockSpec((E, O_PAD), lambda i, e: (0, 0)),                  # W_out^T padded
            pl.BlockSpec((1, O_PAD), lambda i, e: (0, 0)),                  # b_out padded
        ],
        out_specs=pl.BlockSpec((BS, O_PAD), lambda i, e: (0, 0)),
        scratch_shapes=[pltpu.VMEM((BS, E), jnp.float32),    # growing sequence
                        pltpu.VMEM((BS, E), jnp.float32)],   # per-head ctx assembly
    )

    out2d = pl.pallas_call(
        kernel,
        out_shape=jax.ShapeDtypeStruct((BS, O_PAD), x.dtype),
        grid_spec=grid_spec,
        compiler_params=pltpu.CompilerParams(dimension_semantics=("arbitrary",)),
    )(end_inds.astype(jnp.int32), x, condition,
      params["wqkv"], params["bqkv"], params["wo"], params["bo"],
      params["w_out_t"], params["b_out"])

    return out2d.reshape(B, S_max, O_PAD)[:, :, :out_features]


# ----------------------------------------------------------------------------
# Deterministic parameter init (shapes match nn.MultiheadAttention / nn.Linear)
# ----------------------------------------------------------------------------
def init_params(key, ndims, num_heads, num_layers, out_features=21):
    dh = ndims // num_heads
    scale = 1.0 / math.sqrt(dh)
    raw_layers = []
    wqkv_l, bqkv_l, wo_l, bo_l = [], [], [], []
    for i in range(num_layers):
        k = jax.random.fold_in(key, i)
        k_in, k_out, k_b = jax.random.split(k, 3)
        # in_proj_weight: (3E, E); split into Wq/Wk/Wv, pre-transpose for x @ W.
        in_proj_w = jax.random.normal(k_in, (3 * ndims, ndims), jnp.float32) * 0.05
        wq = in_proj_w[0 * ndims:1 * ndims].T
        wk = in_proj_w[1 * ndims:2 * ndims].T
        wv = in_proj_w[2 * ndims:3 * ndims].T
        in_proj_b = jax.random.normal(k_b, (3 * ndims,), jnp.float32) * 0.02
        bq = in_proj_b[0 * ndims:1 * ndims][None, :]
        bk = in_proj_b[1 * ndims:2 * ndims][None, :]
        bv = in_proj_b[2 * ndims:3 * ndims][None, :]
        wo = (jax.random.normal(k_out, (ndims, ndims), jnp.float32) * 0.05).T
        bo = jax.random.normal(jax.random.fold_in(k_out, 1),
                               (1, ndims), jnp.float32) * 0.02
        raw_layers.append((wq, wk, wv, bq, bk, bv, wo, bo))
        # Head-adjacent packing: [Wq_h*scale | Wk_h | Wv_h] blocks of 3*dh columns.
        cols, bcols = [], []
        for h in range(num_heads):
            sl = slice(h * dh, (h + 1) * dh)
            cols += [wq[:, sl] * scale, wk[:, sl], wv[:, sl]]
            bcols += [bq[:, sl] * scale, bk[:, sl], bv[:, sl]]
        wqkv_l.append(jnp.concatenate(cols, axis=1))   # (E, 3E)
        bqkv_l.append(jnp.concatenate(bcols, axis=1))  # (1, 3E)
        wo_l.append(wo)
        bo_l.append(bo)
    k_lin = jax.random.fold_in(key, 10_000)
    k_w, k_bb = jax.random.split(k_lin)
    w_out = jax.random.normal(k_w, (out_features, ndims), jnp.float32) * 0.05
    b_out = jax.random.normal(k_bb, (out_features,), jnp.float32) * 0.05
    # Lane-dense padding to O_PAD columns (kernel stores full 128 lanes).
    w_out_pad = jnp.zeros((ndims, O_PAD), jnp.float32).at[:, :out_features].set(w_out.T)
    b_out_pad = jnp.zeros((1, O_PAD), jnp.float32).at[:, :out_features].set(b_out[None, :])
    packed = {
        "wqkv": jnp.stack(wqkv_l).astype(jnp.bfloat16),   # bf16 matmul inputs
        "bqkv": jnp.stack(bqkv_l),                        # f32 biases
        "wo": jnp.stack(wo_l).astype(jnp.bfloat16),
        "bo": jnp.stack(bo_l),
        "w_out_t": w_out_pad.astype(jnp.bfloat16),
        "b_out": b_out_pad,
    }
    raw_out = (w_out.T, b_out[None, :])
    return packed, raw_layers, raw_out


# ----------------------------------------------------------------------------
# Pure-JAX reference (mirrors the PyTorch math, f32) for correctness checking
# ----------------------------------------------------------------------------
def reference_forward(x, condition, end_inds, raw_layers, w_out_t, b_out,
                      num_heads, attention_window):
    for (wq, wk, wv, bq, bk, bv, wo, bo) in raw_layers:
        B, T_in, E = x.shape
        T_c = condition.shape[1]
        dh = E // num_heads
        scale = 1.0 / math.sqrt(dh)
        in_idx = jnp.arange(T_in)[None, :]
        c_idx = jnp.arange(T_c)[None, :]
        e = end_inds[:, None]
        in_mask = ((in_idx >= e - attention_window) & (in_idx < e)).astype(jnp.float32)
        c_mask = ((c_idx >= e - attention_window) & (c_idx < e)).astype(jnp.float32)
        mask = jnp.concatenate([in_mask, c_mask], axis=1)        # (B, S) additive 0/1
        seq = jnp.concatenate([x, condition], axis=1)            # (B, S, E)
        S = seq.shape[1]
        q = seq @ wq + bq
        k = seq @ wk + bk
        v = seq @ wv + bv
        qh = q.reshape(B, S, num_heads, dh).transpose(0, 2, 1, 3)
        kh = k.reshape(B, S, num_heads, dh).transpose(0, 2, 1, 3)
        vh = v.reshape(B, S, num_heads, dh).transpose(0, 2, 1, 3)
        scores = jnp.einsum('bhqd,bhkd->bhqk', qh, kh) * scale + mask[:, None, None, :]
        p = jax.nn.softmax(scores, axis=-1)
        ctx = jnp.einsum('bhqk,bhkd->bhqd', p, vh)
        attn = ctx.transpose(0, 2, 1, 3).reshape(B, S, E)
        x = attn @ wo + bo
    return x @ w_out_t + b_out


# ----------------------------------------------------------------------------
if __name__ == "__main__":
    # Small config consistent with the module: ndims=32, 4 heads, 2 layers.
    ndims, num_heads, num_layers, attention_window = 32, 4, 2, 4
    B, T_x, T_c = 2, 8, 8

    key = jax.random.PRNGKey(0)
    kx, kc, kp = jax.random.split(key, 3)
    x = jax.random.normal(kx, (B, T_x, ndims), jnp.float32)
    condition = jax.random.normal(kc, (B, T_c, ndims), jnp.float32)
    end_inds = jnp.array([6, 8], dtype=jnp.int32)

    packed, raw_layers, (w_out_t, b_out) = init_params(kp, ndims, num_heads, num_layers)

    out = mapnet_decoder_forward(x, condition, end_inds, packed,
                                 num_heads, attention_window, out_features=21)
    out = jax.block_until_ready(out)

    # Final shape: (B, T_x + num_layers * T_c, 21) — sequence grows per layer,
    # exactly as the PyTorch code's concatenation implies.
    S_final = T_x + num_layers * T_c
    assert out.shape == (B, S_final, 21), out.shape
    assert bool(jnp.all(jnp.isfinite(out)))

    # Correctness vs. pure-JAX f32 reference (tolerance covers bf16 matmul inputs).
    ref = reference_forward(x, condition, end_inds, raw_layers, w_out_t, b_out,
                            num_heads, attention_window)
    err = float(jnp.max(jnp.abs(out - ref)))
    tol = 2e-3 + 2e-2 * float(jnp.max(jnp.abs(ref)))
    assert err <= tol, (err, tol)

    print("KERNEL_OK")
</pallas_src>

<mosaic_0001>
module attributes {stable_mosaic.version = 11 : i64} {
  func.func @_decoder_kernel(%arg0: i32, %arg1: memref<2xi32, #tpu.memory_space<smem>>, %arg2: memref<2x8x32xf32, #tpu.memory_space<vmem>>, %arg3: memref<2x8x32xf32, #tpu.memory_space<vmem>>, %arg4: memref<2x32x96xbf16, #tpu.memory_space<vmem>>, %arg5: memref<2x1x96xf32, #tpu.memory_space<vmem>>, %arg6: memref<2x32x32xbf16, #tpu.memory_space<vmem>>, %arg7: memref<2x1x32xf32, #tpu.memory_space<vmem>>, %arg8: memref<32x128xbf16, #tpu.memory_space<vmem>>, %arg9: memref<1x128xf32, #tpu.memory_space<vmem>>, %arg10: memref<48x128xf32, #tpu.memory_space<vmem>>, %arg11: memref<48x32xf32, #tpu.memory_space<vmem>>, %arg12: memref<48x32xf32, #tpu.memory_space<vmem>>) attributes {dimension_semantics = [#tpu.dimension_semantics<arbitrary>], iteration_bounds = array<i64: 1>, scalar_prefetch = 1 : i64, scratch_operands = 2 : i64, tpu.core_type = #tpu.core_type<tc>, window_params = [{pipeline_mode = #tpu.pipeline_mode<synchronous>, transform_indices = @transform_0, window_bounds = array<i64: 2, 8, 32>}, {pipeline_mode = #tpu.pipeline_mode<synchronous>, transform_indices = @transform_1, window_bounds = array<i64: 2, 8, 32>}, {pipeline_mode = #tpu.pipeline_mode<synchronous>, transform_indices = @transform_2, window_bounds = array<i64: 2, 32, 96>}, {pipeline_mode = #tpu.pipeline_mode<synchronous>, transform_indices = @transform_3, window_bounds = array<i64: 2, 1, 96>}, {pipeline_mode = #tpu.pipeline_mode<synchronous>, transform_indices = @transform_4, window_bounds = array<i64: 2, 32, 32>}, {pipeline_mode = #tpu.pipeline_mode<synchronous>, transform_indices = @transform_5, window_bounds = array<i64: 2, 1, 32>}, {pipeline_mode = #tpu.pipeline_mode<synchronous>, transform_indices = @transform_6, window_bounds = array<i64: 32, 128>}, {pipeline_mode = #tpu.pipeline_mode<synchronous>, transform_indices = @transform_7, window_bounds = array<i64: 1, 128>}, {pipeline_mode = #tpu.pipeline_mode<synchronous>, transform_indices = @transform_8, window_bounds = array<i64: 48, 128>}]} {
    %cst = arith.constant 0.000000e+00 : f32
    %0 = vector.broadcast %cst : f32 to vector<48x32xf32>
    %c0 = arith.constant 0 : index
    %c0_0 = arith.constant 0 : index
    %1 = vector.load %arg11[%c0, %c0_0] : memref<48x32xf32, #tpu.memory_space<vmem>>, vector<48x32xf32>
    tpu.vector_store %arg11[%c0, %c0_0], %0 {strides = array<i32>} : memref<48x32xf32, #tpu.memory_space<vmem>>, vector<48x32xf32>,
    %c0_1 = arith.constant 0 : index
    %c0_2 = arith.constant 0 : index
    %c0_3 = arith.constant 0 : index
    %2 = vector.load %arg2[%c0_1, %c0_2, %c0_3] : memref<2x8x32xf32, #tpu.memory_space<vmem>>, vector<1x8x32xf32>
    %3 = vector.shape_cast %2 : vector<1x8x32xf32> to vector<8x32xf32>
    %c0_4 = arith.constant 0 : index
    %c0_5 = arith.constant 0 : index
    %4 = vector.load %arg11[%c0_4, %c0_5] : memref<48x32xf32, #tpu.memory_space<vmem>>, vector<8x32xf32>
    tpu.vector_store %arg11[%c0_4, %c0_5], %3 {strides = array<i32>} : memref<48x32xf32, #tpu.memory_space<vmem>>, vector<8x32xf32>,
    %c0_6 = arith.constant 0 : index
    %c0_7 = arith.constant 0 : index
    %c0_8 = arith.constant 0 : index
    %5 = vector.load %arg3[%c0_6, %c0_7, %c0_8] : memref<2x8x32xf32, #tpu.memory_space<vmem>>, vector<1x8x32xf32>
    %6 = vector.shape_cast %5 : vector<1x8x32xf32> to vector<8x32xf32>
    %c1 = arith.constant 1 : index
    %c0_9 = arith.constant 0 : index
    %c0_10 = arith.constant 0 : index
    %7 = vector.load %arg2[%c1, %c0_9, %c0_10] : memref<2x8x32xf32, #tpu.memory_space<vmem>>, vector<1x8x32xf32>
    %8 = vector.shape_cast %7 : vector<1x8x32xf32> to vector<8x32xf32>
    %c24 = arith.constant 24 : index
    %c0_11 = arith.constant 0 : index
    %9 = vector.load %arg11[%c24, %c0_11] : memref<48x32xf32, #tpu.memory_space<vmem>>, vector<8x32xf32>
    tpu.vector_store %arg11[%c24, %c0_11], %8 {strides = array<i32>} : memref<48x32xf32, #tpu.memory_space<vmem>>, vector<8x32xf32>,
    %c1_12 = arith.constant 1 : index
    %c0_13 = arith.constant 0 : index
    %c0_14 = arith.constant 0 : index
    %10 = vector.load %arg3[%c1_12, %c0_13, %c0_14] : memref<2x8x32xf32, #tpu.memory_space<vmem>>, vector<1x8x32xf32>
    %11 = vector.shape_cast %10 : vector<1x8x32xf32> to vector<8x32xf32>
    %12 = tpu.iota {dimensions = array<i32: 1>} : vector<1x48xi32>
    %c0_i32 = arith.constant 0 : i32
    %13 = vector.broadcast %c0_i32 : i32 to vector<1x48xi32>
    %c0_i32_15 = arith.constant 0 : i32
    %14 = vector.broadcast %c0_i32_15 : i32 to vector<1x48xi32>
    %15 = arith.cmpi sge, %12, %14 : vector<1x48xi32>
    %c0_16 = arith.constant 0 : index
    %16 = memref.load %arg1[%c0_16] : memref<2xi32, #tpu.memory_space<smem>>
    %17 = vector.broadcast %16 : i32 to vector<1x48xi32>
    %18 = arith.select %15, %17, %13 : vector<1x48xi1>, vector<1x48xi32>
    %c24_i32 = arith.constant 24 : i32
    %19 = vector.broadcast %c24_i32 : i32 to vector<1x48xi32>
    %20 = arith.cmpi sge, %12, %19 : vector<1x48xi32>
    %c24_i32_17 = arith.constant 24 : i32
    %21 = vector.broadcast %c24_i32_17 : i32 to vector<1x48xi32>
    %22 = arith.subi %12, %21 : vector<1x48xi32>
    %23 = arith.select %20, %22, %12 : vector<1x48xi1>, vector<1x48xi32>
    %c24_i32_18 = arith.constant 24 : i32
    %24 = vector.broadcast %c24_i32_18 : i32 to vector<1x48xi32>
    %25 = arith.cmpi sge, %12, %24 : vector<1x48xi32>
    %c1_19 = arith.constant 1 : index
    %26 = memref.load %arg1[%c1_19] : memref<2xi32, #tpu.memory_space<smem>>
    %27 = vector.broadcast %26 : i32 to vector<1x48xi32>
    %28 = arith.select %25, %27, %18 : vector<1x48xi1>, vector<1x48xi32>
    %29 = tpu.iota {dimensions = array<i32: 0>} : vector<48x48xi32>
    %30 = tpu.iota {dimensions = array<i32: 1>} : vector<48x48xi32>
    %c0_i32_20 = arith.constant 0 : i32
    %31 = vector.broadcast %c0_i32_20 : i32 to vector<48x48xi32>
    %c0_i32_21 = arith.constant 0 : i32
    %32 = vector.broadcast %c0_i32_21 : i32 to vector<48x48xi32>
    %c24_i32_22 = arith.constant 24 : i32
    %33 = vector.broadcast %c24_i32_22 : i32 to vector<48x48xi32>
    %34 = arith.cmpi sge, %29, %33 : vector<48x48xi32>
    %c1_i32 = arith.constant 1 : i32
    %35 = vector.broadcast %c1_i32 : i32 to vector<48x48xi32>
    %36 = arith.select %34, %35, %31 : vector<48x48xi1>, vector<48x48xi32>
    %c24_i32_23 = arith.constant 24 : i32
    %37 = vector.broadcast %c24_i32_23 : i32 to vector<48x48xi32>
    %38 = arith.cmpi sge, %30, %37 : vector<48x48xi32>
    %c1_i32_24 = arith.constant 1 : i32
    %39 = vector.broadcast %c1_i32_24 : i32 to vector<48x48xi32>
    %40 = arith.select %38, %39, %32 : vector<48x48xi1>, vector<48x48xi32>
    %41 = arith.cmpi eq, %36, %40 : vector<48x48xi32>
    %cst_25 = arith.constant 0.000000e+00 : f32
    %cst_26 = arith.constant -1.000000e+30 : f32
    %42 = vector.broadcast %cst_25 : f32 to vector<48x48xf32>
    %43 = vector.broadcast %cst_26 : f32 to vector<48x48xf32>
    %44 = arith.select %41, %42, %43 : vector<48x48xi1>, vector<48x48xf32>
    %c8 = arith.constant 8 : index
    %c0_27 = arith.constant 0 : index
    %45 = vector.load %arg11[%c8, %c0_27] : memref<48x32xf32, #tpu.memory_space<vmem>>, vector<8x32xf32>
    tpu.vector_store %arg11[%c8, %c0_27], %6 {strides = array<i32>} : memref<48x32xf32, #tpu.memory_space<vmem>>, vector<8x32xf32>,
    %c32 = arith.constant 32 : index
    %c0_28 = arith.constant 0 : index
    %46 = vector.load %arg11[%c32, %c0_28] : memref<48x32xf32, #tpu.memory_space<vmem>>, vector<8x32xf32>
    tpu.vector_store %arg11[%c32, %c0_28], %11 {strides = array<i32>} : memref<48x32xf32, #tpu.memory_space<vmem>>, vector<8x32xf32>,
    %c8_i32 = arith.constant 8 : i32
    %47 = vector.broadcast %c8_i32 : i32 to vector<1x48xi32>
    %48 = arith.cmpi slt, %23, %47 : vector<1x48xi32>
    %c8_i32_29 = arith.constant 8 : i32
    %49 = vector.broadcast %c8_i32_29 : i32 to vector<1x48xi32>
    %50 = arith.subi %23, %49 : vector<1x48xi32>
    %51 = arith.select %48, %23, %50 : vector<1x48xi1>, vector<1x48xi32>
    %c4_i32 = arith.constant 4 : i32
    %52 = vector.broadcast %c4_i32 : i32 to vector<1x48xi32>
    %53 = arith.subi %28, %52 : vector<1x48xi32>
    %54 = arith.cmpi sge, %51, %53 : vector<1x48xi32>
    %55 = arith.cmpi slt, %51, %28 : vector<1x48xi32>
    %56 = arith.andi %54, %55 : vector<1x48xi1>
    %57 = arith.extui %56 : vector<1x48xi1> to vector<1x48xi32>
    %58 = arith.sitofp %57 : vector<1x48xi32> to vector<1x48xf32>
    %c16_i32 = arith.constant 16 : i32
    %59 = vector.broadcast %c16_i32 : i32 to vector<1x48xi32>
    %60 = arith.cmpi slt, %23, %59 : vector<1x48xi32>
    %cst_30 = arith.constant -1.000000e+30 : f32
    %61 = vector.broadcast %cst_30 : f32 to vector<1x48xf32>
    %62 = arith.select %60, %58, %61 : vector<1x48xi1>, vector<1x48xf32>
    %63 = vector.broadcast %62 : vector<1x48xf32> to vector<48x48xf32>
    %64 = arith.addf %44, %63 : vector<48x48xf32>
    %c0_31 = arith.constant 0 : index
    %c0_32 = arith.constant 0 : index
    %65 = vector.load %arg11[%c0_31, %c0_32] : memref<48x32xf32, #tpu.memory_space<vmem>>, vector<48x32xf32>
    %66 = arith.truncf %65 : vector<48x32xf32> to vector<48x32xbf16>
    %c0_33 = arith.constant 0 : index
    %c0_34 = arith.constant 0 : index
    %c0_35 = arith.constant 0 : index
    %67 = vector.load %arg4[%c0_33, %c0_34, %c0_35] : memref<2x32x96xbf16, #tpu.memory_space<vmem>>, vector<1x32x96xbf16>
    %68 = vector.shape_cast %67 : vector<1x32x96xbf16> to vector<32x96xbf16>
    %cst_36 = arith.constant dense<0.000000e+00> : vector<48x96xf32>
    %69 = tpu.matmul %66, %68, %cst_36 {dimension_numbers = #tpu.dot_dimension_numbers<[1], [0], [0], [1], [0, 0, 1, 1], [], []>} : vector<48x32xbf16>, vector<32x96xbf16>, vector<48x96xf32> -> vector<48x96xf32>
    %c0_37 = arith.constant 0 : index
    %c0_38 = arith.constant 0 : index
    %c0_39 = arith.constant 0 : index
    %70 = vector.load %arg5[%c0_37, %c0_38, %c0_39] : memref<2x1x96xf32, #tpu.memory_space<vmem>>, vector<1x1x96xf32>
    %71 = vector.shape_cast %70 : vector<1x1x96xf32> to vector<1x96xf32>
    %72 = vector.broadcast %71 : vector<1x96xf32> to vector<48x96xf32>
    %73 = arith.addf %69, %72 : vector<48x96xf32>
    %74 = arith.truncf %73 : vector<48x96xf32> to vector<48x96xbf16>
    %75 = vector.extract_strided_slice %74 {offsets = [0, 0], sizes = [48, 8], strides = [1, 1]} : vector<48x96xbf16> to vector<48x8xbf16>
    %76 = vector.extract_strided_slice %74 {offsets = [0, 8], sizes = [48, 8], strides = [1, 1]} : vector<48x96xbf16> to vector<48x8xbf16>
    %77 = vector.extract_strided_slice %74 {offsets = [0, 16], sizes = [48, 8], strides = [1, 1]} : vector<48x96xbf16> to vector<48x8xbf16>
    %cst_40 = arith.constant dense<0.000000e+00> : vector<48x48xf32>
    %78 = tpu.matmul %75, %76, %cst_40 {dimension_numbers = #tpu.dot_dimension_numbers<[1], [1], [0], [0], [0, 0, 1, 0], [], []>} : vector<48x8xbf16>, vector<48x8xbf16>, vector<48x48xf32> -> vector<48x48xf32>
    %79 = arith.addf %78, %64 : vector<48x48xf32>
    %cst_41 = arith.constant dense<0xFF800000> : vector<48xf32>
    %80 = vector.multi_reduction <maximumf>, %79, %cst_41 [1] : vector<48x48xf32> to vector<48xf32>
    %81 = vector.shape_cast %80 : vector<48xf32> to vector<48x1xf32>
    %82 = vector.broadcast %81 : vector<48x1xf32> to vector<48x48xf32>
    %83 = arith.subf %79, %82 : vector<48x48xf32>
    %84 = math.exp %83 : vector<48x48xf32>
    %cst_42 = arith.constant dense<0.000000e+00> : vector<48xf32>
    %85 = vector.multi_reduction <add>, %84, %cst_42 [1] : vector<48x48xf32> to vector<48xf32>
    %86 = vector.shape_cast %85 : vector<48xf32> to vector<48x1xf32>
    %87 = vector.broadcast %86 : vector<48x1xf32> to vector<48x48xf32>
    %88 = arith.divf %84, %87 : vector<48x48xf32>
    %89 = arith.truncf %88 : vector<48x48xf32> to vector<48x48xbf16>
    %cst_43 = arith.constant dense<0.000000e+00> : vector<48x8xf32>
    %90 = tpu.matmul %89, %77, %cst_43 {dimension_numbers = #tpu.dot_dimension_numbers<[1], [0], [0], [1], [0, 0, 1, 1], [], []>} : vector<48x48xbf16>, vector<48x8xbf16>, vector<48x8xf32> -> vector<48x8xf32>
    %c0_44 = arith.constant 0 : index
    %c0_45 = arith.constant 0 : index
    %91 = vector.load %arg12[%c0_44, %c0_45] : memref<48x32xf32, #tpu.memory_space<vmem>>, vector<48x8xf32>
    tpu.vector_store %arg12[%c0_44, %c0_45], %90 {strides = array<i32>} : memref<48x32xf32, #tpu.memory_space<vmem>>, vector<48x8xf32>,
    %92 = vector.extract_strided_slice %74 {offsets = [0, 24], sizes = [48, 8], strides = [1, 1]} : vector<48x96xbf16> to vector<48x8xbf16>
    %93 = vector.extract_strided_slice %74 {offsets = [0, 32], sizes = [48, 8], strides = [1, 1]} : vector<48x96xbf16> to vector<48x8xbf16>
    %94 = vector.extract_strided_slice %74 {offsets = [0, 40], sizes = [48, 8], strides = [1, 1]} : vector<48x96xbf16> to vector<48x8xbf16>
    %cst_46 = arith.constant dense<0.000000e+00> : vector<48x48xf32>
    %95 = tpu.matmul %92, %93, %cst_46 {dimension_numbers = #tpu.dot_dimension_numbers<[1], [1], [0], [0], [0, 0, 1, 0], [], []>} : vector<48x8xbf16>, vector<48x8xbf16>, vector<48x48xf32> -> vector<48x48xf32>
    %96 = arith.addf %95, %64 : vector<48x48xf32>
    %cst_47 = arith.constant dense<0xFF800000> : vector<48xf32>
    %97 = vector.multi_reduction <maximumf>, %96, %cst_47 [1] : vector<48x48xf32> to vector<48xf32>
    %98 = vector.shape_cast %97 : vector<48xf32> to vector<48x1xf32>
    %99 = vector.broadcast %98 : vector<48x1xf32> to vector<48x48xf32>
    %100 = arith.subf %96, %99 : vector<48x48xf32>
    %101 = math.exp %100 : vector<48x48xf32>
    %cst_48 = arith.constant dense<0.000000e+00> : vector<48xf32>
    %102 = vector.multi_reduction <add>, %101, %cst_48 [1] : vector<48x48xf32> to vector<48xf32>
    %103 = vector.shape_cast %102 : vector<48xf32> to vector<48x1xf32>
    %104 = vector.broadcast %103 : vector<48x1xf32> to vector<48x48xf32>
    %105 = arith.divf %101, %104 : vector<48x48xf32>
    %106 = arith.truncf %105 : vector<48x48xf32> to vector<48x48xbf16>
    %cst_49 = arith.constant dense<0.000000e+00> : vector<48x8xf32>
    %107 = tpu.matmul %106, %94, %cst_49 {dimension_numbers = #tpu.dot_dimension_numbers<[1], [0], [0], [1], [0, 0, 1, 1], [], []>} : vector<48x48xbf16>, vector<48x8xbf16>, vector<48x8xf32> -> vector<48x8xf32>
    %c0_50 = arith.constant 0 : index
    %c8_51 = arith.constant 8 : index
    %108 = vector.load %arg12[%c0_50, %c8_51] : memref<48x32xf32, #tpu.memory_space<vmem>>, vector<48x8xf32>
    tpu.vector_store %arg12[%c0_50, %c8_51], %107 {strides = array<i32>} : memref<48x32xf32, #tpu.memory_space<vmem>>, vector<48x8xf32>,
    %109 = vector.extract_strided_slice %74 {offsets = [0, 48], sizes = [48, 8], strides = [1, 1]} : vector<48x96xbf16> to vector<48x8xbf16>
    %110 = vector.extract_strided_slice %74 {offsets = [0, 56], sizes = [48, 8], strides = [1, 1]} : vector<48x96xbf16> to vector<48x8xbf16>
    %111 = vector.extract_strided_slice %74 {offsets = [0, 64], sizes = [48, 8], strides = [1, 1]} : vector<48x96xbf16> to vector<48x8xbf16>
    %cst_52 = arith.constant dense<0.000000e+00> : vector<48x48xf32>
    %112 = tpu.matmul %109, %110, %cst_52 {dimension_numbers = #tpu.dot_dimension_numbers<[1], [1], [0], [0], [0, 0, 1, 0], [], []>} : vector<48x8xbf16>, vector<48x8xbf16>, vector<48x48xf32> -> vector<48x48xf32>
    %113 = arith.addf %112, %64 : vector<48x48xf32>
    %cst_53 = arith.constant dense<0xFF800000> : vector<48xf32>
    %114 = vector.multi_reduction <maximumf>, %113, %cst_53 [1] : vector<48x48xf32> to vector<48xf32>
    %115 = vector.shape_cast %114 : vector<48xf32> to vector<48x1xf32>
    %116 = vector.broadcast %115 : vector<48x1xf32> to vector<48x48xf32>
    %117 = arith.subf %113, %116 : vector<48x48xf32>
    %118 = math.exp %117 : vector<48x48xf32>
    %cst_54 = arith.constant dense<0.000000e+00> : vector<48xf32>
    %119 = vector.multi_reduction <add>, %118, %cst_54 [1] : vector<48x48xf32> to vector<48xf32>
    %120 = vector.shape_cast %119 : vector<48xf32> to vector<48x1xf32>
    %121 = vector.broadcast %120 : vector<48x1xf32> to vector<48x48xf32>
    %122 = arith.divf %118, %121 : vector<48x48xf32>
    %123 = arith.truncf %122 : vector<48x48xf32> to vector<48x48xbf16>
    %cst_55 = arith.constant dense<0.000000e+00> : vector<48x8xf32>
    %124 = tpu.matmul %123, %111, %cst_55 {dimension_numbers = #tpu.dot_dimension_numbers<[1], [0], [0], [1], [0, 0, 1, 1], [], []>} : vector<48x48xbf16>, vector<48x8xbf16>, vector<48x8xf32> -> vector<48x8xf32>
    %c0_56 = arith.constant 0 : index
    %c16 = arith.constant 16 : index
    %125 = vector.load %arg12[%c0_56, %c16] : memref<48x32xf32, #tpu.memory_space<vmem>>, vector<48x8xf32>
    tpu.vector_store %arg12[%c0_56, %c16], %124 {strides = array<i32>} : memref<48x32xf32, #tpu.memory_space<vmem>>, vector<48x8xf32>,
    %126 = vector.extract_strided_slice %74 {offsets = [0, 72], sizes = [48, 8], strides = [1, 1]} : vector<48x96xbf16> to vector<48x8xbf16>
    %127 = vector.extract_strided_slice %74 {offsets = [0, 80], sizes = [48, 8], strides = [1, 1]} : vector<48x96xbf16> to vector<48x8xbf16>
    %128 = vector.extract_strided_slice %74 {offsets = [0, 88], sizes = [48, 8], strides = [1, 1]} : vector<48x96xbf16> to vector<48x8xbf16>
    %cst_57 = arith.constant dense<0.000000e+00> : vector<48x48xf32>
    %129 = tpu.matmul %126, %127, %cst_57 {dimension_numbers = #tpu.dot_dimension_numbers<[1], [1], [0], [0], [0, 0, 1, 0], [], []>} : vector<48x8xbf16>, vector<48x8xbf16>, vector<48x48xf32> -> vector<48x48xf32>
    %130 = arith.addf %129, %64 : vector<48x48xf32>
    %cst_58 = arith.constant dense<0xFF800000> : vector<48xf32>
    %131 = vector.multi_reduction <maximumf>, %130, %cst_58 [1] : vector<48x48xf32> to vector<48xf32>
    %132 = vector.shape_cast %131 : vector<48xf32> to vector<48x1xf32>
    %133 = vector.broadcast %132 : vector<48x1xf32> to vector<48x48xf32>
    %134 = arith.subf %130, %133 : vector<48x48xf32>
    %135 = math.exp %134 : vector<48x48xf32>
    %cst_59 = arith.constant dense<0.000000e+00> : vector<48xf32>
    %136 = vector.multi_reduction <add>, %135, %cst_59 [1] : vector<48x48xf32> to vector<48xf32>
    %137 = vector.shape_cast %136 : vector<48xf32> to vector<48x1xf32>
    %138 = vector.broadcast %137 : vector<48x1xf32> to vector<48x48xf32>
    %139 = arith.divf %135, %138 : vector<48x48xf32>
    %140 = arith.truncf %139 : vector<48x48xf32> to vector<48x48xbf16>
    %cst_60 = arith.constant dense<0.000000e+00> : vector<48x8xf32>
    %141 = tpu.matmul %140, %128, %cst_60 {dimension_numbers = #tpu.dot_dimension_numbers<[1], [0], [0], [1], [0, 0, 1, 1], [], []>} : vector<48x48xbf16>, vector<48x8xbf16>, vector<48x8xf32> -> vector<48x8xf32>
    %c0_61 = arith.constant 0 : index
    %c24_62 = arith.constant 24 : index
    %142 = vector.load %arg12[%c0_61, %c24_62] : memref<48x32xf32, #tpu.memory_space<vmem>>, vector<48x8xf32>
    tpu.vector_store %arg12[%c0_61, %c24_62], %141 {strides = array<i32>} : memref<48x32xf32, #tpu.memory_space<vmem>>, vector<48x8xf32>,
    %c0_63 = arith.constant 0 : index
    %c0_64 = arith.constant 0 : index
    %143 = vector.load %arg12[%c0_63, %c0_64] : memref<48x32xf32, #tpu.memory_space<vmem>>, vector<48x32xf32>
    %144 = arith.truncf %143 : vector<48x32xf32> to vector<48x32xbf16>
    %c0_65 = arith.constant 0 : index
    %c0_66 = arith.constant 0 : index
    %c0_67 = arith.constant 0 : index
    %145 = vector.load %arg6[%c0_65, %c0_66, %c0_67] : memref<2x32x32xbf16, #tpu.memory_space<vmem>>, vector<1x32x32xbf16>
    %146 = vector.shape_cast %145 : vector<1x32x32xbf16> to vector<32x32xbf16>
    %cst_68 = arith.constant dense<0.000000e+00> : vector<48x32xf32>
    %147 = tpu.matmul %144, %146, %cst_68 {dimension_numbers = #tpu.dot_dimension_numbers<[1], [0], [0], [1], [0, 0, 1, 1], [], []>} : vector<48x32xbf16>, vector<32x32xbf16>, vector<48x32xf32> -> vector<48x32xf32>
    %c0_69 = arith.constant 0 : index
    %c0_70 = arith.constant 0 : index
    %c0_71 = arith.constant 0 : index
    %148 = vector.load %arg7[%c0_69, %c0_70, %c0_71] : memref<2x1x32xf32, #tpu.memory_space<vmem>>, vector<1x1x32xf32>
    %149 = vector.shape_cast %148 : vector<1x1x32xf32> to vector<1x32xf32>
    %150 = vector.broadcast %149 : vector<1x32xf32> to vector<48x32xf32>
    %151 = arith.addf %147, %150 : vector<48x32xf32>
    %c0_72 = arith.constant 0 : index
    %c0_73 = arith.constant 0 : index
    %152 = vector.load %arg11[%c0_72, %c0_73] : memref<48x32xf32, #tpu.memory_space<vmem>>, vector<48x32xf32>
    tpu.vector_store %arg11[%c0_72, %c0_73], %151 {strides = array<i32>} : memref<48x32xf32, #tpu.memory_space<vmem>>, vector<48x32xf32>,
    %c16_74 = arith.constant 16 : index
    %c0_75 = arith.constant 0 : index
    %153 = vector.load %arg11[%c16_74, %c0_75] : memref<48x32xf32, #tpu.memory_space<vmem>>, vector<8x32xf32>
    tpu.vector_store %arg11[%c16_74, %c0_75], %6 {strides = array<i32>} : memref<48x32xf32, #tpu.memory_space<vmem>>, vector<8x32xf32>,
    %c40 = arith.constant 40 : index
    %c0_76 = arith.constant 0 : index
    %154 = vector.load %arg11[%c40, %c0_76] : memref<48x32xf32, #tpu.memory_space<vmem>>, vector<8x32xf32>
    tpu.vector_store %arg11[%c40, %c0_76], %11 {strides = array<i32>} : memref<48x32xf32, #tpu.memory_space<vmem>>, vector<8x32xf32>,
    %c16_i32_77 = arith.constant 16 : i32
    %155 = vector.broadcast %c16_i32_77 : i32 to vector<1x48xi32>
    %156 = arith.cmpi slt, %23, %155 : vector<1x48xi32>
    %c16_i32_78 = arith.constant 16 : i32
    %157 = vector.broadcast %c16_i32_78 : i32 to vector<1x48xi32>
    %158 = arith.subi %23, %157 : vector<1x48xi32>
    %159 = arith.select %156, %23, %158 : vector<1x48xi1>, vector<1x48xi32>
    %c4_i32_79 = arith.constant 4 : i32
    %160 = vector.broadcast %c4_i32_79 : i32 to vector<1x48xi32>
    %161 = arith.subi %28, %160 : vector<1x48xi32>
    %162 = arith.cmpi sge, %159, %161 : vector<1x48xi32>
    %163 = arith.cmpi slt, %159, %28 : vector<1x48xi32>
    %164 = arith.andi %162, %163 : vector<1x48xi1>
    %165 = arith.extui %164 : vector<1x48xi1> to vector<1x48xi32>
    %166 = arith.sitofp %165 : vector<1x48xi32> to vector<1x48xf32>
    %c24_i32_80 = arith.constant 24 : i32
    %167 = vector.broadcast %c24_i32_80 : i32 to vector<1x48xi32>
    %168 = arith.cmpi slt, %23, %167 : vector<1x48xi32>
    %cst_81 = arith.constant -1.000000e+30 : f32
    %169 = vector.broadcast %cst_81 : f32 to vector<1x48xf32>
    %170 = arith.select %168, %166, %169 : vector<1x48xi1>, vector<1x48xf32>
    %171 = vector.broadcast %170 : vector<1x48xf32> to vector<48x48xf32>
    %172 = arith.addf %44, %171 : vector<48x48xf32>
    %c0_82 = arith.constant 0 : index
    %c0_83 = arith.constant 0 : index
    %173 = vector.load %arg11[%c0_82, %c0_83] : memref<48x32xf32, #tpu.memory_space<vmem>>, vector<48x32xf32>
    %174 = arith.truncf %173 : vector<48x32xf32> to vector<48x32xbf16>
    %c1_84 = arith.constant 1 : index
    %c0_85 = arith.constant 0 : index
    %c0_86 = arith.constant 0 : index
    %175 = vector.load %arg4[%c1_84, %c0_85, %c0_86] : memref<2x32x96xbf16, #tpu.memory_space<vmem>>, vector<1x32x96xbf16>
    %176 = vector.shape_cast %175 : vector<1x32x96xbf16> to vector<32x96xbf16>
    %cst_87 = arith.constant dense<0.000000e+00> : vector<48x96xf32>
    %177 = tpu.matmul %174, %176, %cst_87 {dimension_numbers = #tpu.dot_dimension_numbers<[1], [0], [0], [1], [0, 0, 1, 1], [], []>} : vector<48x32xbf16>, vector<32x96xbf16>, vector<48x96xf32> -> vector<48x96xf32>
    %c1_88 = arith.constant 1 : index
    %c0_89 = arith.constant 0 : index
    %c0_90 = arith.constant 0 : index
    %178 = vector.load %arg5[%c1_88, %c0_89, %c0_90] : memref<2x1x96xf32, #tpu.memory_space<vmem>>, vector<1x1x96xf32>
    %179 = vector.shape_cast %178 : vector<1x1x96xf32> to vector<1x96xf32>
    %180 = vector.broadcast %179 : vector<1x96xf32> to vector<48x96xf32>
    %181 = arith.addf %177, %180 : vector<48x96xf32>
    %182 = arith.truncf %181 : vector<48x96xf32> to vector<48x96xbf16>
    %183 = vector.extract_strided_slice %182 {offsets = [0, 0], sizes = [48, 8], strides = [1, 1]} : vector<48x96xbf16> to vector<48x8xbf16>
    %184 = vector.extract_strided_slice %182 {offsets = [0, 8], sizes = [48, 8], strides = [1, 1]} : vector<48x96xbf16> to vector<48x8xbf16>
    %185 = vector.extract_strided_slice %182 {offsets = [0, 16], sizes = [48, 8], strides = [1, 1]} : vector<48x96xbf16> to vector<48x8xbf16>
    %cst_91 = arith.constant dense<0.000000e+00> : vector<48x48xf32>
    %186 = tpu.matmul %183, %184, %cst_91 {dimension_numbers = #tpu.dot_dimension_numbers<[1], [1], [0], [0], [0, 0, 1, 0], [], []>} : vector<48x8xbf16>, vector<48x8xbf16>, vector<48x48xf32> -> vector<48x48xf32>
    %187 = arith.addf %186, %172 : vector<48x48xf32>
    %cst_92 = arith.constant dense<0xFF800000> : vector<48xf32>
    %188 = vector.multi_reduction <maximumf>, %187, %cst_92 [1] : vector<48x48xf32> to vector<48xf32>
    %189 = vector.shape_cast %188 : vector<48xf32> to vector<48x1xf32>
    %190 = vector.broadcast %189 : vector<48x1xf32> to vector<48x48xf32>
    %191 = arith.subf %187, %190 : vector<48x48xf32>
    %192 = math.exp %191 : vector<48x48xf32>
    %cst_93 = arith.constant dense<0.000000e+00> : vector<48xf32>
    %193 = vector.multi_reduction <add>, %192, %cst_93 [1] : vector<48x48xf32> to vector<48xf32>
    %194 = vector.shape_cast %193 : vector<48xf32> to vector<48x1xf32>
    %195 = vector.broadcast %194 : vector<48x1xf32> to vector<48x48xf32>
    %196 = arith.divf %192, %195 : vector<48x48xf32>
    %197 = arith.truncf %196 : vector<48x48xf32> to vector<48x48xbf16>
    %cst_94 = arith.constant dense<0.000000e+00> : vector<48x8xf32>
    %198 = tpu.matmul %197, %185, %cst_94 {dimension_numbers = #tpu.dot_dimension_numbers<[1], [0], [0], [1], [0, 0, 1, 1], [], []>} : vector<48x48xbf16>, vector<48x8xbf16>, vector<48x8xf32> -> vector<48x8xf32>
    %c0_95 = arith.constant 0 : index
    %c0_96 = arith.constant 0 : index
    %199 = vector.load %arg12[%c0_95, %c0_96] : memref<48x32xf32, #tpu.memory_space<vmem>>, vector<48x8xf32>
    tpu.vector_store %arg12[%c0_95, %c0_96], %198 {strides = array<i32>} : memref<48x32xf32, #tpu.memory_space<vmem>>, vector<48x8xf32>,
    %200 = vector.extract_strided_slice %182 {offsets = [0, 24], sizes = [48, 8], strides = [1, 1]} : vector<48x96xbf16> to vector<48x8xbf16>
    %201 = vector.extract_strided_slice %182 {offsets = [0, 32], sizes = [48, 8], strides = [1, 1]} : vector<48x96xbf16> to vector<48x8xbf16>
    %202 = vector.extract_strided_slice %182 {offsets = [0, 40], sizes = [48, 8], strides = [1, 1]} : vector<48x96xbf16> to vector<48x8xbf16>
    %cst_97 = arith.constant dense<0.000000e+00> : vector<48x48xf32>
    %203 = tpu.matmul %200, %201, %cst_97 {dimension_numbers = #tpu.dot_dimension_numbers<[1], [1], [0], [0], [0, 0, 1, 0], [], []>} : vector<48x8xbf16>, vector<48x8xbf16>, vector<48x48xf32> -> vector<48x48xf32>
    %204 = arith.addf %203, %172 : vector<48x48xf32>
    %cst_98 = arith.constant dense<0xFF800000> : vector<48xf32>
    %205 = vector.multi_reduction <maximumf>, %204, %cst_98 [1] : vector<48x48xf32> to vector<48xf32>
    %206 = vector.shape_cast %205 : vector<48xf32> to vector<48x1xf32>
    %207 = vector.broadcast %206 : vector<48x1xf32> to vector<48x48xf32>
    %208 = arith.subf %204, %207 : vector<48x48xf32>
    %209 = math.exp %208 : vector<48x48xf32>
    %cst_99 = arith.constant dense<0.000000e+00> : vector<48xf32>
    %210 = vector.multi_reduction <add>, %209, %cst_99 [1] : vector<48x48xf32> to vector<48xf32>
    %211 = vector.shape_cast %210 : vector<48xf32> to vector<48x1xf32>
    %212 = vector.broadcast %211 : vector<48x1xf32> to vector<48x48xf32>
    %213 = arith.divf %209, %212 : vector<48x48xf32>
    %214 = arith.truncf %213 : vector<48x48xf32> to vector<48x48xbf16>
    %cst_100 = arith.constant dense<0.000000e+00> : vector<48x8xf32>
    %215 = tpu.matmul %214, %202, %cst_100 {dimension_numbers = #tpu.dot_dimension_numbers<[1], [0], [0], [1], [0, 0, 1, 1], [], []>} : vector<48x48xbf16>, vector<48x8xbf16>, vector<48x8xf32> -> vector<48x8xf32>
    %c0_101 = arith.constant 0 : index
    %c8_102 = arith.constant 8 : index
    %216 = vector.load %arg12[%c0_101, %c8_102] : memref<48x32xf32, #tpu.memory_space<vmem>>, vector<48x8xf32>
    tpu.vector_store %arg12[%c0_101, %c8_102], %215 {strides = array<i32>} : memref<48x32xf32, #tpu.memory_space<vmem>>, vector<48x8xf32>,
    %217 = vector.extract_strided_slice %182 {offsets = [0, 48], sizes = [48, 8], strides = [1, 1]} : vector<48x96xbf16> to vector<48x8xbf16>
    %218 = vector.extract_strided_slice %182 {offsets = [0, 56], sizes = [48, 8], strides = [1, 1]} : vector<48x96xbf16> to vector<48x8xbf16>
    %219 = vector.extract_strided_slice %182 {offsets = [0, 64], sizes = [48, 8], strides = [1, 1]} : vector<48x96xbf16> to vector<48x8xbf16>
    %cst_103 = arith.constant dense<0.000000e+00> : vector<48x48xf32>
    %220 = tpu.matmul %217, %218, %cst_103 {dimension_numbers = #tpu.dot_dimension_numbers<[1], [1], [0], [0], [0, 0, 1, 0], [], []>} : vector<48x8xbf16>, vector<48x8xbf16>, vector<48x48xf32> -> vector<48x48xf32>
    %221 = arith.addf %220, %172 : vector<48x48xf32>
    %cst_104 = arith.constant dense<0xFF800000> : vector<48xf32>
    %222 = vector.multi_reduction <maximumf>, %221, %cst_104 [1] : vector<48x48xf32> to vector<48xf32>
    %223 = vector.shape_cast %222 : vector<48xf32> to vector<48x1xf32>
    %224 = vector.broadcast %223 : vector<48x1xf32> to vector<48x48xf32>
    %225 = arith.subf %221, %224 : vector<48x48xf32>
    %226 = math.exp %225 : vector<48x48xf32>
    %cst_105 = arith.constant dense<0.000000e+00> : vector<48xf32>
    %227 = vector.multi_reduction <add>, %226, %cst_105 [1] : vector<48x48xf32> to vector<48xf32>
    %228 = vector.shape_cast %227 : vector<48xf32> to vector<48x1xf32>
    %229 = vector.broadcast %228 : vector<48x1xf32> to vector<48x48xf32>
    %230 = arith.divf %226, %229 : vector<48x48xf32>
    %231 = arith.truncf %230 : vector<48x48xf32> to vector<48x48xbf16>
    %cst_106 = arith.constant dense<0.000000e+00> : vector<48x8xf32>
    %232 = tpu.matmul %231, %219, %cst_106 {dimension_numbers = #tpu.dot_dimension_numbers<[1], [0], [0], [1], [0, 0, 1, 1], [], []>} : vector<48x48xbf16>, vector<48x8xbf16>, vector<48x8xf32> -> vector<48x8xf32>
    %c0_107 = arith.constant 0 : index
    %c16_108 = arith.constant 16 : index
    %233 = vector.load %arg12[%c0_107, %c16_108] : memref<48x32xf32, #tpu.memory_space<vmem>>, vector<48x8xf32>
    tpu.vector_store %arg12[%c0_107, %c16_108], %232 {strides = array<i32>} : memref<48x32xf32, #tpu.memory_space<vmem>>, vector<48x8xf32>,
    %234 = vector.extract_strided_slice %182 {offsets = [0, 72], sizes = [48, 8], strides = [1, 1]} : vector<48x96xbf16> to vector<48x8xbf16>
    %235 = vector.extract_strided_slice %182 {offsets = [0, 80], sizes = [48, 8], strides = [1, 1]} : vector<48x96xbf16> to vector<48x8xbf16>
    %236 = vector.extract_strided_slice %182 {offsets = [0, 88], sizes = [48, 8], strides = [1, 1]} : vector<48x96xbf16> to vector<48x8xbf16>
    %cst_109 = arith.constant dense<0.000000e+00> : vector<48x48xf32>
    %237 = tpu.matmul %234, %235, %cst_109 {dimension_numbers = #tpu.dot_dimension_numbers<[1], [1], [0], [0], [0, 0, 1, 0], [], []>} : vector<48x8xbf16>, vector<48x8xbf16>, vector<48x48xf32> -> vector<48x48xf32>
    %238 = arith.addf %237, %172 : vector<48x48xf32>
    %cst_110 = arith.constant dense<0xFF800000> : vector<48xf32>
    %239 = vector.multi_reduction <maximumf>, %238, %cst_110 [1] : vector<48x48xf32> to vector<48xf32>
    %240 = vector.shape_cast %239 : vector<48xf32> to vector<48x1xf32>
    %241 = vector.broadcast %240 : vector<48x1xf32> to vector<48x48xf32>
    %242 = arith.subf %238, %241 : vector<48x48xf32>
    %243 = math.exp %242 : vector<48x48xf32>
    %cst_111 = arith.constant dense<0.000000e+00> : vector<48xf32>
    %244 = vector.multi_reduction <add>, %243, %cst_111 [1] : vector<48x48xf32> to vector<48xf32>
    %245 = vector.shape_cast %244 : vector<48xf32> to vector<48x1xf32>
    %246 = vector.broadcast %245 : vector<48x1xf32> to vector<48x48xf32>
    %247 = arith.divf %243, %246 : vector<48x48xf32>
    %248 = arith.truncf %247 : vector<48x48xf32> to vector<48x48xbf16>
    %cst_112 = arith.constant dense<0.000000e+00> : vector<48x8xf32>
    %249 = tpu.matmul %248, %236, %cst_112 {dimension_numbers = #tpu.dot_dimension_numbers<[1], [0], [0], [1], [0, 0, 1, 1], [], []>} : vector<48x48xbf16>, vector<48x8xbf16>, vector<48x8xf32> -> vector<48x8xf32>
    %c0_113 = arith.constant 0 : index
    %c24_114 = arith.constant 24 : index
    %250 = vector.load %arg12[%c0_113, %c24_114] : memref<48x32xf32, #tpu.memory_space<vmem>>, vector<48x8xf32>
    tpu.vector_store %arg12[%c0_113, %c24_114], %249 {strides = array<i32>} : memref<48x32xf32, #tpu.memory_space<vmem>>, vector<48x8xf32>,
    %c0_115 = arith.constant 0 : index
    %c0_116 = arith.constant 0 : index
    %251 = vector.load %arg12[%c0_115, %c0_116] : memref<48x32xf32, #tpu.memory_space<vmem>>, vector<48x32xf32>
    %252 = arith.truncf %251 : vector<48x32xf32> to vector<48x32xbf16>
    %c1_117 = arith.constant 1 : index
    %c0_118 = arith.constant 0 : index
    %c0_119 = arith.constant 0 : index
    %253 = vector.load %arg6[%c1_117, %c0_118, %c0_119] : memref<2x32x32xbf16, #tpu.memory_space<vmem>>, vector<1x32x32xbf16>
    %254 = vector.shape_cast %253 : vector<1x32x32xbf16> to vector<32x32xbf16>
    %cst_120 = arith.constant dense<0.000000e+00> : vector<48x32xf32>
    %255 = tpu.matmul %252, %254, %cst_120 {dimension_numbers = #tpu.dot_dimension_numbers<[1], [0], [0], [1], [0, 0, 1, 1], [], []>} : vector<48x32xbf16>, vector<32x32xbf16>, vector<48x32xf32> -> vector<48x32xf32>
    %c1_121 = arith.constant 1 : index
    %c0_122 = arith.constant 0 : index
    %c0_123 = arith.constant 0 : index
    %256 = vector.load %arg7[%c1_121, %c0_122, %c0_123] : memref<2x1x32xf32, #tpu.memory_space<vmem>>, vector<1x1x32xf32>
    %257 = vector.shape_cast %256 : vector<1x1x32xf32> to vector<1x32xf32>
    %258 = vector.broadcast %257 : vector<1x32xf32> to vector<48x32xf32>
    %259 = arith.addf %255, %258 : vector<48x32xf32>
    %260 = arith.truncf %259 : vector<48x32xf32> to vector<48x32xbf16>
    %c0_124 = arith.constant 0 : index
    %c0_125 = arith.constant 0 : index
    %261 = vector.load %arg8[%c0_124, %c0_125] : memref<32x128xbf16, #tpu.memory_space<vmem>>, vector<32x128xbf16>
    %cst_126 = arith.constant dense<0.000000e+00> : vector<48x128xf32>
    %262 = tpu.matmul %260, %261, %cst_126 {dimension_numbers = #tpu.dot_dimension_numbers<[1], [0], [0], [1], [0, 0, 1, 1], [], []>} : vector<48x32xbf16>, vector<32x128xbf16>, vector<48x128xf32> -> vector<48x128xf32>
    %c0_127 = arith.constant 0 : index
    %c0_128 = arith.constant 0 : index
    %263 = vector.load %arg9[%c0_127, %c0_128] : memref<1x128xf32, #tpu.memory_space<vmem>>, vector<1x128xf32>
    %264 = vector.broadcast %263 : vector<1x128xf32> to vector<48x128xf32>
    %265 = arith.addf %262, %264 : vector<48x128xf32>
    %c0_129 = arith.constant 0 : index
    %c0_130 = arith.constant 0 : index
    %266 = vector.load %arg10[%c0_129, %c0_130] : memref<48x128xf32, #tpu.memory_space<vmem>>, vector<48x128xf32>
    tpu.vector_store %arg10[%c0_129, %c0_130], %265 {strides = array<i32>} : memref<48x128xf32, #tpu.memory_space<vmem>>, vector<48x128xf32>,
    return
  }
  func.func @transform_0(%arg0: i32, %arg1: memref<2xi32, #tpu.memory_space<smem>>) -> (i32, i32, i32) {
    %c0_i32 = arith.constant 0 : i32
    %c0_i32_0 = arith.constant 0 : i32
    %c0_i32_1 = arith.constant 0 : i32
    %c0_i32_2 = arith.constant 0 : i32
    return %c0_i32, %c0_i32_0, %c0_i32_1 : i32, i32, i32
  }
  func.func @transform_1(%arg0: i32, %arg1: memref<2xi32, #tpu.memory_space<smem>>) -> (i32, i32, i32) {
    %c0_i32 = arith.constant 0 : i32
    %c0_i32_0 = arith.constant 0 : i32
    %c0_i32_1 = arith.constant 0 : i32
    %c0_i32_2 = arith.constant 0 : i32
    return %c0_i32, %c0_i32_0, %c0_i32_1 : i32, i32, i32
  }
  func.func @transform_2(%arg0: i32, %arg1: memref<2xi32, #tpu.memory_space<smem>>) -> (i32, i32, i32) {
    %c0_i32 = arith.constant 0 : i32
    %c0_i32_0 = arith.constant 0 : i32
    %c0_i32_1 = arith.constant 0 : i32
    %c0_i32_2 = arith.constant 0 : i32
    return %c0_i32, %c0_i32_0, %c0_i32_1 : i32, i32, i32
  }
  func.func @transform_3(%arg0: i32, %arg1: memref<2xi32, #tpu.memory_space<smem>>) -> (i32, i32, i32) {
    %c0_i32 = arith.constant 0 : i32
    %c0_i32_0 = arith.constant 0 : i32
    %c0_i32_1 = arith.constant 0 : i32
    %c0_i32_2 = arith.constant 0 : i32
    return %c0_i32, %c0_i32_0, %c0_i32_1 : i32, i32, i32
  }
  func.func @transform_4(%arg0: i32, %arg1: memref<2xi32, #tpu.memory_space<smem>>) -> (i32, i32, i32) {
    %c0_i32 = arith.constant 0 : i32
    %c0_i32_0 = arith.constant 0 : i32
    %c0_i32_1 = arith.constant 0 : i32
    %c0_i32_2 = arith.constant 0 : i32
    return %c0_i32, %c0_i32_0, %c0_i32_1 : i32, i32, i32
  }
  func.func @transform_5(%arg0: i32, %arg1: memref<2xi32, #tpu.memory_space<smem>>) -> (i32, i32, i32) {
    %c0_i32 = arith.constant 0 : i32
    %c0_i32_0 = arith.constant 0 : i32
    %c0_i32_1 = arith.constant 0 : i32
    %c0_i32_2 = arith.constant 0 : i32
    return %c0_i32, %c0_i32_0, %c0_i32_1 : i32, i32, i32
  }
  func.func @transform_6(%arg0: i32, %arg1: memref<2xi32, #tpu.memory_space<smem>>) -> (i32, i32) {
    %c0_i32 = arith.constant 0 : i32
    %c0_i32_0 = arith.constant 0 : i32
    %c0_i32_1 = arith.constant 0 : i32
    return %c0_i32, %c0_i32_0 : i32, i32
  }
  func.func @transform_7(%arg0: i32, %arg1: memref<2xi32, #tpu.memory_space<smem>>) -> (i32, i32) {
    %c0_i32 = arith.constant 0 : i32
    %c0_i32_0 = arith.constant 0 : i32
    %c0_i32_1 = arith.constant 0 : i32
    return %c0_i32, %c0_i32_0 : i32, i32
  }
  func.func @transform_8(%arg0: i32, %arg1: memref<2xi32, #tpu.memory_space<smem>>) -> (i32, i32) {
    %c0_i32 = arith.constant 0 : i32
    %c0_i32_0 = arith.constant 0 : i32
    %c0_i32_1 = arith.constant 0 : i32
    return %c0_i32, %c0_i32_0 : i32, i32
  }
}

</mosaic_0001>

<llo_original>
// kernel: tpu_custom_call.1
$region0: #{tpu_custom_call.1}
  #allocation0 [shape = 'u32[]', space=smem, size = 0x4, offset = 0x4, fixed_abs, tag = 'smem constant byte address 0x4 - core index']
  #allocation1 [shape = 'u32[144,128]{1,0:T(1,128)}', space=vmem, size = 0x12000, scoped, tag = 'internal scratch']
  #allocation2 [shape = 'f32[48,32]{1,0:T(8,128)}', space=vmem, size = 0x6000, scoped, tag = 'scratch operand']
  #allocation3 [shape = 'f32[48,32]{1,0:T(8,128)}', space=vmem, size = 0x6000, scoped, tag = 'scratch operand']
  #allocation4 [shape = 's32[1]{0}', space=sflag, size = 0x4, scoped, tag = 'scoped memory for tpu_custom_call.1']
  #allocation5 [shape = 'u8[512]{0}', space=smem, size = 0x200, scoped, tag = 'prefetched SMEM operand 0']
  %s0 = inlined_call_operand.hbm [shape: s32[2], index: 0, kind: input, shape index: {}]
  %s1 = inlined_call_operand.hbm [shape: f32[2,8,32], index: 1, kind: input, shape index: {}]
  %s2 = inlined_call_operand.hbm [shape: f32[2,8,32], index: 2, kind: input, shape index: {}]
  %s3 = inlined_call_operand.hbm [shape: bf16[2,32,96], index: 3, kind: input, shape index: {}]
  %s4 = inlined_call_operand.vmem [shape: f32[2,1,96], index: 4, kind: input, shape index: {}]
  %s5 = inlined_call_operand.hbm [shape: bf16[2,32,32], index: 5, kind: input, shape index: {}]
  %s6 = inlined_call_operand.vmem [shape: f32[2,1,32], index: 6, kind: input, shape index: {}]
  %s7 = inlined_call_operand.vmem [shape: bf16[32,128], index: 7, kind: input, shape index: {}]
  %s8 = inlined_call_operand.vmem [shape: f32[1,128], index: 8, kind: input, shape index: {}]
  %s9 = inlined_call_operand.hbm [shape: f32[48,128], index: 9, kind: output, shape index: {}]
  %s10 = sld [smem:[#allocation0]]
  $region58: #{tpu_custom_call.1} parent=0
    _
  %s12 = ssub.s32 1, %s10
  %s13 = scalar_select 0, %s12, %s10
  %15 = dma.hbm_to_smem %s0, 16, [#allocation5], [#allocation4]
  %16 = dma.done [#allocation4], 16
  %17 = sfence
  $region1: #{tpu_custom_call.1} parent=0
    #allocation6 [shape = 'u8[8192]{0}', space=vmem, size = 0x2000, scoped, tag = 'input window, operand 1, single buffered']
    #allocation7 [shape = 's32[1]{0}', space=sflag, size = 0x4, scoped, tag = 'scoped memory for tpu_custom_call.1']
    #allocation8 [shape = 's32[1]{0}', space=sflag, size = 0x4, scoped, tag = 'scoped memory for tpu_custom_call.1']
    #allocation9 [shape = 'u8[8192]{0}', space=vmem, size = 0x2000, scoped, tag = 'input window, operand 2, single buffered']
    #allocation10 [shape = 's32[1]{0}', space=sflag, size = 0x4, scoped, tag = 'scoped memory for tpu_custom_call.1']
    #allocation11 [shape = 'u8[16384]{0}', space=vmem, size = 0x4000, scoped, tag = 'input window, operand 3, single buffered']
    #allocation12 [shape = 'u8[16384]{0}', space=vmem, size = 0x4000, scoped, tag = 'input window, operand 5, single buffered']
    #allocation13 [shape = 's32[1]{0}', space=sflag, size = 0x4, scoped, tag = 'scoped memory for tpu_custom_call.1']
    #allocation14 [shape = 'u8[24576]{0}', space=vmem, size = 0x6000, scoped, tag = 'output window, operand 0, single buffered']
    %18 = vsyncpa [#allocation7], 0
    %19 = vsyncpa [#allocation10], 0
    %20 = vsyncpa [#allocation13], 0
    %21 = vsyncpa [#allocation8], 0
    // Predicated region
    $region2: #{tpu_custom_call.1} parent=1 // pred_check
      _
    $region3: #{tpu_custom_call.1} parent=1 // pred_check_branch
      %23 = sbr.rel (0) target = $region5
    $region4: #{tpu_custom_call.1} parent=1 // pred_region
      %s25 = ssub.s32 256, 256
      %26 = vsyncadd [#allocation7], %s25
      %s27 = sshll.u32 [#allocation6], 4
      %s28 = int_to_ptr.vmem [resolvable:$true] %s27
      %33 = dma.hbm_to_vmem [thread:$0]  %s1, 256, %s28, [#allocation7], 128, 128, 8
    $region5: #{tpu_custom_call.1} parent=1 // pred_fallthru
      _
    // Predicated region
    $region6: #{tpu_custom_call.1} parent=1 // pred_check
      _
    $region7: #{tpu_custom_call.1} parent=1 // pred_check_branch
      %35 = sbr.rel (0) target = $region9
    $region8: #{tpu_custom_call.1} parent=1 // pred_region
      %s37 = ssub.s32 256, 256
      %38 = vsyncadd [#allocation10], %s37
      %s39 = sshll.u32 [#allocation9], 4
      %s40 = int_to_ptr.vmem [resolvable:$true] %s39
      %45 = dma.hbm_to_vmem [thread:$0]  %s2, 256, %s40, [#allocation10], 128, 128, 8
    $region9: #{tpu_custom_call.1} parent=1 // pred_fallthru
      _
    // Predicated region
    $region10: #{tpu_custom_call.1} parent=1 // pred_check
      _
    $region11: #{tpu_custom_call.1} parent=1 // pred_check_branch
      %47 = sbr.rel (0) target = $region13
    $region12: #{tpu_custom_call.1} parent=1 // pred_region
      %s49 = ssub.s32 512, 512
      %50 = vsyncadd [#allocation10], %s49
      %s51 = sshll.u32 [#allocation11], 4
      %s52 = int_to_ptr.vmem [resolvable:$true] %s51
      %57 = dma.hbm_to_vmem [thread:$0]  %s3, 512, %s52, [#allocation10], 64, 64, 4
    $region13: #{tpu_custom_call.1} parent=1 // pred_fallthru
      _
    // Predicated region
    $region14: #{tpu_custom_call.1} parent=1 // pred_check
      _
    $region15: #{tpu_custom_call.1} parent=1 // pred_check_branch
      %59 = sbr.rel (0) target = $region17
    $region16: #{tpu_custom_call.1} parent=1 // pred_region
      _
    $region17: #{tpu_custom_call.1} parent=1 // pred_fallthru
      _
    // Predicated region
    $region18: #{tpu_custom_call.1} parent=1 // pred_check
      _
    $region19: #{tpu_custom_call.1} parent=1 // pred_check_branch
      %61 = sbr.rel (0) target = $region21
    $region20: #{tpu_custom_call.1} parent=1 // pred_region
      %s63 = ssub.s32 512, 512
      %64 = vsyncadd [#allocation13], %s63
      %s65 = sshll.u32 [#allocation12], 4
      %s66 = int_to_ptr.vmem [resolvable:$true] %s65
      %71 = dma.hbm_to_vmem [thread:$0]  %s5, 512, %s66, [#allocation13], 64, 64, 4
    $region21: #{tpu_custom_call.1} parent=1 // pred_fallthru
      _
    // Predicated region
    $region22: #{tpu_custom_call.1} parent=1 // pred_check
      _
    $region23: #{tpu_custom_call.1} parent=1 // pred_check_branch
      %73 = sbr.rel (0) target = $region25
    $region24: #{tpu_custom_call.1} parent=1 // pred_region
      _
    $region25: #{tpu_custom_call.1} parent=1 // pred_fallthru
      _
    // Predicated region
    $region26: #{tpu_custom_call.1} parent=1 // pred_check
      _
    $region27: #{tpu_custom_call.1} parent=1 // pred_check_branch
      %75 = sbr.rel (0) target = $region29
    $region28: #{tpu_custom_call.1} parent=1 // pred_region
      _
    $region29: #{tpu_custom_call.1} parent=1 // pred_fallthru
      _
    // Predicated region
    $region30: #{tpu_custom_call.1} parent=1 // pred_check
      _
    $region31: #{tpu_custom_call.1} parent=1 // pred_check_branch
      %77 = sbr.rel (0) target = $region33
    $region32: #{tpu_custom_call.1} parent=1 // pred_region
      _
    $region33: #{tpu_custom_call.1} parent=1 // pred_fallthru
      _
    // Predicated region
    $region34: #{tpu_custom_call.1} parent=1 // pred_check
      _
    $region35: #{tpu_custom_call.1} parent=1 // pred_check_branch
      %79 = sbr.rel (0) target = $region37
    $region36: #{tpu_custom_call.1} parent=1 // pred_region
      %80 = dma.done [#allocation7], 256
    $region37: #{tpu_custom_call.1} parent=1 // pred_fallthru
      _
    // Predicated region
    $region38: #{tpu_custom_call.1} parent=1 // pred_check
      _
    $region39: #{tpu_custom_call.1} parent=1 // pred_check_branch
      %82 = sbr.rel (0) target = $region41
    $region40: #{tpu_custom_call.1} parent=1 // pred_region
      %83 = dma.done [#allocation10], 256
    $region41: #{tpu_custom_call.1} parent=1 // pred_fallthru
      _
    // Predicated region
    $region42: #{tpu_custom_call.1} parent=1 // pred_check
      _
    $region43: #{tpu_custom_call.1} parent=1 // pred_check_branch
      %85 = sbr.rel (0) target = $region45
    $region44: #{tpu_custom_call.1} parent=1 // pred_region
      %86 = dma.done [#allocation10], 512
    $region45: #{tpu_custom_call.1} parent=1 // pred_fallthru
      _
    // Predicated region
    $region46: #{tpu_custom_call.1} parent=1 // pred_check
      _
    $region47: #{tpu_custom_call.1} parent=1 // pred_check_branch
      %88 = sbr.rel (0) target = $region49
    $region48: #{tpu_custom_call.1} parent=1 // pred_region
      %89 = dma.done [#allocation13], 512
    $region49: #{tpu_custom_call.1} parent=1 // pred_fallthru
      _
    %vm91 = vcmask 261120
    %92 = vst.msk [vmem:[#allocation2] sm:$0xff] %vm91, 0.0
    %93 = vst.msk [vmem:[#allocation2 + $0x8] sm:$0xff] %vm91, 0.0
    %94 = vst.msk [vmem:[#allocation2 + $0x10] sm:$0xff] %vm91, 0.0
    %95 = vst.msk [vmem:[#allocation2 + $0x18] sm:$0xff] %vm91, 0.0
    %96 = vst.msk [vmem:[#allocation2 + $0x20] sm:$0xff] %vm91, 0.0
    %97 = vst.msk [vmem:[#allocation2 + $0x28] sm:$0xff] %vm91, 0.0
    %v98 = vld [vmem:[#allocation6] sm:$0xff]
    %99 = vst.msk [vmem:[#allocation2] sm:$0xff] %vm91, %v98
    %v100 = vld [vmem:[#allocation9] sm:$0xff]
    %s101 = scalar_lea.vmem [#allocation6], 8
    %v102 = vld [vmem:[%s101] sm:$0xff]
    %103 = vst.msk [vmem:[#allocation2 + $0x18] sm:$0xff] %vm91, %v102
    %s104 = scalar_lea.vmem [#allocation9], 8
    %v105 = vld [vmem:[%s104] sm:$0xff]
    %v106 = vlaneseq
    %v107 = vand.u32 %v106, 127
    %vm108 = vcmp.ge.s32.totalorder %v107, 0
    %s109 = sld [smem:[#allocation5]]
    %v110 = vstv %s109
    %v111 = vsel %vm108, %v110, 0
    %vm112 = vcmp.ge.s32.totalorder %v107, 24
    %v113 = vsub.s32 %v107, 24
    %v114 = vsel %vm112, %v113, %v107
    %s115 = sld [smem:[#allocation5 + $0x1]]
    %v116 = vstv %s115
    %v117 = vsel %vm112, %v116, %v111
    %v118 = vlaneseq
    %v119 = vshrl.u32 %v118, 7
    %v120 = vadd.s32 %v119, 8
    %v121 = vadd.s32 %v119, 16
    %v122 = vadd.s32 %v119, 24
    %v123 = vadd.s32 %v119, 32
    %v124 = vadd.s32 %v119, 40
    %vm125 = vcmp.ge.s32.totalorder %v119, 24
    %vm126 = vcmp.ge.s32.totalorder %v120, 24
    %vm127 = vcmp.ge.s32.totalorder %v121, 24
    %vm128 = vcmp.ge.s32.totalorder %v122, 24
    %vm129 = vcmp.ge.s32.totalorder %v123, 24
    %vm130 = vcmp.ge.s32.totalorder %v124, 24
    %v131 = vsel %vm125, 1, 0
    %v132 = vsel %vm126, 1, 0
    %v133 = vsel %vm127, 1, 0
    %v134 = vsel %vm128, 1, 0
    %v135 = vsel %vm129, 1, 0
    %v136 = vsel %vm130, 1, 0
    %v137 = vsel %vm112, 1, 0
    %vm138 = vcmp.eq.s32.totalorder %v131, %v137
    %vm139 = vcmp.eq.s32.totalorder %v132, %v137
    %vm140 = vcmp.eq.s32.totalorder %v133, %v137
    %vm141 = vcmp.eq.s32.totalorder %v134, %v137
    %vm142 = vcmp.eq.s32.totalorder %v135, %v137
    %vm143 = vcmp.eq.s32.totalorder %v136, %v137
    %v144 = vsel %vm138, 0.0, -1e+30
    %v145 = vsel %vm139, 0.0, -1e+30
    %v146 = vsel %vm140, 0.0, -1e+30
    %v147 = vsel %vm141, 0.0, -1e+30
    %v148 = vsel %vm142, 0.0, -1e+30
    %v149 = vsel %vm143, 0.0, -1e+30
    %150 = vst.msk [vmem:[#allocation2 + $0x8] sm:$0xff] %vm91, %v100
    %151 = vst.msk [vmem:[#allocation2 + $0x20] sm:$0xff] %vm91, %v105
    %vm152 = vcmp.lt.s32.totalorder %v114, 8
    %v153 = vsub.s32 %v114, 8
    %v154 = vsel %vm152, %v114, %v153
    %v155 = vsub.s32 %v117, 4
    %vm156 = vcmp.ge.s32.totalorder %v154, %v155
    %vm157 = vcmp.lt.s32.totalorder %v154, %v117
    %vm158 = vmand %vm156, %vm157
    %v159 = vsel %vm158, 1, 0
    %v160 = vcvt.s32.f32 %v159
    %vm161 = vcmp.lt.s32.totalorder %v114, 16
    %v162 = vsel %vm161, %v160, -1e+30
    %v163 = vadd.f32 %v144, %v162
    %v164 = vadd.f32 %v145, %v162
    %v165 = vadd.f32 %v146, %v162
    %v166 = vadd.f32 %v147, %v162
    %v167 = vadd.f32 %v148, %v162
    %v168 = vadd.f32 %v149, %v162
    %v169 = vld [vmem:[#allocation2] sm:$0xff]
    %v170 = vld [vmem:[#allocation2 + $0x8] sm:$0xff]
    %v171 = vld [vmem:[#allocation2 + $0x10] sm:$0xff]
    %v172 = vld [vmem:[#allocation2 + $0x18] sm:$0xff]
    %v173 = vld [vmem:[#allocation2 + $0x20] sm:$0xff]
    %v174 = vld [vmem:[#allocation2 + $0x28] sm:$0xff]
    %v175 = vpack.c.bf16 %v170, %v169
    %v176 = vpack.c.bf16 %v172, %v171
    %v177 = vpack.c.bf16 %v174, %v173
    %v178 = vld [vmem:[#allocation11] sm:$0xf]
    %v179 = vld [vmem:[#allocation11 + $0x4] sm:$0xf]
    %v180 = vld [vmem:[#allocation11 + $0x8] sm:$0xf]
    %v181 = vld [vmem:[#allocation11 + $0xc] sm:$0xf]
    %v182 = vld [vmem:[%s4] sm:$0x1]
    %v184 = vlaneseq
    %v185 = vshrl.u32 %v184, 7
    %v186 = vsub.s32 0, %v185
    %v187 = vrot.slane %v182, %v186
    %v193 = vunpack.c.l.b16 %v178
    %v194 = vunpack.c.l.b16 %v179
    %v195 = vunpack.c.l.b16 %v180
    %v196 = vunpack.c.l.b16 %v181
    %v197 = vpack.c.b16 %v194, %v193
    %v198 = vpack.c.b16 %v196, %v195
    %v202 = vsel %vm91, %v175, 0
    %v205 = vsel %vm91, %v176, 0
    %v208 = vsel %vm91, %v177, 0
    %210 = vmatprep.subr.bf16.mxu0 0
    %211 = vmatpush1.bf16.msra.mxu0 %v197
    %212 = vmatprep.subr.bf16.mxu0 0
    %213 = vmatpush1.bf16.msra.mxu0 %v198
    %214 = vmatprep.subr.bf16.mxu0 0
    %215 = vmatpush1.bf16.msra.mxu0 0
    %216 = vmatprep.subr.bf16.mxu0 0
    %217 = vmatpush1.bf16.msra.mxu0 0
    %218 = vmatprep.subr.bf16.mxu0 0
    %219 = vmatpush1.bf16.msra.mxu0 0
    %220 = vmatprep.subr.bf16.mxu0 0
    %221 = vmatpush1.bf16.msra.mxu0 0
    %222 = vmatprep.subr.bf16.mxu0 0
    %223 = vmatpush1.bf16.msra.mxu0 0
    %224 = vmatprep.subr.bf16.mxu0 0
    %225 = vmatpush1.bf16.msra.mxu0 0
    %226 = vmatprep.subr.bf16.mxu0 0
    %227 = vmatpush1.bf16.msra.mxu0 0
    %228 = vmatprep.subr.bf16.mxu0 0
    %229 = vmatpush1.bf16.msra.mxu0 0
    %230 = vmatprep.subr.bf16.mxu0 0
    %231 = vmatpush1.bf16.msra.mxu0 0
    %232 = vmatprep.subr.bf16.mxu0 0
    %233 = vmatpush1.bf16.msra.mxu0 0
    %234 = vmatprep.subr.bf16.mxu0 0
    %235 = vmatpush1.bf16.msra.mxu0 0
    %236 = vmatprep.subr.bf16.mxu0 0
    %237 = vmatpush1.bf16.msra.mxu0 0
    %238 = vmatprep.subr.bf16.mxu0 0
    %239 = vmatpush1.bf16.msra.mxu0 0
    %240 = vmatprep.subr.bf16.mxu0 0
    %241 = vmatpush1.bf16.msra.mxu0 0
    %242 = vmatprep.mubr.bf16.mxu0 0
    %243 = vmatmul.mubr.bf16.gmra.mrb[0].mxu0 %v202
    %v244 = vpop.f32.mrb[0].mxu0
    %v245 = vadd.f32 %v187, %v244
    %v246 = vpop.f32.mrb[0].mxu0
    %v247 = vpop.f32.mrb[0].mxu0
    %v248 = vadd.f32 %v187, %v247
    %v249 = vpop.f32.mrb[0].mxu0
    %250 = vmatprep.mubr.bf16.mxu0 0
    %251 = vmatmul.mubr.bf16.gmra.mrb[0].mxu0 %v205
    %v252 = vpop.f32.mrb[0].mxu0
    %v253 = vadd.f32 %v187, %v252
    %v254 = vpop.f32.mrb[0].mxu0
    %v255 = vpop.f32.mrb[0].mxu0
    %v256 = vadd.f32 %v187, %v255
    %v257 = vpop.f32.mrb[0].mxu0
    %258 = vmatprep.mubr.bf16.mxu0 0
    %259 = vmatmul.mubr.bf16.gmra.mrb[0].mxu0 %v208
    %v260 = vpop.f32.mrb[0].mxu0
    %v261 = vadd.f32 %v187, %v260
    %v262 = vpop.f32.mrb[0].mxu0
    %v263 = vpop.f32.mrb[0].mxu0
    %v264 = vadd.f32 %v187, %v263
    %v265 = vpop.f32.mrb[0].mxu0
    %266 = vdwg.mxu0
    %v267 = vpack.c.bf16 %v248, %v245
    %v268 = vpack.c.bf16 %v256, %v253
    %v269 = vpack.c.bf16 %v264, %v261
    %273 = vrot.lane.b32.xlu0 %v267, 120
    %v274 = vpop.permute.xlu0 %273
    %275 = vrot.lane.b32.xlu0 %v268, 120
    %v276 = vpop.permute.xlu0 %275
    %277 = vrot.lane.b32.xlu0 %v269, 120
    %v278 = vpop.permute.xlu0 %277
    %vm279 = vcmask 64512
    %v281 = vsel %vm279, %v267, 0
    %v284 = vsel %vm279, %v268, 0
    %v287 = vsel %vm279, %v269, 0
    %v290 = vsel %vm279, %v274, 0
    %v293 = vsel %vm279, %v276, 0
    %v296 = vsel %vm279, %v278, 0
    %298 = vmatprep.subr.bf16.mxu0 0
    %299 = vmatpush1.bf16.xpose.msra.mxu0 %v290
    %300 = vmatprep.subr.bf16.mxu0 0
    %301 = vmatpush1.bf16.xpose.msra.mxu0 %v293
    %302 = vmatprep.subr.bf16.mxu0 0
    %303 = vmatpush1.bf16.xpose.msra.mxu0 %v296
    %304 = vmatprep.subr.bf16.mxu0 0
    %305 = vmatpush1.bf16.xpose.msra.mxu0 0
    %306 = vmatprep.subr.bf16.mxu0 0
    %307 = vmatpush1.bf16.xpose.msra.mxu0 0
    %308 = vmatprep.subr.bf16.mxu0 0
    %309 = vmatpush1.bf16.xpose.msra.mxu0 0
    %310 = vmatprep.subr.bf16.mxu0 0
    %311 = vmatpush1.bf16.xpose.msra.mxu0 0
    %312 = vmatprep.subr.bf16.mxu0 0
    %313 = vmatpush1.bf16.xpose.msra.mxu0 0
    %314 = vmatprep.subr.bf16.mxu0 0
    %315 = vmatpush1.bf16.xpose.msra.mxu0 0
    %316 = vmatprep.subr.bf16.mxu0 0
    %317 = vmatpush1.bf16.xpose.msra.mxu0 0
    %318 = vmatprep.subr.bf16.mxu0 0
    %319 = vmatpush1.bf16.xpose.msra.mxu0 0
    %320 = vmatprep.subr.bf16.mxu0 0
    %321 = vmatpush1.bf16.xpose.msra.mxu0 0
    %322 = vmatprep.subr.bf16.mxu0 0
    %323 = vmatpush1.bf16.xpose.msra.mxu0 0
    %324 = vmatprep.subr.bf16.mxu0 0
    %325 = vmatpush1.bf16.xpose.msra.mxu0 0
    %326 = vmatprep.subr.bf16.mxu0 0
    %327 = vmatpush1.bf16.xpose.msra.mxu0 0
    %328 = vmatprep.subr.bf16.mxu0 0
    %329 = vmatpush1.bf16.xpose.msra.mxu0 0
    %330 = vmatprep.mubr.bf16.mxu0 0
    %331 = vmatmul.mubr.bf16.gmra.mrb[0].mxu0 %v281
    %v332 = vpop.f32.mrb[0].mxu0
    %v333 = vadd.f32 %v163, %v332
    %v334 = vpop.f32.mrb[0].mxu0
    %v335 = vpop.f32.mrb[0].mxu0
    %v336 = vadd.f32 %v164, %v335
    %v337 = vpop.f32.mrb[0].mxu0
    %338 = vmatprep.mubr.bf16.mxu0 0
    %339 = vmatmul.mubr.bf16.gmra.mrb[0].mxu0 %v284
    %v340 = vpop.f32.mrb[0].mxu0
    %v341 = vadd.f32 %v165, %v340
    %v342 = vpop.f32.mrb[0].mxu0
    %v343 = vpop.f32.mrb[0].mxu0
    %v344 = vadd.f32 %v166, %v343
    %v345 = vpop.f32.mrb[0].mxu0
    %346 = vmatprep.mubr.bf16.mxu0 0
    %347 = vmatmul.mubr.bf16.gmra.mrb[0].mxu0 %v287
    %v348 = vpop.f32.mrb[0].mxu0
    %v349 = vadd.f32 %v167, %v348
    %v350 = vpop.f32.mrb[0].mxu0
    %v351 = vpop.f32.mrb[0].mxu0
    %v352 = vadd.f32 %v168, %v351
    %v353 = vpop.f32.mrb[0].mxu0
    %354 = vdwg.mxu0
    %vm355 = vcmask 392192
    %v356 = vsel %vm355, %v333, -inf
    %357 = vmax.xlane.f32.xlu0 %v356
    %v358 = vpop.xlane.xlu0 %357
    %v359 = vsel %vm355, %v336, -inf
    %360 = vmax.xlane.f32.xlu0 %v359
    %v361 = vpop.xlane.xlu0 %360
    %v362 = vsel %vm355, %v341, -inf
    %363 = vmax.xlane.f32.xlu0 %v362
    %v364 = vpop.xlane.xlu0 %363
    %v365 = vsel %vm355, %v344, -inf
    %366 = vmax.xlane.f32.xlu0 %v365
    %v367 = vpop.xlane.xlu0 %366
    %v368 = vsel %vm355, %v349, -inf
    %369 = vmax.xlane.f32.xlu0 %v368
    %v370 = vpop.xlane.xlu0 %369
    %v371 = vsel %vm355, %v352, -inf
    %372 = vmax.xlane.f32.xlu0 %v371
    %v373 = vpop.xlane.xlu0 %372
    %v374 = vsub.f32 %v333, %v358
    %v375 = vsub.f32 %v336, %v361
    %v376 = vsub.f32 %v341, %v364
    %v377 = vsub.f32 %v344, %v367
    %v378 = vsub.f32 %v349, %v370
    %v379 = vsub.f32 %v352, %v373
    %v380 = vmul.f32 %v374, 1.442695
    %v381 = vpow.pop %v380
    %v382 = vmul.f32 %v375, 1.442695
    %v383 = vpow.pop %v382
    %v384 = vmul.f32 %v376, 1.442695
    %v385 = vpow.pop %v384
    %v386 = vmul.f32 %v377, 1.442695
    %v387 = vpow.pop %v386
    %v388 = vmul.f32 %v378, 1.442695
    %v389 = vpow.pop %v388
    %v390 = vmul.f32 %v379, 1.442695
    %v391 = vpow.pop %v390
    %v392 = vsel %vm355, %v381, 0.0
    %393 = vadd.xlane.f32.xlu0 %v392
    %v394 = vpop.xlane.xlu0 %393
    %v395 = vsel %vm355, %v383, 0.0
    %396 = vadd.xlane.f32.xlu0 %v395
    %v397 = vpop.xlane.xlu0 %396
    %v398 = vsel %vm355, %v385, 0.0
    %399 = vadd.xlane.f32.xlu0 %v398
    %v400 = vpop.xlane.xlu0 %399
    %v401 = vsel %vm355, %v387, 0.0
    %402 = vadd.xlane.f32.xlu0 %v401
    %v403 = vpop.xlane.xlu0 %402
    %v404 = vsel %vm355, %v389, 0.0
    %405 = vadd.xlane.f32.xlu0 %v404
    %v406 = vpop.xlane.xlu0 %405
    %v407 = vsel %vm355, %v391, 0.0
    %408 = vadd.xlane.f32.xlu0 %v407
    %v409 = vpop.xlane.xlu0 %408
    %v410 = vrcp.pop %v394
    %v411 = vmul.f32 %v381, %v410
    %v412 = vrcp.pop %v397
    %v413 = vmul.f32 %v383, %v412
    %v414 = vrcp.pop %v400
    %v415 = vmul.f32 %v385, %v414
    %v416 = vrcp.pop %v403
    %v417 = vmul.f32 %v387, %v416
    %v418 = vrcp.pop %v406
    %v419 = vmul.f32 %v389, %v418
    %v420 = vrcp.pop %v409
    %v421 = vmul.f32 %v391, %v420
    %v422 = vpack.c.bf16 %v413, %v411
    %v423 = vpack.c.bf16 %v417, %v415
    %v424 = vpack.c.bf16 %v421, %v419
    %425 = vrot.lane.b32.xlu0 %v267, 112
    %v426 = vpop.permute.xlu0 %425
    %427 = vrot.lane.b32.xlu0 %v268, 112
    %v428 = vpop.permute.xlu0 %427
    %429 = vrot.lane.b32.xlu0 %v269, 112
    %v430 = vpop.permute.xlu0 %429
    %v435 = vsel %vm355, %v422, 0
    %v438 = vsel %vm355, %v423, 0
    %v441 = vsel %vm355, %v424, 0
    %443 = vmatprep.subr.bf16.mxu0 0
    %444 = vmatpush1.bf16.msra.mxu0 %v426
    %445 = vmatprep.subr.bf16.mxu0 0
    %446 = vmatpush1.bf16.msra.mxu0 %v428
    %447 = vmatprep.subr.bf16.mxu0 0
    %448 = vmatpush1.bf16.msra.mxu0 %v430
    %449 = vmatprep.subr.bf16.mxu0 0
    %450 = vmatpush1.bf16.msra.mxu0 0
    %451 = vmatprep.subr.bf16.mxu0 0
    %452 = vmatpush1.bf16.msra.mxu0 0
    %453 = vmatprep.subr.bf16.mxu0 0
    %454 = vmatpush1.bf16.msra.mxu0 0
    %455 = vmatprep.subr.bf16.mxu0 0
    %456 = vmatpush1.bf16.msra.mxu0 0
    %457 = vmatprep.subr.bf16.mxu0 0
    %458 = vmatpush1.bf16.msra.mxu0 0
    %459 = vmatprep.subr.bf16.mxu0 0
    %460 = vmatpush1.bf16.msra.mxu0 0
    %461 = vmatprep.subr.bf16.mxu0 0
    %462 = vmatpush1.bf16.msra.mxu0 0
    %463 = vmatprep.subr.bf16.mxu0 0
    %464 = vmatpush1.bf16.msra.mxu0 0
    %465 = vmatprep.subr.bf16.mxu0 0
    %466 = vmatpush1.bf16.msra.mxu0 0
    %467 = vmatprep.subr.bf16.mxu0 0
    %468 = vmatpush1.bf16.msra.mxu0 0
    %469 = vmatprep.subr.bf16.mxu0 0
    %470 = vmatpush1.bf16.msra.mxu0 0
    %471 = vmatprep.subr.bf16.mxu0 0
    %472 = vmatpush1.bf16.msra.mxu0 0
    %473 = vmatprep.subr.bf16.mxu0 0
    %474 = vmatpush1.bf16.msra.mxu0 0
    %475 = vmatprep.mubr.bf16.mxu0 0
    %476 = vmatmul.mubr.bf16.gmra.mrb[0].mxu0 %v435
    %v477 = vpop.f32.mrb[0].mxu0
    %v478 = vadd.f32 0.0, %v477
    %v479 = vpop.f32.mrb[0].mxu0
    %v480 = vpop.f32.mrb[0].mxu0
    %v481 = vadd.f32 0.0, %v480
    %v482 = vpop.f32.mrb[0].mxu0
    %483 = vmatprep.mubr.bf16.mxu0 0
    %484 = vmatmul.mubr.bf16.gmra.mrb[0].mxu0 %v438
    %v485 = vpop.f32.mrb[0].mxu0
    %v486 = vadd.f32 0.0, %v485
    %v487 = vpop.f32.mrb[0].mxu0
    %v488 = vpop.f32.mrb[0].mxu0
    %v489 = vadd.f32 0.0, %v488
    %v490 = vpop.f32.mrb[0].mxu0
    %491 = vmatprep.mubr.bf16.mxu0 0
    %492 = vmatmul.mubr.bf16.gmra.mrb[0].mxu0 %v441
    %v493 = vpop.f32.mrb[0].mxu0
    %v494 = vadd.f32 0.0, %v493
    %v495 = vpop.f32.mrb[0].mxu0
    %v496 = vpop.f32.mrb[0].mxu0
    %v497 = vadd.f32 0.0, %v496
    %v498 = vpop.f32.mrb[0].mxu0
    %499 = vdwg.mxu0
    %500 = vst.msk [vmem:[#allocation3] sm:$0xff] %vm279, %v478
    %501 = vst.msk [vmem:[#allocation3 + $0x8] sm:$0xff] %vm279, %v481
    %502 = vst.msk [vmem:[#allocation3 + $0x10] sm:$0xff] %vm279, %v486
    %503 = vst.msk [vmem:[#allocation3 + $0x18] sm:$0xff] %vm279, %v489
    %504 = vst.msk [vmem:[#allocation3 + $0x20] sm:$0xff] %vm279, %v494
    %505 = vst.msk [vmem:[#allocation3 + $0x28] sm:$0xff] %vm279, %v497
    %506 = vrot.lane.b32.xlu0 %v267, 104
    %v507 = vpop.permute.xlu0 %506
    %508 = vrot.lane.b32.xlu0 %v268, 104
    %v509 = vpop.permute.xlu0 %508
    %510 = vrot.lane.b32.xlu0 %v269, 104
    %v511 = vpop.permute.xlu0 %510
    %512 = vrot.lane.b32.xlu0 %v267, 96
    %v513 = vpop.permute.xlu0 %512
    %514 = vrot.lane.b32.xlu0 %v268, 96
    %v515 = vpop.permute.xlu0 %514
    %516 = vrot.lane.b32.xlu0 %v269, 96
    %v517 = vpop.permute.xlu0 %516
    %v519 = vsel %vm279, %v507, 0
    %v522 = vsel %vm279, %v509, 0
    %v525 = vsel %vm279, %v511, 0
    %v528 = vsel %vm279, %v513, 0
    %v531 = vsel %vm279, %v515, 0
    %v534 = vsel %vm279, %v517, 0
    %536 = vmatprep.subr.bf16.mxu0 0
    %537 = vmatpush1.bf16.xpose.msra.mxu0 %v528
    %538 = vmatprep.subr.bf16.mxu0 0
    %539 = vmatpush1.bf16.xpose.msra.mxu0 %v531
    %540 = vmatprep.subr.bf16.mxu0 0
    %541 = vmatpush1.bf16.xpose.msra.mxu0 %v534
    %542 = vmatprep.subr.bf16.mxu0 0
    %543 = vmatpush1.bf16.xpose.msra.mxu0 0
    %544 = vmatprep.subr.bf16.mxu0 0
    %545 = vmatpush1.bf16.xpose.msra.mxu0 0
    %546 = vmatprep.subr.bf16.mxu0 0
    %547 = vmatpush1.bf16.xpose.msra.mxu0 0
    %548 = vmatprep.subr.bf16.mxu0 0
    %549 = vmatpush1.bf16.xpose.msra.mxu0 0
    %550 = vmatprep.subr.bf16.mxu0 0
    %551 = vmatpush1.bf16.xpose.msra.mxu0 0
    %552 = vmatprep.subr.bf16.mxu0 0
    %553 = vmatpush1.bf16.xpose.msra.mxu0 0
    %554 = vmatprep.subr.bf16.mxu0 0
    %555 = vmatpush1.bf16.xpose.msra.mxu0 0
    %556 = vmatprep.subr.bf16.mxu0 0
    %557 = vmatpush1.bf16.xpose.msra.mxu0 0
    %558 = vmatprep.subr.bf16.mxu0 0
    %559 = vmatpush1.bf16.xpose.msra.mxu0 0
    %560 = vmatprep.subr.bf16.mxu0 0
    %561 = vmatpush1.bf16.xpose.msra.mxu0 0
    %562 = vmatprep.subr.bf16.mxu0 0
    %563 = vmatpush1.bf16.xpose.msra.mxu0 0
    %564 = vmatprep.subr.bf16.mxu0 0
    %565 = vmatpush1.bf16.xpose.msra.mxu0 0
    %566 = vmatprep.subr.bf16.mxu0 0
    %567 = vmatpush1.bf16.xpose.msra.mxu0 0
    %568 = vmatprep.mubr.bf16.mxu0 0
    %569 = vmatmul.mubr.bf16.gmra.mrb[0].mxu0 %v519
    %v570 = vpop.f32.mrb[0].mxu0
    %v571 = vadd.f32 %v163, %v570
    %v572 = vpop.f32.mrb[0].mxu0
    %v573 = vpop.f32.mrb[0].mxu0
    %v574 = vadd.f32 %v164, %v573
    %v575 = vpop.f32.mrb[0].mxu0
    %576 = vmatprep.mubr.bf16.mxu0 0
    %577 = vmatmul.mubr.bf16.gmra.mrb[0].mxu0 %v522
    %v578 = vpop.f32.mrb[0].mxu0
    %v579 = vadd.f32 %v165, %v578
    %v580 = vpop.f32.mrb[0].mxu0
    %v581 = vpop.f32.mrb[0].mxu0
    %v582 = vadd.f32 %v166, %v581
    %v583 = vpop.f32.mrb[0].mxu0
    %584 = vmatprep.mubr.bf16.mxu0 0
    %585 = vmatmul.mubr.bf16.gmra.mrb[0].mxu0 %v525
    %v586 = vpop.f32.mrb[0].mxu0
    %v587 = vadd.f32 %v167, %v586
    %v588 = vpop.f32.mrb[0].mxu0
    %v589 = vpop.f32.mrb[0].mxu0
    %v590 = vadd.f32 %v168, %v589
    %v591 = vpop.f32.mrb[0].mxu0
    %592 = vdwg.mxu0
    %v593 = vsel %vm355, %v571, -inf
    %594 = vmax.xlane.f32.xlu0 %v593
    %v595 = vpop.xlane.xlu0 %594
    %v596 = vsel %vm355, %v574, -inf
    %597 = vmax.xlane.f32.xlu0 %v596
    %v598 = vpop.xlane.xlu0 %597
    %v599 = vsel %vm355, %v579, -inf
    %600 = vmax.xlane.f32.xlu0 %v599
    %v601 = vpop.xlane.xlu0 %600
    %v602 = vsel %vm355, %v582, -inf
    %603 = vmax.xlane.f32.xlu0 %v602
    %v604 = vpop.xlane.xlu0 %603
    %v605 = vsel %vm355, %v587, -inf
    %606 = vmax.xlane.f32.xlu0 %v605
    %v607 = vpop.xlane.xlu0 %606
    %v608 = vsel %vm355, %v590, -inf
    %609 = vmax.xlane.f32.xlu0 %v608
    %v610 = vpop.xlane.xlu0 %609
    %v611 = vsub.f32 %v571, %v595
    %v612 = vsub.f32 %v574, %v598
    %v613 = vsub.f32 %v579, %v601
    %v614 = vsub.f32 %v582, %v604
    %v615 = vsub.f32 %v587, %v607
    %v616 = vsub.f32 %v590, %v610
    %v617 = vmul.f32 %v611, 1.442695
    %v618 = vpow.pop %v617
    %v619 = vmul.f32 %v612, 1.442695
    %v620 = vpow.pop %v619
    %v621 = vmul.f32 %v613, 1.442695
    %v622 = vpow.pop %v621
    %v623 = vmul.f32 %v614, 1.442695
    %v624 = vpow.pop %v623
    %v625 = vmul.f32 %v615, 1.442695
    %v626 = vpow.pop %v625
    %v627 = vmul.f32 %v616, 1.442695
    %v628 = vpow.pop %v627
    %v629 = vsel %vm355, %v618, 0.0
    %630 = vadd.xlane.f32.xlu0 %v629
    %v631 = vpop.xlane.xlu0 %630
    %v632 = vsel %vm355, %v620, 0.0
    %633 = vadd.xlane.f32.xlu0 %v632
    %v634 = vpop.xlane.xlu0 %633
    %v635 = vsel %vm355, %v622, 0.0
    %636 = vadd.xlane.f32.xlu0 %v635
    %v637 = vpop.xlane.xlu0 %636
    %v638 = vsel %vm355, %v624, 0.0
    %639 = vadd.xlane.f32.xlu0 %v638
    %v640 = vpop.xlane.xlu0 %639
    %v641 = vsel %vm355, %v626, 0.0
    %642 = vadd.xlane.f32.xlu0 %v641
    %v643 = vpop.xlane.xlu0 %642
    %v644 = vsel %vm355, %v628, 0.0
    %645 = vadd.xlane.f32.xlu0 %v644
    %v646 = vpop.xlane.xlu0 %645
    %v647 = vrcp.pop %v631
    %v648 = vmul.f32 %v618, %v647
    %v649 = vrcp.pop %v634
    %v650 = vmul.f32 %v620, %v649
    %v651 = vrcp.pop %v637
    %v652 = vmul.f32 %v622, %v651
    %v653 = vrcp.pop %v640
    %v654 = vmul.f32 %v624, %v653
    %v655 = vrcp.pop %v643
    %v656 = vmul.f32 %v626, %v655
    %v657 = vrcp.pop %v646
    %v658 = vmul.f32 %v628, %v657
    %v659 = vpack.c.bf16 %v650, %v648
    %v660 = vpack.c.bf16 %v654, %v652
    %v661 = vpack.c.bf16 %v658, %v656
    %662 = vrot.lane.b32.xlu0 %v267, 88
    %v663 = vpop.permute.xlu0 %662
    %664 = vrot.lane.b32.xlu0 %v268, 88
    %v665 = vpop.permute.xlu0 %664
    %666 = vrot.lane.b32.xlu0 %v269, 88
    %v667 = vpop.permute.xlu0 %666
    %v672 = vsel %vm355, %v659, 0
    %v675 = vsel %vm355, %v660, 0
    %v678 = vsel %vm355, %v661, 0
    %680 = vmatprep.subr.bf16.mxu0 0
    %681 = vmatpush1.bf16.msra.mxu0 %v663
    %682 = vmatprep.subr.bf16.mxu0 0
    %683 = vmatpush1.bf16.msra.mxu0 %v665
    %684 = vmatprep.subr.bf16.mxu0 0
    %685 = vmatpush1.bf16.msra.mxu0 %v667
    %686 = vmatprep.subr.bf16.mxu0 0
    %687 = vmatpush1.bf16.msra.mxu0 0
    %688 = vmatprep.subr.bf16.mxu0 0
    %689 = vmatpush1.bf16.msra.mxu0 0
    %690 = vmatprep.subr.bf16.mxu0 0
    %691 = vmatpush1.bf16.msra.mxu0 0
    %692 = vmatprep.subr.bf16.mxu0 0
    %693 = vmatpush1.bf16.msra.mxu0 0
    %694 = vmatprep.subr.bf16.mxu0 0
    %695 = vmatpush1.bf16.msra.mxu0 0
    %696 = vmatprep.subr.bf16.mxu0 0
    %697 = vmatpush1.bf16.msra.mxu0 0
    %698 = vmatprep.subr.bf16.mxu0 0
    %699 = vmatpush1.bf16.msra.mxu0 0
    %700 = vmatprep.subr.bf16.mxu0 0
    %701 = vmatpush1.bf16.msra.mxu0 0
    %702 = vmatprep.subr.bf16.mxu0 0
    %703 = vmatpush1.bf16.msra.mxu0 0
    %704 = vmatprep.subr.bf16.mxu0 0
    %705 = vmatpush1.bf16.msra.mxu0 0
    %706 = vmatprep.subr.bf16.mxu0 0
    %707 = vmatpush1.bf16.msra.mxu0 0
    %708 = vmatprep.subr.bf16.mxu0 0
    %709 = vmatpush1.bf16.msra.mxu0 0
    %710 = vmatprep.subr.bf16.mxu0 0
    %711 = vmatpush1.bf16.msra.mxu0 0
    %712 = vmatprep.mubr.bf16.mxu0 0
    %713 = vmatmul.mubr.bf16.gmra.mrb[0].mxu0 %v672
    %v714 = vpop.f32.mrb[0].mxu0
    %v715 = vadd.f32 0.0, %v714
    %v716 = vpop.f32.mrb[0].mxu0
    %v717 = vpop.f32.mrb[0].mxu0
    %v718 = vadd.f32 0.0, %v717
    %v719 = vpop.f32.mrb[0].mxu0
    %720 = vmatprep.mubr.bf16.mxu0 0
    %721 = vmatmul.mubr.bf16.gmra.mrb[0].mxu0 %v675
    %v722 = vpop.f32.mrb[0].mxu0
    %v723 = vadd.f32 0.0, %v722
    %v724 = vpop.f32.mrb[0].mxu0
    %v725 = vpop.f32.mrb[0].mxu0
    %v726 = vadd.f32 0.0, %v725
    %v727 = vpop.f32.mrb[0].mxu0
    %728 = vmatprep.mubr.bf16.mxu0 0
    %729 = vmatmul.mubr.bf16.gmra.mrb[0].mxu0 %v678
    %v730 = vpop.f32.mrb[0].mxu0
    %v731 = vadd.f32 0.0, %v730
    %v732 = vpop.f32.mrb[0].mxu0
    %v733 = vpop.f32.mrb[0].mxu0
    %v734 = vadd.f32 0.0, %v733
    %v735 = vpop.f32.mrb[0].mxu0
    %736 = vdwg.mxu0
    %743 = vrot.lane.b32.xlu0 %v715, 8
    %v744 = vpop.permute.xlu0 %743
    %745 = vrot.lane.b32.xlu0 %v718, 8
    %v746 = vpop.permute.xlu0 %745
    %747 = vrot.lane.b32.xlu0 %v723, 8
    %v748 = vpop.permute.xlu0 %747
    %749 = vrot.lane.b32.xlu0 %v726, 8
    %v750 = vpop.permute.xlu0 %749
    %751 = vrot.lane.b32.xlu0 %v731, 8
    %v752 = vpop.permute.xlu0 %751
    %753 = vrot.lane.b32.xlu0 %v734, 8
    %v754 = vpop.permute.xlu0 %753
    %vm761 = vcmask 130112
    %762 = vst.msk [vmem:[#allocation3] sm:$0xff] %vm761, %v744
    %763 = vst.msk [vmem:[#allocation3 + $0x8] sm:$0xff] %vm761, %v746
    %764 = vst.msk [vmem:[#allocation3 + $0x10] sm:$0xff] %vm761, %v748
    %765 = vst.msk [vmem:[#allocation3 + $0x18] sm:$0xff] %vm761, %v750
    %766 = vst.msk [vmem:[#allocation3 + $0x20] sm:$0xff] %vm761, %v752
    %767 = vst.msk [vmem:[#allocation3 + $0x28] sm:$0xff] %vm761, %v754
    %768 = vrot.lane.b32.xlu0 %v267, 80
    %v769 = vpop.permute.xlu0 %768
    %770 = vrot.lane.b32.xlu0 %v268, 80
    %v771 = vpop.permute.xlu0 %770
    %772 = vrot.lane.b32.xlu0 %v269, 80
    %v773 = vpop.permute.xlu0 %772
    %774 = vrot.lane.b32.xlu0 %v267, 72
    %v775 = vpop.permute.xlu0 %774
    %776 = vrot.lane.b32.xlu0 %v268, 72
    %v777 = vpop.permute.xlu0 %776
    %778 = vrot.lane.b32.xlu0 %v269, 72
    %v779 = vpop.permute.xlu0 %778
    %v781 = vsel %vm279, %v769, 0
    %v784 = vsel %vm279, %v771, 0
    %v787 = vsel %vm279, %v773, 0
    %v790 = vsel %vm279, %v775, 0
    %v793 = vsel %vm279, %v777, 0
    %v796 = vsel %vm279, %v779, 0
    %798 = vmatprep.subr.bf16.mxu0 0
    %799 = vmatpush1.bf16.xpose.msra.mxu0 %v790
    %800 = vmatprep.subr.bf16.mxu0 0
    %801 = vmatpush1.bf16.xpose.msra.mxu0 %v793
    %802 = vmatprep.subr.bf16.mxu0 0
    %803 = vmatpush1.bf16.xpose.msra.mxu0 %v796
    %804 = vmatprep.subr.bf16.mxu0 0
    %805 = vmatpush1.bf16.xpose.msra.mxu0 0
    %806 = vmatprep.subr.bf16.mxu0 0
    %807 = vmatpush1.bf16.xpose.msra.mxu0 0
    %808 = vmatprep.subr.bf16.mxu0 0
    %809 = vmatpush1.bf16.xpose.msra.mxu0 0
    %810 = vmatprep.subr.bf16.mxu0 0
    %811 = vmatpush1.bf16.xpose.msra.mxu0 0
    %812 = vmatprep.subr.bf16.mxu0 0
    %813 = vmatpush1.bf16.xpose.msra.mxu0 0
    %814 = vmatprep.subr.bf16.mxu0 0
    %815 = vmatpush1.bf16.xpose.msra.mxu0 0
    %816 = vmatprep.subr.bf16.mxu0 0
    %817 = vmatpush1.bf16.xpose.msra.mxu0 0
    %818 = vmatprep.subr.bf16.mxu0 0
    %819 = vmatpush1.bf16.xpose.msra.mxu0 0
    %820 = vmatprep.subr.bf16.mxu0 0
    %821 = vmatpush1.bf16.xpose.msra.mxu0 0
    %822 = vmatprep.subr.bf16.mxu0 0
    %823 = vmatpush1.bf16.xpose.msra.mxu0 0
    %824 = vmatprep.subr.bf16.mxu0 0
    %825 = vmatpush1.bf16.xpose.msra.mxu0 0
    %826 = vmatprep.subr.bf16.mxu0 0
    %827 = vmatpush1.bf16.xpose.msra.mxu0 0
    %828 = vmatprep.subr.bf16.mxu0 0
    %829 = vmatpush1.bf16.xpose.msra.mxu0 0
    %830 = vmatprep.mubr.bf16.mxu0 0
    %831 = vmatmul.mubr.bf16.gmra.mrb[0].mxu0 %v781
    %v832 = vpop.f32.mrb[0].mxu0
    %v833 = vadd.f32 %v163, %v832
    %v834 = vpop.f32.mrb[0].mxu0
    %v835 = vpop.f32.mrb[0].mxu0
    %v836 = vadd.f32 %v164, %v835
    %v837 = vpop.f32.mrb[0].mxu0
    %838 = vmatprep.mubr.bf16.mxu0 0
    %839 = vmatmul.mubr.bf16.gmra.mrb[0].mxu0 %v784
    %v840 = vpop.f32.mrb[0].mxu0
    %v841 = vadd.f32 %v165, %v840
    %v842 = vpop.f32.mrb[0].mxu0
    %v843 = vpop.f32.mrb[0].mxu0
    %v844 = vadd.f32 %v166, %v843
    %v845 = vpop.f32.mrb[0].mxu0
    %846 = vmatprep.mubr.bf16.mxu0 0
    %847 = vmatmul.mubr.bf16.gmra.mrb[0].mxu0 %v787
    %v848 = vpop.f32.mrb[0].mxu0
    %v849 = vadd.f32 %v167, %v848
    %v850 = vpop.f32.mrb[0].mxu0
    %v851 = vpop.f32.mrb[0].mxu0
    %v852 = vadd.f32 %v168, %v851
    %v853 = vpop.f32.mrb[0].mxu0
    %854 = vdwg.mxu0
    %v855 = vsel %vm355, %v833, -inf
    %856 = vmax.xlane.f32.xlu0 %v855
    %v857 = vpop.xlane.xlu0 %856
    %v858 = vsel %vm355, %v836, -inf
    %859 = vmax.xlane.f32.xlu0 %v858
    %v860 = vpop.xlane.xlu0 %859
    %v861 = vsel %vm355, %v841, -inf
    %862 = vmax.xlane.f32.xlu0 %v861
    %v863 = vpop.xlane.xlu0 %862
    %v864 = vsel %vm355, %v844, -inf
    %865 = vmax.xlane.f32.xlu0 %v864
    %v866 = vpop.xlane.xlu0 %865
    %v867 = vsel %vm355, %v849, -inf
    %868 = vmax.xlane.f32.xlu0 %v867
    %v869 = vpop.xlane.xlu0 %868
    %v870 = vsel %vm355, %v852, -inf
    %871 = vmax.xlane.f32.xlu0 %v870
    %v872 = vpop.xlane.xlu0 %871
    %v873 = vsub.f32 %v833, %v857
    %v874 = vsub.f32 %v836, %v860
    %v875 = vsub.f32 %v841, %v863
    %v876 = vsub.f32 %v844, %v866
    %v877 = vsub.f32 %v849, %v869
    %v878 = vsub.f32 %v852, %v872
    %v879 = vmul.f32 %v873, 1.442695
    %v880 = vpow.pop %v879
    %v881 = vmul.f32 %v874, 1.442695
    %v882 = vpow.pop %v881
    %v883 = vmul.f32 %v875, 1.442695
    %v884 = vpow.pop %v883
    %v885 = vmul.f32 %v876, 1.442695
    %v886 = vpow.pop %v885
    %v887 = vmul.f32 %v877, 1.442695
    %v888 = vpow.pop %v887
    %v889 = vmul.f32 %v878, 1.442695
    %v890 = vpow.pop %v889
    %v891 = vsel %vm355, %v880, 0.0
    %892 = vadd.xlane.f32.xlu0 %v891
    %v893 = vpop.xlane.xlu0 %892
    %v894 = vsel %vm355, %v882, 0.0
    %895 = vadd.xlane.f32.xlu0 %v894
    %v896 = vpop.xlane.xlu0 %895
    %v897 = vsel %vm355, %v884, 0.0
    %898 = vadd.xlane.f32.xlu0 %v897
    %v899 = vpop.xlane.xlu0 %898
    %v900 = vsel %vm355, %v886, 0.0
    %901 = vadd.xlane.f32.xlu0 %v900
    %v902 = vpop.xlane.xlu0 %901
    %v903 = vsel %vm355, %v888, 0.0
    %904 = vadd.xlane.f32.xlu0 %v903
    %v905 = vpop.xlane.xlu0 %904
    %v906 = vsel %vm355, %v890, 0.0
    %907 = vadd.xlane.f32.xlu0 %v906
    %v908 = vpop.xlane.xlu0 %907
    %v909 = vrcp.pop %v893
    %v910 = vmul.f32 %v880, %v909
    %v911 = vrcp.pop %v896
    %v912 = vmul.f32 %v882, %v911
    %v913 = vrcp.pop %v899
    %v914 = vmul.f32 %v884, %v913
    %v915 = vrcp.pop %v902
    %v916 = vmul.f32 %v886, %v915
    %v917 = vrcp.pop %v905
    %v918 = vmul.f32 %v888, %v917
    %v919 = vrcp.pop %v908
    %v920 = vmul.f32 %v890, %v919
    %v921 = vpack.c.bf16 %v912, %v910
    %v922 = vpack.c.bf16 %v916, %v914
    %v923 = vpack.c.bf16 %v920, %v918
    %924 = vrot.lane.b32.xlu0 %v267, 64
    %v925 = vpop.permute.xlu0 %924
    %926 = vrot.lane.b32.xlu0 %v268, 64
    %v927 = vpop.permute.xlu0 %926
    %928 = vrot.lane.b32.xlu0 %v269, 64
    %v929 = vpop.permute.xlu0 %928
    %v934 = vsel %vm355, %v921, 0
    %v937 = vsel %vm355, %v922, 0
    %v940 = vsel %vm355, %v923, 0
    %942 = vmatprep.subr.bf16.mxu0 0
    %943 = vmatpush1.bf16.msra.mxu0 %v925
    %944 = vmatprep.subr.bf16.mxu0 0
    %945 = vmatpush1.bf16.msra.mxu0 %v927
    %946 = vmatprep.subr.bf16.mxu0 0
    %947 = vmatpush1.bf16.msra.mxu0 %v929
    %948 = vmatprep.subr.bf16.mxu0 0
    %949 = vmatpush1.bf16.msra.mxu0 0
    %950 = vmatprep.subr.bf16.mxu0 0
    %951 = vmatpush1.bf16.msra.mxu0 0
    %952 = vmatprep.subr.bf16.mxu0 0
    %953 = vmatpush1.bf16.msra.mxu0 0
    %954 = vmatprep.subr.bf16.mxu0 0
    %955 = vmatpush1.bf16.msra.mxu0 0
    %956 = vmatprep.subr.bf16.mxu0 0
    %957 = vmatpush1.bf16.msra.mxu0 0
    %958 = vmatprep.subr.bf16.mxu0 0
    %959 = vmatpush1.bf16.msra.mxu0 0
    %960 = vmatprep.subr.bf16.mxu0 0
    %961 = vmatpush1.bf16.msra.mxu0 0
    %962 = vmatprep.subr.bf16.mxu0 0
    %963 = vmatpush1.bf16.msra.mxu0 0
    %964 = vmatprep.subr.bf16.mxu0 0
    %965 = vmatpush1.bf16.msra.mxu0 0
    %966 = vmatprep.subr.bf16.mxu0 0
    %967 = vmatpush1.bf16.msra.mxu0 0
    %968 = vmatprep.subr.bf16.mxu0 0
    %969 = vmatpush1.bf16.msra.mxu0 0
    %970 = vmatprep.subr.bf16.mxu0 0
    %971 = vmatpush1.bf16.msra.mxu0 0
    %972 = vmatprep.subr.bf16.mxu0 0
    %973 = vmatpush1.bf16.msra.mxu0 0
    %974 = vmatprep.mubr.bf16.mxu0 0
    %975 = vmatmul.mubr.bf16.gmra.mrb[0].mxu0 %v934
    %v976 = vpop.f32.mrb[0].mxu0
    %v977 = vadd.f32 0.0, %v976
    %v978 = vpop.f32.mrb[0].mxu0
    %v979 = vpop.f32.mrb[0].mxu0
    %v980 = vadd.f32 0.0, %v979
    %v981 = vpop.f32.mrb[0].mxu0
    %982 = vmatprep.mubr.bf16.mxu0 0
    %983 = vmatmul.mubr.bf16.gmra.mrb[0].mxu0 %v937
    %v984 = vpop.f32.mrb[0].mxu0
    %v985 = vadd.f32 0.0, %v984
    %v986 = vpop.f32.mrb[0].mxu0
    %v987 = vpop.f32.mrb[0].mxu0
    %v988 = vadd.f32 0.0, %v987
    %v989 = vpop.f32.mrb[0].mxu0
    %990 = vmatprep.mubr.bf16.mxu0 0
    %991 = vmatmul.mubr.bf16.gmra.mrb[0].mxu0 %v940
    %v992 = vpop.f32.mrb[0].mxu0
    %v993 = vadd.f32 0.0, %v992
    %v994 = vpop.f32.mrb[0].mxu0
    %v995 = vpop.f32.mrb[0].mxu0
    %v996 = vadd.f32 0.0, %v995
    %v997 = vpop.f32.mrb[0].mxu0
    %998 = vdwg.mxu0
    %1005 = vrot.lane.b32.xlu0 %v977, 16
    %v1006 = vpop.permute.xlu0 %1005
    %1007 = vrot.lane.b32.xlu0 %v980, 16
    %v1008 = vpop.permute.xlu0 %1007
    %1009 = vrot.lane.b32.xlu0 %v985, 16
    %v1010 = vpop.permute.xlu0 %1009
    %1011 = vrot.lane.b32.xlu0 %v988, 16
    %v1012 = vpop.permute.xlu0 %1011
    %1013 = vrot.lane.b32.xlu0 %v993, 16
    %v1014 = vpop.permute.xlu0 %1013
    %1015 = vrot.lane.b32.xlu0 %v996, 16
    %v1016 = vpop.permute.xlu0 %1015
    %vm1023 = vcmask 195712
    %1024 = vst.msk [vmem:[#allocation3] sm:$0xff] %vm1023, %v1006
    %1025 = vst.msk [vmem:[#allocation3 + $0x8] sm:$0xff] %vm1023, %v1008
    %1026 = vst.msk [vmem:[#allocation3 + $0x10] sm:$0xff] %vm1023, %v1010
    %1027 = vst.msk [vmem:[#allocation3 + $0x18] sm:$0xff] %vm1023, %v1012
    %1028 = vst.msk [vmem:[#allocation3 + $0x20] sm:$0xff] %vm1023, %v1014
    %1029 = vst.msk [vmem:[#allocation3 + $0x28] sm:$0xff] %vm1023, %v1016
    %1030 = vrot.lane.b32.xlu0 %v267, 56
    %v1031 = vpop.permute.xlu0 %1030
    %1032 = vrot.lane.b32.xlu0 %v268, 56
    %v1033 = vpop.permute.xlu0 %1032
    %1034 = vrot.lane.b32.xlu0 %v269, 56
    %v1035 = vpop.permute.xlu0 %1034
    %1036 = vrot.lane.b32.xlu0 %v267, 48
    %v1037 = vpop.permute.xlu0 %1036
    %1038 = vrot.lane.b32.xlu0 %v268, 48
    %v1039 = vpop.permute.xlu0 %1038
    %1040 = vrot.lane.b32.xlu0 %v269, 48
    %v1041 = vpop.permute.xlu0 %1040
    %v1043 = vsel %vm279, %v1031, 0
    %v1046 = vsel %vm279, %v1033, 0
    %v1049 = vsel %vm279, %v1035, 0
    %v1052 = vsel %vm279, %v1037, 0
    %v1055 = vsel %vm279, %v1039, 0
    %v1058 = vsel %vm279, %v1041, 0
    %1060 = vmatprep.subr.bf16.mxu0 0
    %1061 = vmatpush1.bf16.xpose.msra.mxu0 %v1052
    %1062 = vmatprep.subr.bf16.mxu0 0
    %1063 = vmatpush1.bf16.xpose.msra.mxu0 %v1055
    %1064 = vmatprep.subr.bf16.mxu0 0
    %1065 = vmatpush1.bf16.xpose.msra.mxu0 %v1058
    %1066 = vmatprep.subr.bf16.mxu0 0
    %1067 = vmatpush1.bf16.xpose.msra.mxu0 0
    %1068 = vmatprep.subr.bf16.mxu0 0
    %1069 = vmatpush1.bf16.xpose.msra.mxu0 0
    %1070 = vmatprep.subr.bf16.mxu0 0
    %1071 = vmatpush1.bf16.xpose.msra.mxu0 0
    %1072 = vmatprep.subr.bf16.mxu0 0
    %1073 = vmatpush1.bf16.xpose.msra.mxu0 0
    %1074 = vmatprep.subr.bf16.mxu0 0
    %1075 = vmatpush1.bf16.xpose.msra.mxu0 0
    %1076 = vmatprep.subr.bf16.mxu0 0
    %1077 = vmatpush1.bf16.xpose.msra.mxu0 0
    %1078 = vmatprep.subr.bf16.mxu0 0
    %1079 = vmatpush1.bf16.xpose.msra.mxu0 0
    %1080 = vmatprep.subr.bf16.mxu0 0
    %1081 = vmatpush1.bf16.xpose.msra.mxu0 0
    %1082 = vmatprep.subr.bf16.mxu0 0
    %1083 = vmatpush1.bf16.xpose.msra.mxu0 0
    %1084 = vmatprep.subr.bf16.mxu0 0
    %1085 = vmatpush1.bf16.xpose.msra.mxu0 0
    %1086 = vmatprep.subr.bf16.mxu0 0
    %1087 = vmatpush1.bf16.xpose.msra.mxu0 0
    %1088 = vmatprep.subr.bf16.mxu0 0
    %1089 = vmatpush1.bf16.xpose.msra.mxu0 0
    %1090 = vmatprep.subr.bf16.mxu0 0
    %1091 = vmatpush1.bf16.xpose.msra.mxu0 0
    %1092 = vmatprep.mubr.bf16.mxu0 0
    %1093 = vmatmul.mubr.bf16.gmra.mrb[0].mxu0 %v1043
    %v1094 = vpop.f32.mrb[0].mxu0
    %v1095 = vadd.f32 %v163, %v1094
    %v1096 = vpop.f32.mrb[0].mxu0
    %v1097 = vpop.f32.mrb[0].mxu0
    %v1098 = vadd.f32 %v164, %v1097
    %v1099 = vpop.f32.mrb[0].mxu0
    %1100 = vmatprep.mubr.bf16.mxu0 0
    %1101 = vmatmul.mubr.bf16.gmra.mrb[0].mxu0 %v1046
    %v1102 = vpop.f32.mrb[0].mxu0
    %v1103 = vadd.f32 %v165, %v1102
    %v1104 = vpop.f32.mrb[0].mxu0
    %v1105 = vpop.f32.mrb[0].mxu0
    %v1106 = vadd.f32 %v166, %v1105
    %v1107 = vpop.f32.mrb[0].mxu0
    %1108 = vmatprep.mubr.bf16.mxu0 0
    %1109 = vmatmul.mubr.bf16.gmra.mrb[0].mxu0 %v1049
    %v1110 = vpop.f32.mrb[0].mxu0
    %v1111 = vadd.f32 %v167, %v1110
    %v1112 = vpop.f32.mrb[0].mxu0
    %v1113 = vpop.f32.mrb[0].mxu0
    %v1114 = vadd.f32 %v168, %v1113
    %v1115 = vpop.f32.mrb[0].mxu0
    %1116 = vdwg.mxu0
    %v1117 = vsel %vm355, %v1095, -inf
    %1118 = vmax.xlane.f32.xlu0 %v1117
    %v1119 = vpop.xlane.xlu0 %1118
    %v1120 = vsel %vm355, %v1098, -inf
    %1121 = vmax.xlane.f32.xlu0 %v1120
    %v1122 = vpop.xlane.xlu0 %1121
    %v1123 = vsel %vm355, %v1103, -inf
    %1124 = vmax.xlane.f32.xlu0 %v1123
    %v1125 = vpop.xlane.xlu0 %1124
    %v1126 = vsel %vm355, %v1106, -inf
    %1127 = vmax.xlane.f32.xlu0 %v1126
    %v1128 = vpop.xlane.xlu0 %1127
    %v1129 = vsel %vm355, %v1111, -inf
    %1130 = vmax.xlane.f32.xlu0 %v1129
    %v1131 = vpop.xlane.xlu0 %1130
    %v1132 = vsel %vm355, %v1114, -inf
    %1133 = vmax.xlane.f32.xlu0 %v1132
    %v1134 = vpop.xlane.xlu0 %1133
    %v1135 = vsub.f32 %v1095, %v1119
    %v1136 = vsub.f32 %v1098, %v1122
    %v1137 = vsub.f32 %v1103, %v1125
    %v1138 = vsub.f32 %v1106, %v1128
    %v1139 = vsub.f32 %v1111, %v1131
    %v1140 = vsub.f32 %v1114, %v1134
    %v1141 = vmul.f32 %v1135, 1.442695
    %v1142 = vpow.pop %v1141
    %v1143 = vmul.f32 %v1136, 1.442695
    %v1144 = vpow.pop %v1143
    %v1145 = vmul.f32 %v1137, 1.442695
    %v1146 = vpow.pop %v1145
    %v1147 = vmul.f32 %v1138, 1.442695
    %v1148 = vpow.pop %v1147
    %v1149 = vmul.f32 %v1139, 1.442695
    %v1150 = vpow.pop %v1149
    %v1151 = vmul.f32 %v1140, 1.442695
    %v1152 = vpow.pop %v1151
    %v1153 = vsel %vm355, %v1142, 0.0
    %1154 = vadd.xlane.f32.xlu0 %v1153
    %v1155 = vpop.xlane.xlu0 %1154
    %v1156 = vsel %vm355, %v1144, 0.0
    %1157 = vadd.xlane.f32.xlu0 %v1156
    %v1158 = vpop.xlane.xlu0 %1157
    %v1159 = vsel %vm355, %v1146, 0.0
    %1160 = vadd.xlane.f32.xlu0 %v1159
    %v1161 = vpop.xlane.xlu0 %1160
    %v1162 = vsel %vm355, %v1148, 0.0
    %1163 = vadd.xlane.f32.xlu0 %v1162
    %v1164 = vpop.xlane.xlu0 %1163
    %v1165 = vsel %vm355, %v1150, 0.0
    %1166 = vadd.xlane.f32.xlu0 %v1165
    %v1167 = vpop.xlane.xlu0 %1166
    %v1168 = vsel %vm355, %v1152, 0.0
    %1169 = vadd.xlane.f32.xlu0 %v1168
    %v1170 = vpop.xlane.xlu0 %1169
    %v1171 = vrcp.pop %v1155
    %v1172 = vmul.f32 %v1142, %v1171
    %v1173 = vrcp.pop %v1158
    %v1174 = vmul.f32 %v1144, %v1173
    %v1175 = vrcp.pop %v1161
    %v1176 = vmul.f32 %v1146, %v1175
    %v1177 = vrcp.pop %v1164
    %v1178 = vmul.f32 %v1148, %v1177
    %v1179 = vrcp.pop %v1167
    %v1180 = vmul.f32 %v1150, %v1179
    %v1181 = vrcp.pop %v1170
    %v1182 = vmul.f32 %v1152, %v1181
    %v1183 = vpack.c.bf16 %v1174, %v1172
    %v1184 = vpack.c.bf16 %v1178, %v1176
    %v1185 = vpack.c.bf16 %v1182, %v1180
    %1186 = vrot.lane.b32.xlu0 %v267, 40
    %v1187 = vpop.permute.xlu0 %1186
    %1188 = vrot.lane.b32.xlu0 %v268, 40
    %v1189 = vpop.permute.xlu0 %1188
    %1190 = vrot.lane.b32.xlu0 %v269, 40
    %v1191 = vpop.permute.xlu0 %1190
    %v1196 = vsel %vm355, %v1183, 0
    %v1199 = vsel %vm355, %v1184, 0
    %v1202 = vsel %vm355, %v1185, 0
    %1204 = vmatprep.subr.bf16.mxu0 0
    %1205 = vmatpush1.bf16.msra.mxu0 %v1187
    %1206 = vmatprep.subr.bf16.mxu0 0
    %1207 = vmatpush1.bf16.msra.mxu0 %v1189
    %1208 = vmatprep.subr.bf16.mxu0 0
    %1209 = vmatpush1.bf16.msra.mxu0 %v1191
    %1210 = vmatprep.subr.bf16.mxu0 0
    %1211 = vmatpush1.bf16.msra.mxu0 0
    %1212 = vmatprep.subr.bf16.mxu0 0
    %1213 = vmatpush1.bf16.msra.mxu0 0
    %1214 = vmatprep.subr.bf16.mxu0 0
    %1215 = vmatpush1.bf16.msra.mxu0 0
    %1216 = vmatprep.subr.bf16.mxu0 0
    %1217 = vmatpush1.bf16.msra.mxu0 0
    %1218 = vmatprep.subr.bf16.mxu0 0
    %1219 = vmatpush1.bf16.msra.mxu0 0
    %1220 = vmatprep.subr.bf16.mxu0 0
    %1221 = vmatpush1.bf16.msra.mxu0 0
    %1222 = vmatprep.subr.bf16.mxu0 0
    %1223 = vmatpush1.bf16.msra.mxu0 0
    %1224 = vmatprep.subr.bf16.mxu0 0
    %1225 = vmatpush1.bf16.msra.mxu0 0
    %1226 = vmatprep.subr.bf16.mxu0 0
    %1227 = vmatpush1.bf16.msra.mxu0 0
    %1228 = vmatprep.subr.bf16.mxu0 0
    %1229 = vmatpush1.bf16.msra.mxu0 0
    %1230 = vmatprep.subr.bf16.mxu0 0
    %1231 = vmatpush1.bf16.msra.mxu0 0
    %1232 = vmatprep.subr.bf16.mxu0 0
    %1233 = vmatpush1.bf16.msra.mxu0 0
    %1234 = vmatprep.subr.bf16.mxu0 0
    %1235 = vmatpush1.bf16.msra.mxu0 0
    %1236 = vmatprep.mubr.bf16.mxu0 0
    %1237 = vmatmul.mubr.bf16.gmra.mrb[0].mxu0 %v1196
    %v1238 = vpop.f32.mrb[0].mxu0
    %v1239 = vadd.f32 0.0, %v1238
    %v1240 = vpop.f32.mrb[0].mxu0
    %v1241 = vpop.f32.mrb[0].mxu0
    %v1242 = vadd.f32 0.0, %v1241
    %v1243 = vpop.f32.mrb[0].mxu0
    %1244 = vmatprep.mubr.bf16.mxu0 0
    %1245 = vmatmul.mubr.bf16.gmra.mrb[0].mxu0 %v1199
    %v1246 = vpop.f32.mrb[0].mxu0
    %v1247 = vadd.f32 0.0, %v1246
    %v1248 = vpop.f32.mrb[0].mxu0
    %v1249 = vpop.f32.mrb[0].mxu0
    %v1250 = vadd.f32 0.0, %v1249
    %v1251 = vpop.f32.mrb[0].mxu0
    %1252 = vmatprep.mubr.bf16.mxu0 0
    %1253 = vmatmul.mubr.bf16.gmra.mrb[0].mxu0 %v1202
    %v1254 = vpop.f32.mrb[0].mxu0
    %v1255 = vadd.f32 0.0, %v1254
    %v1256 = vpop.f32.mrb[0].mxu0
    %v1257 = vpop.f32.mrb[0].mxu0
    %v1258 = vadd.f32 0.0, %v1257
    %v1259 = vpop.f32.mrb[0].mxu0
    %1260 = vdwg.mxu0
    %1267 = vrot.lane.b32.xlu0 %v1239, 24
    %v1268 = vpop.permute.xlu0 %1267
    %1269 = vrot.lane.b32.xlu0 %v1242, 24
    %v1270 = vpop.permute.xlu0 %1269
    %1271 = vrot.lane.b32.xlu0 %v1247, 24
    %v1272 = vpop.permute.xlu0 %1271
    %1273 = vrot.lane.b32.xlu0 %v1250, 24
    %v1274 = vpop.permute.xlu0 %1273
    %1275 = vrot.lane.b32.xlu0 %v1255, 24
    %v1276 = vpop.permute.xlu0 %1275
    %1277 = vrot.lane.b32.xlu0 %v1258, 24
    %v1278 = vpop.permute.xlu0 %1277
    %vm1285 = vcmask 261312
    %1286 = vst.msk [vmem:[#allocation3] sm:$0xff] %vm1285, %v1268
    %1287 = vst.msk [vmem:[#allocation3 + $0x8] sm:$0xff] %vm1285, %v1270
    %1288 = vst.msk [vmem:[#allocation3 + $0x10] sm:$0xff] %vm1285, %v1272
    %1289 = vst.msk [vmem:[#allocation3 + $0x18] sm:$0xff] %vm1285, %v1274
    %1290 = vst.msk [vmem:[#allocation3 + $0x20] sm:$0xff] %vm1285, %v1276
    %1291 = vst.msk [vmem:[#allocation3 + $0x28] sm:$0xff] %vm1285, %v1278
    %v1292 = vld [vmem:[#allocation3] sm:$0xff]
    %v1293 = vld [vmem:[#allocation3 + $0x8] sm:$0xff]
    %v1294 = vld [vmem:[#allocation3 + $0x10] sm:$0xff]
    %v1295 = vld [vmem:[#allocation3 + $0x18] sm:$0xff]
    %v1296 = vld [vmem:[#allocation3 + $0x20] sm:$0xff]
    %v1297 = vld [vmem:[#allocation3 + $0x28] sm:$0xff]
    %v1298 = vpack.c.bf16 %v1293, %v1292
    %v1299 = vpack.c.bf16 %v1295, %v1294
    %v1300 = vpack.c.bf16 %v1297, %v1296
    %v1301 = vld [vmem:[#allocation12] sm:$0xf]
    %v1302 = vld [vmem:[#allocation12 + $0x4] sm:$0xf]
    %v1303 = vld [vmem:[#allocation12 + $0x8] sm:$0xf]
    %v1304 = vld [vmem:[#allocation12 + $0xc] sm:$0xf]
    %v1305 = vld [vmem:[%s6] sm:$0x1]
    %v1307 = vlaneseq
    %v1308 = vshrl.u32 %v1307, 7
    %v1309 = vsub.s32 0, %v1308
    %v1310 = vrot.slane %v1305, %v1309
    %v1316 = vunpack.c.l.b16 %v1301
    %v1317 = vunpack.c.l.b16 %v1302
    %v1318 = vunpack.c.l.b16 %v1303
    %v1319 = vunpack.c.l.b16 %v1304
    %v1320 = vpack.c.b16 %v1317, %v1316
    %v1321 = vpack.c.b16 %v1319, %v1318
    %v1325 = vsel %vm91, %v1298, 0
    %v1328 = vsel %vm91, %v1299, 0
    %v1331 = vsel %vm91, %v1300, 0
    %1333 = vmatprep.subr.bf16.mxu0 0
    %1334 = vmatpush1.bf16.msra.mxu0 %v1320
    %1335 = vmatprep.subr.bf16.mxu0 0
    %1336 = vmatpush1.bf16.msra.mxu0 %v1321
    %1337 = vmatprep.subr.bf16.mxu0 0
    %1338 = vmatpush1.bf16.msra.mxu0 0
    %1339 = vmatprep.subr.bf16.mxu0 0
    %1340 = vmatpush1.bf16.msra.mxu0 0
    %1341 = vmatprep.subr.bf16.mxu0 0
    %1342 = vmatpush1.bf16.msra.mxu0 0
    %1343 = vmatprep.subr.bf16.mxu0 0
    %1344 = vmatpush1.bf16.msra.mxu0 0
    %1345 = vmatprep.subr.bf16.mxu0 0
    %1346 = vmatpush1.bf16.msra.mxu0 0
    %1347 = vmatprep.subr.bf16.mxu0 0
    %1348 = vmatpush1.bf16.msra.mxu0 0
    %1349 = vmatprep.subr.bf16.mxu0 0
    %1350 = vmatpush1.bf16.msra.mxu0 0
    %1351 = vmatprep.subr.bf16.mxu0 0
    %1352 = vmatpush1.bf16.msra.mxu0 0
    %1353 = vmatprep.subr.bf16.mxu0 0
    %1354 = vmatpush1.bf16.msra.mxu0 0
    %1355 = vmatprep.subr.bf16.mxu0 0
    %1356 = vmatpush1.bf16.msra.mxu0 0
    %1357 = vmatprep.subr.bf16.mxu0 0
    %1358 = vmatpush1.bf16.msra.mxu0 0
    %1359 = vmatprep.subr.bf16.mxu0 0
    %1360 = vmatpush1.bf16.msra.mxu0 0
    %1361 = vmatprep.subr.bf16.mxu0 0
    %1362 = vmatpush1.bf16.msra.mxu0 0
    %1363 = vmatprep.subr.bf16.mxu0 0
    %1364 = vmatpush1.bf16.msra.mxu0 0
    %1365 = vmatprep.mubr.bf16.mxu0 0
    %1366 = vmatmul.mubr.bf16.gmra.mrb[0].mxu0 %v1325
    %v1367 = vpop.f32.mrb[0].mxu0
    %v1368 = vadd.f32 %v1310, %v1367
    %v1369 = vpop.f32.mrb[0].mxu0
    %v1370 = vpop.f32.mrb[0].mxu0
    %v1371 = vadd.f32 %v1310, %v1370
    %v1372 = vpop.f32.mrb[0].mxu0
    %1373 = vmatprep.mubr.bf16.mxu0 0
    %1374 = vmatmul.mubr.bf16.gmra.mrb[0].mxu0 %v1328
    %v1375 = vpop.f32.mrb[0].mxu0
    %v1376 = vadd.f32 %v1310, %v1375
    %v1377 = vpop.f32.mrb[0].mxu0
    %v1378 = vpop.f32.mrb[0].mxu0
    %v1379 = vadd.f32 %v1310, %v1378
    %v1380 = vpop.f32.mrb[0].mxu0
    %1381 = vmatprep.mubr.bf16.mxu0 0
    %1382 = vmatmul.mubr.bf16.gmra.mrb[0].mxu0 %v1331
    %v1383 = vpop.f32.mrb[0].mxu0
    %v1384 = vadd.f32 %v1310, %v1383
    %v1385 = vpop.f32.mrb[0].mxu0
    %v1386 = vpop.f32.mrb[0].mxu0
    %v1387 = vadd.f32 %v1310, %v1386
    %v1388 = vpop.f32.mrb[0].mxu0
    %1389 = vdwg.mxu0
    %1390 = vst.msk [vmem:[#allocation2] sm:$0xff] %vm91, %v1368
    %1391 = vst.msk [vmem:[#allocation2 + $0x8] sm:$0xff] %vm91, %v1371
    %1392 = vst.msk [vmem:[#allocation2 + $0x10] sm:$0xff] %vm91, %v1376
    %1393 = vst.msk [vmem:[#allocation2 + $0x18] sm:$0xff] %vm91, %v1379
    %1394 = vst.msk [vmem:[#allocation2 + $0x20] sm:$0xff] %vm91, %v1384
    %1395 = vst.msk [vmem:[#allocation2 + $0x28] sm:$0xff] %vm91, %v1387
    %1396 = vst.msk [vmem:[#allocation2 + $0x10] sm:$0xff] %vm91, %v100
    %1397 = vst.msk [vmem:[#allocation2 + $0x28] sm:$0xff] %vm91, %v105
    %v1398 = vsub.s32 %v114, 16
    %v1399 = vsel %vm161, %v114, %v1398
    %vm1400 = vcmp.ge.s32.totalorder %v1399, %v155
    %vm1401 = vcmp.lt.s32.totalorder %v1399, %v117
    %vm1402 = vmand %vm1400, %vm1401
    %v1403 = vsel %vm1402, 1, 0
    %v1404 = vcvt.s32.f32 %v1403
    %vm1405 = vcmp.lt.s32.totalorder %v114, 24
    %v1406 = vsel %vm1405, %v1404, -1e+30
    %v1407 = vadd.f32 %v144, %v1406
    %v1408 = vadd.f32 %v145, %v1406
    %v1409 = vadd.f32 %v146, %v1406
    %v1410 = vadd.f32 %v147, %v1406
    %v1411 = vadd.f32 %v148, %v1406
    %v1412 = vadd.f32 %v149, %v1406
    %v1413 = vld [vmem:[#allocation2] sm:$0xff]
    %v1414 = vld [vmem:[#allocation2 + $0x8] sm:$0xff]
    %v1415 = vld [vmem:[#allocation2 + $0x10] sm:$0xff]
    %v1416 = vld [vmem:[#allocation2 + $0x18] sm:$0xff]
    %v1417 = vld [vmem:[#allocation2 + $0x20] sm:$0xff]
    %v1418 = vld [vmem:[#allocation2 + $0x28] sm:$0xff]
    %v1419 = vpack.c.bf16 %v1414, %v1413
    %v1420 = vpack.c.bf16 %v1416, %v1415
    %v1421 = vpack.c.bf16 %v1418, %v1417
    %s1422 = scalar_lea.vmem [#allocation11], 16
    %v1423 = vld [vmem:[%s1422] sm:$0xf]
    %v1424 = vld [vmem:[%s1422 + $0x4] sm:$0xf]
    %v1425 = vld [vmem:[%s1422 + $0x8] sm:$0xf]
    %v1426 = vld [vmem:[%s1422 + $0xc] sm:$0xf]
    %s1427 = scalar_lea.vmem %s4, 1
    %v1428 = vld [vmem:[%s1427] sm:$0x1]
    %v1430 = vlaneseq
    %v1431 = vshrl.u32 %v1430, 7
    %v1432 = vsub.s32 0, %v1431
    %v1433 = vrot.slane %v1428, %v1432
    %v1439 = vunpack.c.l.b16 %v1423
    %v1440 = vunpack.c.l.b16 %v1424
    %v1441 = vunpack.c.l.b16 %v1425
    %v1442 = vunpack.c.l.b16 %v1426
    %v1443 = vpack.c.b16 %v1440, %v1439
    %v1444 = vpack.c.b16 %v1442, %v1441
    %v1448 = vsel %vm91, %v1419, 0
    %v1451 = vsel %vm91, %v1420, 0
    %v1454 = vsel %vm91, %v1421, 0
    %1456 = vmatprep.subr.bf16.mxu0 0
    %1457 = vmatpush1.bf16.msra.mxu0 %v1443
    %1458 = vmatprep.subr.bf16.mxu0 0
    %1459 = vmatpush1.bf16.msra.mxu0 %v1444
    %1460 = vmatprep.subr.bf16.mxu0 0
    %1461 = vmatpush1.bf16.msra.mxu0 0
    %1462 = vmatprep.subr.bf16.mxu0 0
    %1463 = vmatpush1.bf16.msra.mxu0 0
    %1464 = vmatprep.subr.bf16.mxu0 0
    %1465 = vmatpush1.bf16.msra.mxu0 0
    %1466 = vmatprep.subr.bf16.mxu0 0
    %1467 = vmatpush1.bf16.msra.mxu0 0
    %1468 = vmatprep.subr.bf16.mxu0 0
    %1469 = vmatpush1.bf16.msra.mxu0 0
    %1470 = vmatprep.subr.bf16.mxu0 0
    %1471 = vmatpush1.bf16.msra.mxu0 0
    %1472 = vmatprep.subr.bf16.mxu0 0
    %1473 = vmatpush1.bf16.msra.mxu0 0
    %1474 = vmatprep.subr.bf16.mxu0 0
    %1475 = vmatpush1.bf16.msra.mxu0 0
    %1476 = vmatprep.subr.bf16.mxu0 0
    %1477 = vmatpush1.bf16.msra.mxu0 0
    %1478 = vmatprep.subr.bf16.mxu0 0
    %1479 = vmatpush1.bf16.msra.mxu0 0
    %1480 = vmatprep.subr.bf16.mxu0 0
    %1481 = vmatpush1.bf16.msra.mxu0 0
    %1482 = vmatprep.subr.bf16.mxu0 0
    %1483 = vmatpush1.bf16.msra.mxu0 0
    %1484 = vmatprep.subr.bf16.mxu0 0
    %1485 = vmatpush1.bf16.msra.mxu0 0
    %1486 = vmatprep.subr.bf16.mxu0 0
    %1487 = vmatpush1.bf16.msra.mxu0 0
    %1488 = vmatprep.mubr.bf16.mxu0 0
    %1489 = vmatmul.mubr.bf16.gmra.mrb[0].mxu0 %v1448
    %v1490 = vpop.f32.mrb[0].mxu0
    %v1491 = vadd.f32 %v1433, %v1490
    %v1492 = vpop.f32.mrb[0].mxu0
    %v1493 = vpop.f32.mrb[0].mxu0
    %v1494 = vadd.f32 %v1433, %v1493
    %v1495 = vpop.f32.mrb[0].mxu0
    %1496 = vmatprep.mubr.bf16.mxu0 0
    %1497 = vmatmul.mubr.bf16.gmra.mrb[0].mxu0 %v1451
    %v1498 = vpop.f32.mrb[0].mxu0
    %v1499 = vadd.f32 %v1433, %v1498
    %v1500 = vpop.f32.mrb[0].mxu0
    %v1501 = vpop.f32.mrb[0].mxu0
    %v1502 = vadd.f32 %v1433, %v1501
    %v1503 = vpop.f32.mrb[0].mxu0
    %1504 = vmatprep.mubr.bf16.mxu0 0
    %1505 = vmatmul.mubr.bf16.gmra.mrb[0].mxu0 %v1454
    %v1506 = vpop.f32.mrb[0].mxu0
    %v1507 = vadd.f32 %v1433, %v1506
    %v1508 = vpop.f32.mrb[0].mxu0
    %v1509 = vpop.f32.mrb[0].mxu0
    %v1510 = vadd.f32 %v1433, %v1509
    %v1511 = vpop.f32.mrb[0].mxu0
    %1512 = vdwg.mxu0
    %v1513 = vpack.c.bf16 %v1494, %v1491
    %v1514 = vpack.c.bf16 %v1502, %v1499
    %v1515 = vpack.c.bf16 %v1510, %v1507
    %1519 = vrot.lane.b32.xlu0 %v1513, 120
    %v1520 = vpop.permute.xlu0 %1519
    %1521 = vrot.lane.b32.xlu0 %v1514, 120
    %v1522 = vpop.permute.xlu0 %1521
    %1523 = vrot.lane.b32.xlu0 %v1515, 120
    %v1524 = vpop.permute.xlu0 %1523
    %v1526 = vsel %vm279, %v1513, 0
    %v1529 = vsel %vm279, %v1514, 0
    %v1532 = vsel %vm279, %v1515, 0
    %v1535 = vsel %vm279, %v1520, 0
    %v1538 = vsel %vm279, %v1522, 0
    %v1541 = vsel %vm279, %v1524, 0
    %1543 = vmatprep.subr.bf16.mxu0 0
    %1544 = vmatpush1.bf16.xpose.msra.mxu0 %v1535
    %1545 = vmatprep.subr.bf16.mxu0 0
    %1546 = vmatpush1.bf16.xpose.msra.mxu0 %v1538
    %1547 = vmatprep.subr.bf16.mxu0 0
    %1548 = vmatpush1.bf16.xpose.msra.mxu0 %v1541
    %1549 = vmatprep.subr.bf16.mxu0 0
    %1550 = vmatpush1.bf16.xpose.msra.mxu0 0
    %1551 = vmatprep.subr.bf16.mxu0 0
    %1552 = vmatpush1.bf16.xpose.msra.mxu0 0
    %1553 = vmatprep.subr.bf16.mxu0 0
    %1554 = vmatpush1.bf16.xpose.msra.mxu0 0
    %1555 = vmatprep.subr.bf16.mxu0 0
    %1556 = vmatpush1.bf16.xpose.msra.mxu0 0
    %1557 = vmatprep.subr.bf16.mxu0 0
    %1558 = vmatpush1.bf16.xpose.msra.mxu0 0
    %1559 = vmatprep.subr.bf16.mxu0 0
    %1560 = vmatpush1.bf16.xpose.msra.mxu0 0
    %1561 = vmatprep.subr.bf16.mxu0 0
    %1562 = vmatpush1.bf16.xpose.msra.mxu0 0
    %1563 = vmatprep.subr.bf16.mxu0 0
    %1564 = vmatpush1.bf16.xpose.msra.mxu0 0
    %1565 = vmatprep.subr.bf16.mxu0 0
    %1566 = vmatpush1.bf16.xpose.msra.mxu0 0
    %1567 = vmatprep.subr.bf16.mxu0 0
    %1568 = vmatpush1.bf16.xpose.msra.mxu0 0
    %1569 = vmatprep.subr.bf16.mxu0 0
    %1570 = vmatpush1.bf16.xpose.msra.mxu0 0
    %1571 = vmatprep.subr.bf16.mxu0 0
    %1572 = vmatpush1.bf16.xpose.msra.mxu0 0
    %1573 = vmatprep.subr.bf16.mxu0 0
    %1574 = vmatpush1.bf16.xpose.msra.mxu0 0
    %1575 = vmatprep.mubr.bf16.mxu0 0
    %1576 = vmatmul.mubr.bf16.gmra.mrb[0].mxu0 %v1526
    %v1577 = vpop.f32.mrb[0].mxu0
    %v1578 = vadd.f32 %v1407, %v1577
    %v1579 = vpop.f32.mrb[0].mxu0
    %v1580 = vpop.f32.mrb[0].mxu0
    %v1581 = vadd.f32 %v1408, %v1580
    %v1582 = vpop.f32.mrb[0].mxu0
    %1583 = vmatprep.mubr.bf16.mxu0 0
    %1584 = vmatmul.mubr.bf16.gmra.mrb[0].mxu0 %v1529
    %v1585 = vpop.f32.mrb[0].mxu0
    %v1586 = vadd.f32 %v1409, %v1585
    %v1587 = vpop.f32.mrb[0].mxu0
    %v1588 = vpop.f32.mrb[0].mxu0
    %v1589 = vadd.f32 %v1410, %v1588
    %v1590 = vpop.f32.mrb[0].mxu0
    %1591 = vmatprep.mubr.bf16.mxu0 0
    %1592 = vmatmul.mubr.bf16.gmra.mrb[0].mxu0 %v1532
    %v1593 = vpop.f32.mrb[0].mxu0
    %v1594 = vadd.f32 %v1411, %v1593
    %v1595 = vpop.f32.mrb[0].mxu0
    %v1596 = vpop.f32.mrb[0].mxu0
    %v1597 = vadd.f32 %v1412, %v1596
    %v1598 = vpop.f32.mrb[0].mxu0
    %1599 = vdwg.mxu0
    %v1600 = vsel %vm355, %v1578, -inf
    %1601 = vmax.xlane.f32.xlu0 %v1600
    %v1602 = vpop.xlane.xlu0 %1601
    %v1603 = vsel %vm355, %v1581, -inf
    %1604 = vmax.xlane.f32.xlu0 %v1603
    %v1605 = vpop.xlane.xlu0 %1604
    %v1606 = vsel %vm355, %v1586, -inf
    %1607 = vmax.xlane.f32.xlu0 %v1606
    %v1608 = vpop.xlane.xlu0 %1607
    %v1609 = vsel %vm355, %v1589, -inf
    %1610 = vmax.xlane.f32.xlu0 %v1609
    %v1611 = vpop.xlane.xlu0 %1610
    %v1612 = vsel %vm355, %v1594, -inf
    %1613 = vmax.xlane.f32.xlu0 %v1612
    %v1614 = vpop.xlane.xlu0 %1613
    %v1615 = vsel %vm355, %v1597, -inf
    %1616 = vmax.xlane.f32.xlu0 %v1615
    %v1617 = vpop.xlane.xlu0 %1616
    %v1618 = vsub.f32 %v1578, %v1602
    %v1619 = vsub.f32 %v1581, %v1605
    %v1620 = vsub.f32 %v1586, %v1608
    %v1621 = vsub.f32 %v1589, %v1611
    %v1622 = vsub.f32 %v1594, %v1614
    %v1623 = vsub.f32 %v1597, %v1617
    %v1624 = vmul.f32 %v1618, 1.442695
    %v1625 = vpow.pop %v1624
    %v1626 = vmul.f32 %v1619, 1.442695
    %v1627 = vpow.pop %v1626
    %v1628 = vmul.f32 %v1620, 1.442695
    %v1629 = vpow.pop %v1628
    %v1630 = vmul.f32 %v1621, 1.442695
    %v1631 = vpow.pop %v1630
    %v1632 = vmul.f32 %v1622, 1.442695
    %v1633 = vpow.pop %v1632
    %v1634 = vmul.f32 %v1623, 1.442695
    %v1635 = vpow.pop %v1634
    %v1636 = vsel %vm355, %v1625, 0.0
    %1637 = vadd.xlane.f32.xlu0 %v1636
    %v1638 = vpop.xlane.xlu0 %1637
    %v1639 = vsel %vm355, %v1627, 0.0
    %1640 = vadd.xlane.f32.xlu0 %v1639
    %v1641 = vpop.xlane.xlu0 %1640
    %v1642 = vsel %vm355, %v1629, 0.0
    %1643 = vadd.xlane.f32.xlu0 %v1642
    %v1644 = vpop.xlane.xlu0 %1643
    %v1645 = vsel %vm355, %v1631, 0.0
    %1646 = vadd.xlane.f32.xlu0 %v1645
    %v1647 = vpop.xlane.xlu0 %1646
    %v1648 = vsel %vm355, %v1633, 0.0
    %1649 = vadd.xlane.f32.xlu0 %v1648
    %v1650 = vpop.xlane.xlu0 %1649
    %v1651 = vsel %vm355, %v1635, 0.0
    %1652 = vadd.xlane.f32.xlu0 %v1651
    %v1653 = vpop.xlane.xlu0 %1652
    %v1654 = vrcp.pop %v1638
    %v1655 = vmul.f32 %v1625, %v1654
    %v1656 = vrcp.pop %v1641
    %v1657 = vmul.f32 %v1627, %v1656
    %v1658 = vrcp.pop %v1644
    %v1659 = vmul.f32 %v1629, %v1658
    %v1660 = vrcp.pop %v1647
    %v1661 = vmul.f32 %v1631, %v1660
    %v1662 = vrcp.pop %v1650
    %v1663 = vmul.f32 %v1633, %v1662
    %v1664 = vrcp.pop %v1653
    %v1665 = vmul.f32 %v1635, %v1664
    %v1666 = vpack.c.bf16 %v1657, %v1655
    %v1667 = vpack.c.bf16 %v1661, %v1659
    %v1668 = vpack.c.bf16 %v1665, %v1663
    %1669 = vrot.lane.b32.xlu0 %v1513, 112
    %v1670 = vpop.permute.xlu0 %1669
    %1671 = vrot.lane.b32.xlu0 %v1514, 112
    %v1672 = vpop.permute.xlu0 %1671
    %1673 = vrot.lane.b32.xlu0 %v1515, 112
    %v1674 = vpop.permute.xlu0 %1673
    %v1679 = vsel %vm355, %v1666, 0
    %v1682 = vsel %vm355, %v1667, 0
    %v1685 = vsel %vm355, %v1668, 0
    %1687 = vmatprep.subr.bf16.mxu0 0
    %1688 = vmatpush1.bf16.msra.mxu0 %v1670
    %1689 = vmatprep.subr.bf16.mxu0 0
    %1690 = vmatpush1.bf16.msra.mxu0 %v1672
    %1691 = vmatprep.subr.bf16.mxu0 0
    %1692 = vmatpush1.bf16.msra.mxu0 %v1674
    %1693 = vmatprep.subr.bf16.mxu0 0
    %1694 = vmatpush1.bf16.msra.mxu0 0
    %1695 = vmatprep.subr.bf16.mxu0 0
    %1696 = vmatpush1.bf16.msra.mxu0 0
    %1697 = vmatprep.subr.bf16.mxu0 0
    %1698 = vmatpush1.bf16.msra.mxu0 0
    %1699 = vmatprep.subr.bf16.mxu0 0
    %1700 = vmatpush1.bf16.msra.mxu0 0
    %1701 = vmatprep.subr.bf16.mxu0 0
    %1702 = vmatpush1.bf16.msra.mxu0 0
    %1703 = vmatprep.subr.bf16.mxu0 0
    %1704 = vmatpush1.bf16.msra.mxu0 0
    %1705 = vmatprep.subr.bf16.mxu0 0
    %1706 = vmatpush1.bf16.msra.mxu0 0
    %1707 = vmatprep.subr.bf16.mxu0 0
    %1708 = vmatpush1.bf16.msra.mxu0 0
    %1709 = vmatprep.subr.bf16.mxu0 0
    %1710 = vmatpush1.bf16.msra.mxu0 0
    %1711 = vmatprep.subr.bf16.mxu0 0
    %1712 = vmatpush1.bf16.msra.mxu0 0
    %1713 = vmatprep.subr.bf16.mxu0 0
    %1714 = vmatpush1.bf16.msra.mxu0 0
    %1715 = vmatprep.subr.bf16.mxu0 0
    %1716 = vmatpush1.bf16.msra.mxu0 0
    %1717 = vmatprep.subr.bf16.mxu0 0
    %1718 = vmatpush1.bf16.msra.mxu0 0
    %1719 = vmatprep.mubr.bf16.mxu0 0
    %1720 = vmatmul.mubr.bf16.gmra.mrb[0].mxu0 %v1679
    %v1721 = vpop.f32.mrb[0].mxu0
    %v1722 = vadd.f32 0.0, %v1721
    %v1723 = vpop.f32.mrb[0].mxu0
    %v1724 = vpop.f32.mrb[0].mxu0
    %v1725 = vadd.f32 0.0, %v1724
    %v1726 = vpop.f32.mrb[0].mxu0
    %1727 = vmatprep.mubr.bf16.mxu0 0
    %1728 = vmatmul.mubr.bf16.gmra.mrb[0].mxu0 %v1682
    %v1729 = vpop.f32.mrb[0].mxu0
    %v1730 = vadd.f32 0.0, %v1729
    %v1731 = vpop.f32.mrb[0].mxu0
    %v1732 = vpop.f32.mrb[0].mxu0
    %v1733 = vadd.f32 0.0, %v1732
    %v1734 = vpop.f32.mrb[0].mxu0
    %1735 = vmatprep.mubr.bf16.mxu0 0
    %1736 = vmatmul.mubr.bf16.gmra.mrb[0].mxu0 %v1685
    %v1737 = vpop.f32.mrb[0].mxu0
    %v1738 = vadd.f32 0.0, %v1737
    %v1739 = vpop.f32.mrb[0].mxu0
    %v1740 = vpop.f32.mrb[0].mxu0
    %v1741 = vadd.f32 0.0, %v1740
    %v1742 = vpop.f32.mrb[0].mxu0
    %1743 = vdwg.mxu0
    %1744 = vst.msk [vmem:[#allocation3] sm:$0xff] %vm279, %v1722
    %1745 = vst.msk [vmem:[#allocation3 + $0x8] sm:$0xff] %vm279, %v1725
    %1746 = vst.msk [vmem:[#allocation3 + $0x10] sm:$0xff] %vm279, %v1730
    %1747 = vst.msk [vmem:[#allocation3 + $0x18] sm:$0xff] %vm279, %v1733
    %1748 = vst.msk [vmem:[#allocation3 + $0x20] sm:$0xff] %vm279, %v1738
    %1749 = vst.msk [vmem:[#allocation3 + $0x28] sm:$0xff] %vm279, %v1741
    %1750 = vrot.lane.b32.xlu0 %v1513, 104
    %v1751 = vpop.permute.xlu0 %1750
    %1752 = vrot.lane.b32.xlu0 %v1514, 104
    %v1753 = vpop.permute.xlu0 %1752
    %1754 = vrot.lane.b32.xlu0 %v1515, 104
    %v1755 = vpop.permute.xlu0 %1754
    %1756 = vrot.lane.b32.xlu0 %v1513, 96
    %v1757 = vpop.permute.xlu0 %1756
    %1758 = vrot.lane.b32.xlu0 %v1514, 96
    %v1759 = vpop.permute.xlu0 %1758
    %1760 = vrot.lane.b32.xlu0 %v1515, 96
    %v1761 = vpop.permute.xlu0 %1760
    %v1763 = vsel %vm279, %v1751, 0
    %v1766 = vsel %vm279, %v1753, 0
    %v1769 = vsel %vm279, %v1755, 0
    %v1772 = vsel %vm279, %v1757, 0
    %v1775 = vsel %vm279, %v1759, 0
    %v1778 = vsel %vm279, %v1761, 0
    %1780 = vmatprep.subr.bf16.mxu0 0
    %1781 = vmatpush1.bf16.xpose.msra.mxu0 %v1772
    %1782 = vmatprep.subr.bf16.mxu0 0
    %1783 = vmatpush1.bf16.xpose.msra.mxu0 %v1775
    %1784 = vmatprep.subr.bf16.mxu0 0
    %1785 = vmatpush1.bf16.xpose.msra.mxu0 %v1778
    %1786 = vmatprep.subr.bf16.mxu0 0
    %1787 = vmatpush1.bf16.xpose.msra.mxu0 0
    %1788 = vmatprep.subr.bf16.mxu0 0
    %1789 = vmatpush1.bf16.xpose.msra.mxu0 0
    %1790 = vmatprep.subr.bf16.mxu0 0
    %1791 = vmatpush1.bf16.xpose.msra.mxu0 0
    %1792 = vmatprep.subr.bf16.mxu0 0
    %1793 = vmatpush1.bf16.xpose.msra.mxu0 0
    %1794 = vmatprep.subr.bf16.mxu0 0
    %1795 = vmatpush1.bf16.xpose.msra.mxu0 0
    %1796 = vmatprep.subr.bf16.mxu0 0
    %1797 = vmatpush1.bf16.xpose.msra.mxu0 0
    %1798 = vmatprep.subr.bf16.mxu0 0
    %1799 = vmatpush1.bf16.xpose.msra.mxu0 0
    %1800 = vmatprep.subr.bf16.mxu0 0
    %1801 = vmatpush1.bf16.xpose.msra.mxu0 0
    %1802 = vmatprep.subr.bf16.mxu0 0
    %1803 = vmatpush1.bf16.xpose.msra.mxu0 0
    %1804 = vmatprep.subr.bf16.mxu0 0
    %1805 = vmatpush1.bf16.xpose.msra.mxu0 0
    %1806 = vmatprep.subr.bf16.mxu0 0
    %1807 = vmatpush1.bf16.xpose.msra.mxu0 0
    %1808 = vmatprep.subr.bf16.mxu0 0
    %1809 = vmatpush1.bf16.xpose.msra.mxu0 0
    %1810 = vmatprep.subr.bf16.mxu0 0
    %1811 = vmatpush1.bf16.xpose.msra.mxu0 0
    %1812 = vmatprep.mubr.bf16.mxu0 0
    %1813 = vmatmul.mubr.bf16.gmra.mrb[0].mxu0 %v1763
    %v1814 = vpop.f32.mrb[0].mxu0
    %v1815 = vadd.f32 %v1407, %v1814
    %v1816 = vpop.f32.mrb[0].mxu0
    %v1817 = vpop.f32.mrb[0].mxu0
    %v1818 = vadd.f32 %v1408, %v1817
    %v1819 = vpop.f32.mrb[0].mxu0
    %1820 = vmatprep.mubr.bf16.mxu0 0
    %1821 = vmatmul.mubr.bf16.gmra.mrb[0].mxu0 %v1766
    %v1822 = vpop.f32.mrb[0].mxu0
    %v1823 = vadd.f32 %v1409, %v1822
    %v1824 = vpop.f32.mrb[0].mxu0
    %v1825 = vpop.f32.mrb[0].mxu0
    %v1826 = vadd.f32 %v1410, %v1825
    %v1827 = vpop.f32.mrb[0].mxu0
    %1828 = vmatprep.mubr.bf16.mxu0 0
    %1829 = vmatmul.mubr.bf16.gmra.mrb[0].mxu0 %v1769
    %v1830 = vpop.f32.mrb[0].mxu0
    %v1831 = vadd.f32 %v1411, %v1830
    %v1832 = vpop.f32.mrb[0].mxu0
    %v1833 = vpop.f32.mrb[0].mxu0
    %v1834 = vadd.f32 %v1412, %v1833
    %v1835 = vpop.f32.mrb[0].mxu0
    %1836 = vdwg.mxu0
    %v1837 = vsel %vm355, %v1815, -inf
    %1838 = vmax.xlane.f32.xlu0 %v1837
    %v1839 = vpop.xlane.xlu0 %1838
    %v1840 = vsel %vm355, %v1818, -inf
    %1841 = vmax.xlane.f32.xlu0 %v1840
    %v1842 = vpop.xlane.xlu0 %1841
    %v1843 = vsel %vm355, %v1823, -inf
    %1844 = vmax.xlane.f32.xlu0 %v1843
    %v1845 = vpop.xlane.xlu0 %1844
    %v1846 = vsel %vm355, %v1826, -inf
    %1847 = vmax.xlane.f32.xlu0 %v1846
    %v1848 = vpop.xlane.xlu0 %1847
    %v1849 = vsel %vm355, %v1831, -inf
    %1850 = vmax.xlane.f32.xlu0 %v1849
    %v1851 = vpop.xlane.xlu0 %1850
    %v1852 = vsel %vm355, %v1834, -inf
    %1853 = vmax.xlane.f32.xlu0 %v1852
    %v1854 = vpop.xlane.xlu0 %1853
    %v1855 = vsub.f32 %v1815, %v1839
    %v1856 = vsub.f32 %v1818, %v1842
    %v1857 = vsub.f32 %v1823, %v1845
    %v1858 = vsub.f32 %v1826, %v1848
    %v1859 = vsub.f32 %v1831, %v1851
    %v1860 = vsub.f32 %v1834, %v1854
    %v1861 = vmul.f32 %v1855, 1.442695
    %v1862 = vpow.pop %v1861
    %v1863 = vmul.f32 %v1856, 1.442695
    %v1864 = vpow.pop %v1863
    %v1865 = vmul.f32 %v1857, 1.442695
    %v1866 = vpow.pop %v1865
    %v1867 = vmul.f32 %v1858, 1.442695
    %v1868 = vpow.pop %v1867
    %v1869 = vmul.f32 %v1859, 1.442695
    %v1870 = vpow.pop %v1869
    %v1871 = vmul.f32 %v1860, 1.442695
    %v1872 = vpow.pop %v1871
    %v1873 = vsel %vm355, %v1862, 0.0
    %1874 = vadd.xlane.f32.xlu0 %v1873
    %v1875 = vpop.xlane.xlu0 %1874
    %v1876 = vsel %vm355, %v1864, 0.0
    %1877 = vadd.xlane.f32.xlu0 %v1876
    %v1878 = vpop.xlane.xlu0 %1877
    %v1879 = vsel %vm355, %v1866, 0.0
    %1880 = vadd.xlane.f32.xlu0 %v1879
    %v1881 = vpop.xlane.xlu0 %1880
    %v1882 = vsel %vm355, %v1868, 0.0
    %1883 = vadd.xlane.f32.xlu0 %v1882
    %v1884 = vpop.xlane.xlu0 %1883
    %v1885 = vsel %vm355, %v1870, 0.0
    %1886 = vadd.xlane.f32.xlu0 %v1885
    %v1887 = vpop.xlane.xlu0 %1886
    %v1888 = vsel %vm355, %v1872, 0.0
    %1889 = vadd.xlane.f32.xlu0 %v1888
    %v1890 = vpop.xlane.xlu0 %1889
    %v1891 = vrcp.pop %v1875
    %v1892 = vmul.f32 %v1862, %v1891
    %v1893 = vrcp.pop %v1878
    %v1894 = vmul.f32 %v1864, %v1893
    %v1895 = vrcp.pop %v1881
    %v1896 = vmul.f32 %v1866, %v1895
    %v1897 = vrcp.pop %v1884
    %v1898 = vmul.f32 %v1868, %v1897
    %v1899 = vrcp.pop %v1887
    %v1900 = vmul.f32 %v1870, %v1899
    %v1901 = vrcp.pop %v1890
    %v1902 = vmul.f32 %v1872, %v1901
    %v1903 = vpack.c.bf16 %v1894, %v1892
    %v1904 = vpack.c.bf16 %v1898, %v1896
    %v1905 = vpack.c.bf16 %v1902, %v1900
    %1906 = vrot.lane.b32.xlu0 %v1513, 88
    %v1907 = vpop.permute.xlu0 %1906
    %1908 = vrot.lane.b32.xlu0 %v1514, 88
    %v1909 = vpop.permute.xlu0 %1908
    %1910 = vrot.lane.b32.xlu0 %v1515, 88
    %v1911 = vpop.permute.xlu0 %1910
    %v1916 = vsel %vm355, %v1903, 0
    %v1919 = vsel %vm355, %v1904, 0
    %v1922 = vsel %vm355, %v1905, 0
    %1924 = vmatprep.subr.bf16.mxu0 0
    %1925 = vmatpush1.bf16.msra.mxu0 %v1907
    %1926 = vmatprep.subr.bf16.mxu0 0
    %1927 = vmatpush1.bf16.msra.mxu0 %v1909
    %1928 = vmatprep.subr.bf16.mxu0 0
    %1929 = vmatpush1.bf16.msra.mxu0 %v1911
    %1930 = vmatprep.subr.bf16.mxu0 0
    %1931 = vmatpush1.bf16.msra.mxu0 0
    %1932 = vmatprep.subr.bf16.mxu0 0
    %1933 = vmatpush1.bf16.msra.mxu0 0
    %1934 = vmatprep.subr.bf16.mxu0 0
    %1935 = vmatpush1.bf16.msra.mxu0 0
    %1936 = vmatprep.subr.bf16.mxu0 0
    %1937 = vmatpush1.bf16.msra.mxu0 0
    %1938 = vmatprep.subr.bf16.mxu0 0
    %1939 = vmatpush1.bf16.msra.mxu0 0
    %1940 = vmatprep.subr.bf16.mxu0 0
    %1941 = vmatpush1.bf16.msra.mxu0 0
    %1942 = vmatprep.subr.bf16.mxu0 0
    %1943 = vmatpush1.bf16.msra.mxu0 0
    %1944 = vmatprep.subr.bf16.mxu0 0
    %1945 = vmatpush1.bf16.msra.mxu0 0
    %1946 = vmatprep.subr.bf16.mxu0 0
    %1947 = vmatpush1.bf16.msra.mxu0 0
    %1948 = vmatprep.subr.bf16.mxu0 0
    %1949 = vmatpush1.bf16.msra.mxu0 0
    %1950 = vmatprep.subr.bf16.mxu0 0
    %1951 = vmatpush1.bf16.msra.mxu0 0
    %1952 = vmatprep.subr.bf16.mxu0 0
    %1953 = vmatpush1.bf16.msra.mxu0 0
    %1954 = vmatprep.subr.bf16.mxu0 0
    %1955 = vmatpush1.bf16.msra.mxu0 0
    %1956 = vmatprep.mubr.bf16.mxu0 0
    %1957 = vmatmul.mubr.bf16.gmra.mrb[0].mxu0 %v1916
    %v1958 = vpop.f32.mrb[0].mxu0
    %v1959 = vadd.f32 0.0, %v1958
    %v1960 = vpop.f32.mrb[0].mxu0
    %v1961 = vpop.f32.mrb[0].mxu0
    %v1962 = vadd.f32 0.0, %v1961
    %v1963 = vpop.f32.mrb[0].mxu0
    %1964 = vmatprep.mubr.bf16.mxu0 0
    %1965 = vmatmul.mubr.bf16.gmra.mrb[0].mxu0 %v1919
    %v1966 = vpop.f32.mrb[0].mxu0
    %v1967 = vadd.f32 0.0, %v1966
    %v1968 = vpop.f32.mrb[0].mxu0
    %v1969 = vpop.f32.mrb[0].mxu0
    %v1970 = vadd.f32 0.0, %v1969
    %v1971 = vpop.f32.mrb[0].mxu0
    %1972 = vmatprep.mubr.bf16.mxu0 0
    %1973 = vmatmul.mubr.bf16.gmra.mrb[0].mxu0 %v1922
    %v1974 = vpop.f32.mrb[0].mxu0
    %v1975 = vadd.f32 0.0, %v1974
    %v1976 = vpop.f32.mrb[0].mxu0
    %v1977 = vpop.f32.mrb[0].mxu0
    %v1978 = vadd.f32 0.0, %v1977
    %v1979 = vpop.f32.mrb[0].mxu0
    %1980 = vdwg.mxu0
    %1987 = vrot.lane.b32.xlu0 %v1959, 8
    %v1988 = vpop.permute.xlu0 %1987
    %1989 = vrot.lane.b32.xlu0 %v1962, 8
    %v1990 = vpop.permute.xlu0 %1989
    %1991 = vrot.lane.b32.xlu0 %v1967, 8
    %v1992 = vpop.permute.xlu0 %1991
    %1993 = vrot.lane.b32.xlu0 %v1970, 8
    %v1994 = vpop.permute.xlu0 %1993
    %1995 = vrot.lane.b32.xlu0 %v1975, 8
    %v1996 = vpop.permute.xlu0 %1995
    %1997 = vrot.lane.b32.xlu0 %v1978, 8
    %v1998 = vpop.permute.xlu0 %1997
    %2005 = vst.msk [vmem:[#allocation3] sm:$0xff] %vm761, %v1988
    %2006 = vst.msk [vmem:[#allocation3 + $0x8] sm:$0xff] %vm761, %v1990
    %2007 = vst.msk [vmem:[#allocation3 + $0x10] sm:$0xff] %vm761, %v1992
    %2008 = vst.msk [vmem:[#allocation3 + $0x18] sm:$0xff] %vm761, %v1994
    %2009 = vst.msk [vmem:[#allocation3 + $0x20] sm:$0xff] %vm761, %v1996
    %2010 = vst.msk [vmem:[#allocation3 + $0x28] sm:$0xff] %vm761, %v1998
    %2011 = vrot.lane.b32.xlu0 %v1513, 80
    %v2012 = vpop.permute.xlu0 %2011
    %2013 = vrot.lane.b32.xlu0 %v1514, 80
    %v2014 = vpop.permute.xlu0 %2013
    %2015 = vrot.lane.b32.xlu0 %v1515, 80
    %v2016 = vpop.permute.xlu0 %2015
    %2017 = vrot.lane.b32.xlu0 %v1513, 72
    %v2018 = vpop.permute.xlu0 %2017
    %2019 = vrot.lane.b32.xlu0 %v1514, 72
    %v2020 = vpop.permute.xlu0 %2019
    %2021 = vrot.lane.b32.xlu0 %v1515, 72
    %v2022 = vpop.permute.xlu0 %2021
    %v2024 = vsel %vm279, %v2012, 0
    %v2027 = vsel %vm279, %v2014, 0
    %v2030 = vsel %vm279, %v2016, 0
    %v2033 = vsel %vm279, %v2018, 0
    %v2036 = vsel %vm279, %v2020, 0
    %v2039 = vsel %vm279, %v2022, 0
    %2041 = vmatprep.subr.bf16.mxu0 0
    %2042 = vmatpush1.bf16.xpose.msra.mxu0 %v2033
    %2043 = vmatprep.subr.bf16.mxu0 0
    %2044 = vmatpush1.bf16.xpose.msra.mxu0 %v2036
    %2045 = vmatprep.subr.bf16.mxu0 0
    %2046 = vmatpush1.bf16.xpose.msra.mxu0 %v2039
    %2047 = vmatprep.subr.bf16.mxu0 0
    %2048 = vmatpush1.bf16.xpose.msra.mxu0 0
    %2049 = vmatprep.subr.bf16.mxu0 0
    %2050 = vmatpush1.bf16.xpose.msra.mxu0 0
    %2051 = vmatprep.subr.bf16.mxu0 0
    %2052 = vmatpush1.bf16.xpose.msra.mxu0 0
    %2053 = vmatprep.subr.bf16.mxu0 0
    %2054 = vmatpush1.bf16.xpose.msra.mxu0 0
    %2055 = vmatprep.subr.bf16.mxu0 0
    %2056 = vmatpush1.bf16.xpose.msra.mxu0 0
    %2057 = vmatprep.subr.bf16.mxu0 0
    %2058 = vmatpush1.bf16.xpose.msra.mxu0 0
    %2059 = vmatprep.subr.bf16.mxu0 0
    %2060 = vmatpush1.bf16.xpose.msra.mxu0 0
    %2061 = vmatprep.subr.bf16.mxu0 0
    %2062 = vmatpush1.bf16.xpose.msra.mxu0 0
    %2063 = vmatprep.subr.bf16.mxu0 0
    %2064 = vmatpush1.bf16.xpose.msra.mxu0 0
    %2065 = vmatprep.subr.bf16.mxu0 0
    %2066 = vmatpush1.bf16.xpose.msra.mxu0 0
    %2067 = vmatprep.subr.bf16.mxu0 0
    %2068 = vmatpush1.bf16.xpose.msra.mxu0 0
    %2069 = vmatprep.subr.bf16.mxu0 0
    %2070 = vmatpush1.bf16.xpose.msra.mxu0 0
    %2071 = vmatprep.subr.bf16.mxu0 0
    %2072 = vmatpush1.bf16.xpose.msra.mxu0 0
    %2073 = vmatprep.mubr.bf16.mxu0 0
    %2074 = vmatmul.mubr.bf16.gmra.mrb[0].mxu0 %v2024
    %v2075 = vpop.f32.mrb[0].mxu0
    %v2076 = vadd.f32 %v1407, %v2075
    %v2077 = vpop.f32.mrb[0].mxu0
    %v2078 = vpop.f32.mrb[0].mxu0
    %v2079 = vadd.f32 %v1408, %v2078
    %v2080 = vpop.f32.mrb[0].mxu0
    %2081 = vmatprep.mubr.bf16.mxu0 0
    %2082 = vmatmul.mubr.bf16.gmra.mrb[0].mxu0 %v2027
    %v2083 = vpop.f32.mrb[0].mxu0
    %v2084 = vadd.f32 %v1409, %v2083
    %v2085 = vpop.f32.mrb[0].mxu0
    %v2086 = vpop.f32.mrb[0].mxu0
    %v2087 = vadd.f32 %v1410, %v2086
    %v2088 = vpop.f32.mrb[0].mxu0
    %2089 = vmatprep.mubr.bf16.mxu0 0
    %2090 = vmatmul.mubr.bf16.gmra.mrb[0].mxu0 %v2030
    %v2091 = vpop.f32.mrb[0].mxu0
    %v2092 = vadd.f32 %v1411, %v2091
    %v2093 = vpop.f32.mrb[0].mxu0
    %v2094 = vpop.f32.mrb[0].mxu0
    %v2095 = vadd.f32 %v1412, %v2094
    %v2096 = vpop.f32.mrb[0].mxu0
    %2097 = vdwg.mxu0
    %v2098 = vsel %vm355, %v2076, -inf
    %2099 = vmax.xlane.f32.xlu0 %v2098
    %v2100 = vpop.xlane.xlu0 %2099
    %v2101 = vsel %vm355, %v2079, -inf
    %2102 = vmax.xlane.f32.xlu0 %v2101
    %v2103 = vpop.xlane.xlu0 %2102
    %v2104 = vsel %vm355, %v2084, -inf
    %2105 = vmax.xlane.f32.xlu0 %v2104
    %v2106 = vpop.xlane.xlu0 %2105
    %v2107 = vsel %vm355, %v2087, -inf
    %2108 = vmax.xlane.f32.xlu0 %v2107
    %v2109 = vpop.xlane.xlu0 %2108
    %v2110 = vsel %vm355, %v2092, -inf
    %2111 = vmax.xlane.f32.xlu0 %v2110
    %v2112 = vpop.xlane.xlu0 %2111
    %v2113 = vsel %vm355, %v2095, -inf
    %2114 = vmax.xlane.f32.xlu0 %v2113
    %v2115 = vpop.xlane.xlu0 %2114
    %v2116 = vsub.f32 %v2076, %v2100
    %v2117 = vsub.f32 %v2079, %v2103
    %v2118 = vsub.f32 %v2084, %v2106
    %v2119 = vsub.f32 %v2087, %v2109
    %v2120 = vsub.f32 %v2092, %v2112
    %v2121 = vsub.f32 %v2095, %v2115
    %v2122 = vmul.f32 %v2116, 1.442695
    %v2123 = vpow.pop %v2122
    %v2124 = vmul.f32 %v2117, 1.442695
    %v2125 = vpow.pop %v2124
    %v2126 = vmul.f32 %v2118, 1.442695
    %v2127 = vpow.pop %v2126
    %v2128 = vmul.f32 %v2119, 1.442695
    %v2129 = vpow.pop %v2128
    %v2130 = vmul.f32 %v2120, 1.442695
    %v2131 = vpow.pop %v2130
    %v2132 = vmul.f32 %v2121, 1.442695
    %v2133 = vpow.pop %v2132
    %v2134 = vsel %vm355, %v2123, 0.0
    %2135 = vadd.xlane.f32.xlu0 %v2134
    %v2136 = vpop.xlane.xlu0 %2135
    %v2137 = vsel %vm355, %v2125, 0.0
    %2138 = vadd.xlane.f32.xlu0 %v2137
    %v2139 = vpop.xlane.xlu0 %2138
    %v2140 = vsel %vm355, %v2127, 0.0
    %2141 = vadd.xlane.f32.xlu0 %v2140
    %v2142 = vpop.xlane.xlu0 %2141
    %v2143 = vsel %vm355, %v2129, 0.0
    %2144 = vadd.xlane.f32.xlu0 %v2143
    %v2145 = vpop.xlane.xlu0 %2144
    %v2146 = vsel %vm355, %v2131, 0.0
    %2147 = vadd.xlane.f32.xlu0 %v2146
    %v2148 = vpop.xlane.xlu0 %2147
    %v2149 = vsel %vm355, %v2133, 0.0
    %2150 = vadd.xlane.f32.xlu0 %v2149
    %v2151 = vpop.xlane.xlu0 %2150
    %v2152 = vrcp.pop %v2136
    %v2153 = vmul.f32 %v2123, %v2152
    %v2154 = vrcp.pop %v2139
    %v2155 = vmul.f32 %v2125, %v2154
    %v2156 = vrcp.pop %v2142
    %v2157 = vmul.f32 %v2127, %v2156
    %v2158 = vrcp.pop %v2145
    %v2159 = vmul.f32 %v2129, %v2158
    %v2160 = vrcp.pop %v2148
    %v2161 = vmul.f32 %v2131, %v2160
    %v2162 = vrcp.pop %v2151
    %v2163 = vmul.f32 %v2133, %v2162
    %v2164 = vpack.c.bf16 %v2155, %v2153
    %v2165 = vpack.c.bf16 %v2159, %v2157
    %v2166 = vpack.c.bf16 %v2163, %v2161
    %2167 = vrot.lane.b32.xlu0 %v1513, 64
    %v2168 = vpop.permute.xlu0 %2167
    %2169 = vrot.lane.b32.xlu0 %v1514, 64
    %v2170 = vpop.permute.xlu0 %2169
    %2171 = vrot.lane.b32.xlu0 %v1515, 64
    %v2172 = vpop.permute.xlu0 %2171
    %v2177 = vsel %vm355, %v2164, 0
    %v2180 = vsel %vm355, %v2165, 0
    %v2183 = vsel %vm355, %v2166, 0
    %2185 = vmatprep.subr.bf16.mxu0 0
    %2186 = vmatpush1.bf16.msra.mxu0 %v2168
    %2187 = vmatprep.subr.bf16.mxu0 0
    %2188 = vmatpush1.bf16.msra.mxu0 %v2170
    %2189 = vmatprep.subr.bf16.mxu0 0
    %2190 = vmatpush1.bf16.msra.mxu0 %v2172
    %2191 = vmatprep.subr.bf16.mxu0 0
    %2192 = vmatpush1.bf16.msra.mxu0 0
    %2193 = vmatprep.subr.bf16.mxu0 0
    %2194 = vmatpush1.bf16.msra.mxu0 0
    %2195 = vmatprep.subr.bf16.mxu0 0
    %2196 = vmatpush1.bf16.msra.mxu0 0
    %2197 = vmatprep.subr.bf16.mxu0 0
    %2198 = vmatpush1.bf16.msra.mxu0 0
    %2199 = vmatprep.subr.bf16.mxu0 0
    %2200 = vmatpush1.bf16.msra.mxu0 0
    %2201 = vmatprep.subr.bf16.mxu0 0
    %2202 = vmatpush1.bf16.msra.mxu0 0
    %2203 = vmatprep.subr.bf16.mxu0 0
    %2204 = vmatpush1.bf16.msra.mxu0 0
    %2205 = vmatprep.subr.bf16.mxu0 0
    %2206 = vmatpush1.bf16.msra.mxu0 0
    %2207 = vmatprep.subr.bf16.mxu0 0
    %2208 = vmatpush1.bf16.msra.mxu0 0
    %2209 = vmatprep.subr.bf16.mxu0 0
    %2210 = vmatpush1.bf16.msra.mxu0 0
    %2211 = vmatprep.subr.bf16.mxu0 0
    %2212 = vmatpush1.bf16.msra.mxu0 0
    %2213 = vmatprep.subr.bf16.mxu0 0
    %2214 = vmatpush1.bf16.msra.mxu0 0
    %2215 = vmatprep.subr.bf16.mxu0 0
    %2216 = vmatpush1.bf16.msra.mxu0 0
    %2217 = vmatprep.mubr.bf16.mxu0 0
    %2218 = vmatmul.mubr.bf16.gmra.mrb[0].mxu0 %v2177
    %v2219 = vpop.f32.mrb[0].mxu0
    %v2220 = vadd.f32 0.0, %v2219
    %v2221 = vpop.f32.mrb[0].mxu0
    %v2222 = vpop.f32.mrb[0].mxu0
    %v2223 = vadd.f32 0.0, %v2222
    %v2224 = vpop.f32.mrb[0].mxu0
    %2225 = vmatprep.mubr.bf16.mxu0 0
    %2226 = vmatmul.mubr.bf16.gmra.mrb[0].mxu0 %v2180
    %v2227 = vpop.f32.mrb[0].mxu0
    %v2228 = vadd.f32 0.0, %v2227
    %v2229 = vpop.f32.mrb[0].mxu0
    %v2230 = vpop.f32.mrb[0].mxu0
    %v2231 = vadd.f32 0.0, %v2230
    %v2232 = vpop.f32.mrb[0].mxu0
    %2233 = vmatprep.mubr.bf16.mxu0 0
    %2234 = vmatmul.mubr.bf16.gmra.mrb[0].mxu0 %v2183
    %v2235 = vpop.f32.mrb[0].mxu0
    %v2236 = vadd.f32 0.0, %v2235
    %v2237 = vpop.f32.mrb[0].mxu0
    %v2238 = vpop.f32.mrb[0].mxu0
    %v2239 = vadd.f32 0.0, %v2238
    %v2240 = vpop.f32.mrb[0].mxu0
    %2241 = vdwg.mxu0
    %2248 = vrot.lane.b32.xlu0 %v2220, 16
    %v2249 = vpop.permute.xlu0 %2248
    %2250 = vrot.lane.b32.xlu0 %v2223, 16
    %v2251 = vpop.permute.xlu0 %2250
    %2252 = vrot.lane.b32.xlu0 %v2228, 16
    %v2253 = vpop.permute.xlu0 %2252
    %2254 = vrot.lane.b32.xlu0 %v2231, 16
    %v2255 = vpop.permute.xlu0 %2254
    %2256 = vrot.lane.b32.xlu0 %v2236, 16
    %v2257 = vpop.permute.xlu0 %2256
    %2258 = vrot.lane.b32.xlu0 %v2239, 16
    %v2259 = vpop.permute.xlu0 %2258
    %2266 = vst.msk [vmem:[#allocation3] sm:$0xff] %vm1023, %v2249
    %2267 = vst.msk [vmem:[#allocation3 + $0x8] sm:$0xff] %vm1023, %v2251
    %2268 = vst.msk [vmem:[#allocation3 + $0x10] sm:$0xff] %vm1023, %v2253
    %2269 = vst.msk [vmem:[#allocation3 + $0x18] sm:$0xff] %vm1023, %v2255
    %2270 = vst.msk [vmem:[#allocation3 + $0x20] sm:$0xff] %vm1023, %v2257
    %2271 = vst.msk [vmem:[#allocation3 + $0x28] sm:$0xff] %vm1023, %v2259
    %2272 = vrot.lane.b32.xlu0 %v1513, 56
    %v2273 = vpop.permute.xlu0 %2272
    %2274 = vrot.lane.b32.xlu0 %v1514, 56
    %v2275 = vpop.permute.xlu0 %2274
    %2276 = vrot.lane.b32.xlu0 %v1515, 56
    %v2277 = vpop.permute.xlu0 %2276
    %2278 = vrot.lane.b32.xlu0 %v1513, 48
    %v2279 = vpop.permute.xlu0 %2278
    %2280 = vrot.lane.b32.xlu0 %v1514, 48
    %v2281 = vpop.permute.xlu0 %2280
    %2282 = vrot.lane.b32.xlu0 %v1515, 48
    %v2283 = vpop.permute.xlu0 %2282
    %v2285 = vsel %vm279, %v2273, 0
    %v2288 = vsel %vm279, %v2275, 0
    %v2291 = vsel %vm279, %v2277, 0
    %v2294 = vsel %vm279, %v2279, 0
    %v2297 = vsel %vm279, %v2281, 0
    %v2300 = vsel %vm279, %v2283, 0
    %2302 = vmatprep.subr.bf16.mxu0 0
    %2303 = vmatpush1.bf16.xpose.msra.mxu0 %v2294
    %2304 = vmatprep.subr.bf16.mxu0 0
    %2305 = vmatpush1.bf16.xpose.msra.mxu0 %v2297
    %2306 = vmatprep.subr.bf16.mxu0 0
    %2307 = vmatpush1.bf16.xpose.msra.mxu0 %v2300
    %2308 = vmatprep.subr.bf16.mxu0 0
    %2309 = vmatpush1.bf16.xpose.msra.mxu0 0
    %2310 = vmatprep.subr.bf16.mxu0 0
    %2311 = vmatpush1.bf16.xpose.msra.mxu0 0
    %2312 = vmatprep.subr.bf16.mxu0 0
    %2313 = vmatpush1.bf16.xpose.msra.mxu0 0
    %2314 = vmatprep.subr.bf16.mxu0 0
    %2315 = vmatpush1.bf16.xpose.msra.mxu0 0
    %2316 = vmatprep.subr.bf16.mxu0 0
    %2317 = vmatpush1.bf16.xpose.msra.mxu0 0
    %2318 = vmatprep.subr.bf16.mxu0 0
    %2319 = vmatpush1.bf16.xpose.msra.mxu0 0
    %2320 = vmatprep.subr.bf16.mxu0 0
    %2321 = vmatpush1.bf16.xpose.msra.mxu0 0
    %2322 = vmatprep.subr.bf16.mxu0 0
    %2323 = vmatpush1.bf16.xpose.msra.mxu0 0
    %2324 = vmatprep.subr.bf16.mxu0 0
    %2325 = vmatpush1.bf16.xpose.msra.mxu0 0
    %2326 = vmatprep.subr.bf16.mxu0 0
    %2327 = vmatpush1.bf16.xpose.msra.mxu0 0
    %2328 = vmatprep.subr.bf16.mxu0 0
    %2329 = vmatpush1.bf16.xpose.msra.mxu0 0
    %2330 = vmatprep.subr.bf16.mxu0 0
    %2331 = vmatpush1.bf16.xpose.msra.mxu0 0
    %2332 = vmatprep.subr.bf16.mxu0 0
    %2333 = vmatpush1.bf16.xpose.msra.mxu0 0
    %2334 = vmatprep.mubr.bf16.mxu0 0
    %2335 = vmatmul.mubr.bf16.gmra.mrb[0].mxu0 %v2285
    %v2336 = vpop.f32.mrb[0].mxu0
    %v2337 = vadd.f32 %v1407, %v2336
    %v2338 = vpop.f32.mrb[0].mxu0
    %v2339 = vpop.f32.mrb[0].mxu0
    %v2340 = vadd.f32 %v1408, %v2339
    %v2341 = vpop.f32.mrb[0].mxu0
    %2342 = vmatprep.mubr.bf16.mxu0 0
    %2343 = vmatmul.mubr.bf16.gmra.mrb[0].mxu0 %v2288
    %v2344 = vpop.f32.mrb[0].mxu0
    %v2345 = vadd.f32 %v1409, %v2344
    %v2346 = vpop.f32.mrb[0].mxu0
    %v2347 = vpop.f32.mrb[0].mxu0
    %v2348 = vadd.f32 %v1410, %v2347
    %v2349 = vpop.f32.mrb[0].mxu0
    %2350 = vmatprep.mubr.bf16.mxu0 0
    %2351 = vmatmul.mubr.bf16.gmra.mrb[0].mxu0 %v2291
    %v2352 = vpop.f32.mrb[0].mxu0
    %v2353 = vadd.f32 %v1411, %v2352
    %v2354 = vpop.f32.mrb[0].mxu0
    %v2355 = vpop.f32.mrb[0].mxu0
    %v2356 = vadd.f32 %v1412, %v2355
    %v2357 = vpop.f32.mrb[0].mxu0
    %2358 = vdwg.mxu0
    %v2359 = vsel %vm355, %v2337, -inf
    %2360 = vmax.xlane.f32.xlu0 %v2359
    %v2361 = vpop.xlane.xlu0 %2360
    %v2362 = vsel %vm355, %v2340, -inf
    %2363 = vmax.xlane.f32.xlu0 %v2362
    %v2364 = vpop.xlane.xlu0 %2363
    %v2365 = vsel %vm355, %v2345, -inf
    %2366 = vmax.xlane.f32.xlu0 %v2365
    %v2367 = vpop.xlane.xlu0 %2366
    %v2368 = vsel %vm355, %v2348, -inf
    %2369 = vmax.xlane.f32.xlu0 %v2368
    %v2370 = vpop.xlane.xlu0 %2369
    %v2371 = vsel %vm355, %v2353, -inf
    %2372 = vmax.xlane.f32.xlu0 %v2371
    %v2373 = vpop.xlane.xlu0 %2372
    %v2374 = vsel %vm355, %v2356, -inf
    %2375 = vmax.xlane.f32.xlu0 %v2374
    %v2376 = vpop.xlane.xlu0 %2375
    %v2377 = vsub.f32 %v2337, %v2361
    %v2378 = vsub.f32 %v2340, %v2364
    %v2379 = vsub.f32 %v2345, %v2367
    %v2380 = vsub.f32 %v2348, %v2370
    %v2381 = vsub.f32 %v2353, %v2373
    %v2382 = vsub.f32 %v2356, %v2376
    %v2383 = vmul.f32 %v2377, 1.442695
    %v2384 = vpow.pop %v2383
    %v2385 = vmul.f32 %v2378, 1.442695
    %v2386 = vpow.pop %v2385
    %v2387 = vmul.f32 %v2379, 1.442695
    %v2388 = vpow.pop %v2387
    %v2389 = vmul.f32 %v2380, 1.442695
    %v2390 = vpow.pop %v2389
    %v2391 = vmul.f32 %v2381, 1.442695
    %v2392 = vpow.pop %v2391
    %v2393 = vmul.f32 %v2382, 1.442695
    %v2394 = vpow.pop %v2393
    %v2395 = vsel %vm355, %v2384, 0.0
    %2396 = vadd.xlane.f32.xlu0 %v2395
    %v2397 = vpop.xlane.xlu0 %2396
    %v2398 = vsel %vm355, %v2386, 0.0
    %2399 = vadd.xlane.f32.xlu0 %v2398
    %v2400 = vpop.xlane.xlu0 %2399
    %v2401 = vsel %vm355, %v2388, 0.0
    %2402 = vadd.xlane.f32.xlu0 %v2401
    %v2403 = vpop.xlane.xlu0 %2402
    %v2404 = vsel %vm355, %v2390, 0.0
    %2405 = vadd.xlane.f32.xlu0 %v2404
    %v2406 = vpop.xlane.xlu0 %2405
    %v2407 = vsel %vm355, %v2392, 0.0
    %2408 = vadd.xlane.f32.xlu0 %v2407
    %v2409 = vpop.xlane.xlu0 %2408
    %v2410 = vsel %vm355, %v2394, 0.0
    %2411 = vadd.xlane.f32.xlu0 %v2410
    %v2412 = vpop.xlane.xlu0 %2411
    %v2413 = vrcp.pop %v2397
    %v2414 = vmul.f32 %v2384, %v2413
    %v2415 = vrcp.pop %v2400
    %v2416 = vmul.f32 %v2386, %v2415
    %v2417 = vrcp.pop %v2403
    %v2418 = vmul.f32 %v2388, %v2417
    %v2419 = vrcp.pop %v2406
    %v2420 = vmul.f32 %v2390, %v2419
    %v2421 = vrcp.pop %v2409
    %v2422 = vmul.f32 %v2392, %v2421
    %v2423 = vrcp.pop %v2412
    %v2424 = vmul.f32 %v2394, %v2423
    %v2425 = vpack.c.bf16 %v2416, %v2414
    %v2426 = vpack.c.bf16 %v2420, %v2418
    %v2427 = vpack.c.bf16 %v2424, %v2422
    %2428 = vrot.lane.b32.xlu0 %v1513, 40
    %v2429 = vpop.permute.xlu0 %2428
    %2430 = vrot.lane.b32.xlu0 %v1514, 40
    %v2431 = vpop.permute.xlu0 %2430
    %2432 = vrot.lane.b32.xlu0 %v1515, 40
    %v2433 = vpop.permute.xlu0 %2432
    %v2438 = vsel %vm355, %v2425, 0
    %v2441 = vsel %vm355, %v2426, 0
    %v2444 = vsel %vm355, %v2427, 0
    %2446 = vmatprep.subr.bf16.mxu0 0
    %2447 = vmatpush1.bf16.msra.mxu0 %v2429
    %2448 = vmatprep.subr.bf16.mxu0 0
    %2449 = vmatpush1.bf16.msra.mxu0 %v2431
    %2450 = vmatprep.subr.bf16.mxu0 0
    %2451 = vmatpush1.bf16.msra.mxu0 %v2433
    %2452 = vmatprep.subr.bf16.mxu0 0
    %2453 = vmatpush1.bf16.msra.mxu0 0
    %2454 = vmatprep.subr.bf16.mxu0 0
    %2455 = vmatpush1.bf16.msra.mxu0 0
    %2456 = vmatprep.subr.bf16.mxu0 0
    %2457 = vmatpush1.bf16.msra.mxu0 0
    %2458 = vmatprep.subr.bf16.mxu0 0
    %2459 = vmatpush1.bf16.msra.mxu0 0
    %2460 = vmatprep.subr.bf16.mxu0 0
    %2461 = vmatpush1.bf16.msra.mxu0 0
    %2462 = vmatprep.subr.bf16.mxu0 0
    %2463 = vmatpush1.bf16.msra.mxu0 0
    %2464 = vmatprep.subr.bf16.mxu0 0
    %2465 = vmatpush1.bf16.msra.mxu0 0
    %2466 = vmatprep.subr.bf16.mxu0 0
    %2467 = vmatpush1.bf16.msra.mxu0 0
    %2468 = vmatprep.subr.bf16.mxu0 0
    %2469 = vmatpush1.bf16.msra.mxu0 0
    %2470 = vmatprep.subr.bf16.mxu0 0
    %2471 = vmatpush1.bf16.msra.mxu0 0
    %2472 = vmatprep.subr.bf16.mxu0 0
    %2473 = vmatpush1.bf16.msra.mxu0 0
    %2474 = vmatprep.subr.bf16.mxu0 0
    %2475 = vmatpush1.bf16.msra.mxu0 0
    %2476 = vmatprep.subr.bf16.mxu0 0
    %2477 = vmatpush1.bf16.msra.mxu0 0
    %2478 = vmatprep.mubr.bf16.mxu0 0
    %2479 = vmatmul.mubr.bf16.gmra.mrb[0].mxu0 %v2438
    %v2480 = vpop.f32.mrb[0].mxu0
    %v2481 = vadd.f32 0.0, %v2480
    %v2482 = vpop.f32.mrb[0].mxu0
    %v2483 = vpop.f32.mrb[0].mxu0
    %v2484 = vadd.f32 0.0, %v2483
    %v2485 = vpop.f32.mrb[0].mxu0
    %2486 = vmatprep.mubr.bf16.mxu0 0
    %2487 = vmatmul.mubr.bf16.gmra.mrb[0].mxu0 %v2441
    %v2488 = vpop.f32.mrb[0].mxu0
    %v2489 = vadd.f32 0.0, %v2488
    %v2490 = vpop.f32.mrb[0].mxu0
    %v2491 = vpop.f32.mrb[0].mxu0
    %v2492 = vadd.f32 0.0, %v2491
    %v2493 = vpop.f32.mrb[0].mxu0
    %2494 = vmatprep.mubr.bf16.mxu0 0
    %2495 = vmatmul.mubr.bf16.gmra.mrb[0].mxu0 %v2444
    %v2496 = vpop.f32.mrb[0].mxu0
    %v2497 = vadd.f32 0.0, %v2496
    %v2498 = vpop.f32.mrb[0].mxu0
    %v2499 = vpop.f32.mrb[0].mxu0
    %v2500 = vadd.f32 0.0, %v2499
    %v2501 = vpop.f32.mrb[0].mxu0
    %2502 = vdwg.mxu0
    %2509 = vrot.lane.b32.xlu0 %v2481, 24
    %v2510 = vpop.permute.xlu0 %2509
    %2511 = vrot.lane.b32.xlu0 %v2484, 24
    %v2512 = vpop.permute.xlu0 %2511
    %2513 = vrot.lane.b32.xlu0 %v2489, 24
    %v2514 = vpop.permute.xlu0 %2513
    %2515 = vrot.lane.b32.xlu0 %v2492, 24
    %v2516 = vpop.permute.xlu0 %2515
    %2517 = vrot.lane.b32.xlu0 %v2497, 24
    %v2518 = vpop.permute.xlu0 %2517
    %2519 = vrot.lane.b32.xlu0 %v2500, 24
    %v2520 = vpop.permute.xlu0 %2519
    %2527 = vst.msk [vmem:[#allocation3] sm:$0xff] %vm1285, %v2510
    %2528 = vst.msk [vmem:[#allocation3 + $0x8] sm:$0xff] %vm1285, %v2512
    %2529 = vst.msk [vmem:[#allocation3 + $0x10] sm:$0xff] %vm1285, %v2514
    %2530 = vst.msk [vmem:[#allocation3 + $0x18] sm:$0xff] %vm1285, %v2516
    %2531 = vst.msk [vmem:[#allocation3 + $0x20] sm:$0xff] %vm1285, %v2518
    %2532 = vst.msk [vmem:[#allocation3 + $0x28] sm:$0xff] %vm1285, %v2520
    %v2533 = vld [vmem:[#allocation3] sm:$0xff]
    %v2534 = vld [vmem:[#allocation3 + $0x8] sm:$0xff]
    %v2535 = vld [vmem:[#allocation3 + $0x10] sm:$0xff]
    %v2536 = vld [vmem:[#allocation3 + $0x18] sm:$0xff]
    %v2537 = vld [vmem:[#allocation3 + $0x20] sm:$0xff]
    %v2538 = vld [vmem:[#allocation3 + $0x28] sm:$0xff]
    %v2539 = vpack.c.bf16 %v2534, %v2533
    %v2540 = vpack.c.bf16 %v2536, %v2535
    %v2541 = vpack.c.bf16 %v2538, %v2537
    %s2542 = scalar_lea.vmem [#allocation12], 16
    %v2543 = vld [vmem:[%s2542] sm:$0xf]
    %v2544 = vld [vmem:[%s2542 + $0x4] sm:$0xf]
    %v2545 = vld [vmem:[%s2542 + $0x8] sm:$0xf]
    %v2546 = vld [vmem:[%s2542 + $0xc] sm:$0xf]
    %s2547 = scalar_lea.vmem %s6, 1
    %v2548 = vld [vmem:[%s2547] sm:$0x1]
    %v2550 = vlaneseq
    %v2551 = vshrl.u32 %v2550, 7
    %v2552 = vsub.s32 0, %v2551
    %v2553 = vrot.slane %v2548, %v2552
    %v2559 = vunpack.c.l.b16 %v2543
    %v2560 = vunpack.c.l.b16 %v2544
    %v2561 = vunpack.c.l.b16 %v2545
    %v2562 = vunpack.c.l.b16 %v2546
    %v2563 = vpack.c.b16 %v2560, %v2559
    %v2564 = vpack.c.b16 %v2562, %v2561
    %v2568 = vsel %vm91, %v2539, 0
    %v2571 = vsel %vm91, %v2540, 0
    %v2574 = vsel %vm91, %v2541, 0
    %2576 = vmatprep.subr.bf16.mxu0 0
    %2577 = vmatpush1.bf16.msra.mxu0 %v2563
    %2578 = vmatprep.subr.bf16.mxu0 0
    %2579 = vmatpush1.bf16.msra.mxu0 %v2564
    %2580 = vmatprep.subr.bf16.mxu0 0
    %2581 = vmatpush1.bf16.msra.mxu0 0
    %2582 = vmatprep.subr.bf16.mxu0 0
    %2583 = vmatpush1.bf16.msra.mxu0 0
    %2584 = vmatprep.subr.bf16.mxu0 0
    %2585 = vmatpush1.bf16.msra.mxu0 0
    %2586 = vmatprep.subr.bf16.mxu0 0
    %2587 = vmatpush1.bf16.msra.mxu0 0
    %2588 = vmatprep.subr.bf16.mxu0 0
    %2589 = vmatpush1.bf16.msra.mxu0 0
    %2590 = vmatprep.subr.bf16.mxu0 0
    %2591 = vmatpush1.bf16.msra.mxu0 0
    %2592 = vmatprep.subr.bf16.mxu0 0
    %2593 = vmatpush1.bf16.msra.mxu0 0
    %2594 = vmatprep.subr.bf16.mxu0 0
    %2595 = vmatpush1.bf16.msra.mxu0 0
    %2596 = vmatprep.subr.bf16.mxu0 0
    %2597 = vmatpush1.bf16.msra.mxu0 0
    %2598 = vmatprep.subr.bf16.mxu0 0
    %2599 = vmatpush1.bf16.msra.mxu0 0
    %2600 = vmatprep.subr.bf16.mxu0 0
    %2601 = vmatpush1.bf16.msra.mxu0 0
    %2602 = vmatprep.subr.bf16.mxu0 0
    %2603 = vmatpush1.bf16.msra.mxu0 0
    %2604 = vmatprep.subr.bf16.mxu0 0
    %2605 = vmatpush1.bf16.msra.mxu0 0
    %2606 = vmatprep.subr.bf16.mxu0 0
    %2607 = vmatpush1.bf16.msra.mxu0 0
    %2608 = vmatprep.mubr.bf16.mxu0 0
    %2609 = vmatmul.mubr.bf16.gmra.mrb[0].mxu0 %v2568
    %v2610 = vpop.f32.mrb[0].mxu0
    %v2611 = vadd.f32 %v2553, %v2610
    %v2612 = vpop.f32.mrb[0].mxu0
    %v2613 = vpop.f32.mrb[0].mxu0
    %v2614 = vadd.f32 %v2553, %v2613
    %v2615 = vpop.f32.mrb[0].mxu0
    %2616 = vmatprep.mubr.bf16.mxu0 0
    %2617 = vmatmul.mubr.bf16.gmra.mrb[0].mxu0 %v2571
    %v2618 = vpop.f32.mrb[0].mxu0
    %v2619 = vadd.f32 %v2553, %v2618
    %v2620 = vpop.f32.mrb[0].mxu0
    %v2621 = vpop.f32.mrb[0].mxu0
    %v2622 = vadd.f32 %v2553, %v2621
    %v2623 = vpop.f32.mrb[0].mxu0
    %2624 = vmatprep.mubr.bf16.mxu0 0
    %2625 = vmatmul.mubr.bf16.gmra.mrb[0].mxu0 %v2574
    %v2626 = vpop.f32.mrb[0].mxu0
    %v2627 = vadd.f32 %v2553, %v2626
    %v2628 = vpop.f32.mrb[0].mxu0
    %v2629 = vpop.f32.mrb[0].mxu0
    %v2630 = vadd.f32 %v2553, %v2629
    %v2631 = vpop.f32.mrb[0].mxu0
    %2632 = vdwg.mxu0
    %v2633 = vpack.c.bf16 %v2614, %v2611
    %v2634 = vpack.c.bf16 %v2622, %v2619
    %v2635 = vpack.c.bf16 %v2630, %v2627
    %v2636 = vld [vmem:[%s7] sm:$0xf]
    %v2637 = vld [vmem:[%s7 + $0x4] sm:$0xf]
    %v2638 = vld [vmem:[%s7 + $0x8] sm:$0xf]
    %v2639 = vld [vmem:[%s7 + $0xc] sm:$0xf]
    %v2640 = vld [vmem:[%s8] sm:$0x1]
    %v2642 = vlaneseq
    %v2643 = vshrl.u32 %v2642, 7
    %v2644 = vsub.s32 0, %v2643
    %v2645 = vrot.slane %v2640, %v2644
    %v2651 = vunpack.c.l.b16 %v2636
    %v2652 = vunpack.c.l.b16 %v2637
    %v2653 = vunpack.c.l.b16 %v2638
    %v2654 = vunpack.c.l.b16 %v2639
    %v2655 = vpack.c.b16 %v2652, %v2651
    %v2656 = vpack.c.b16 %v2654, %v2653
    %v2660 = vsel %vm91, %v2633, 0
    %v2663 = vsel %vm91, %v2634, 0
    %v2666 = vsel %vm91, %v2635, 0
    %2668 = vmatprep.subr.bf16.mxu0 0
    %2669 = vmatpush1.bf16.msra.mxu0 %v2655
    %2670 = vmatprep.subr.bf16.mxu0 0
    %2671 = vmatpush1.bf16.msra.mxu0 %v2656
    %2672 = vmatprep.subr.bf16.mxu0 0
    %2673 = vmatpush1.bf16.msra.mxu0 0
    %2674 = vmatprep.subr.bf16.mxu0 0
    %2675 = vmatpush1.bf16.msra.mxu0 0
    %2676 = vmatprep.subr.bf16.mxu0 0
    %2677 = vmatpush1.bf16.msra.mxu0 0
    %2678 = vmatprep.subr.bf16.mxu0 0
    %2679 = vmatpush1.bf16.msra.mxu0 0
    %2680 = vmatprep.subr.bf16.mxu0 0
    %2681 = vmatpush1.bf16.msra.mxu0 0
    %2682 = vmatprep.subr.bf16.mxu0 0
    %2683 = vmatpush1.bf16.msra.mxu0 0
    %2684 = vmatprep.subr.bf16.mxu0 0
    %2685 = vmatpush1.bf16.msra.mxu0 0
    %2686 = vmatprep.subr.bf16.mxu0 0
    %2687 = vmatpush1.bf16.msra.mxu0 0
    %2688 = vmatprep.subr.bf16.mxu0 0
    %2689 = vmatpush1.bf16.msra.mxu0 0
    %2690 = vmatprep.subr.bf16.mxu0 0
    %2691 = vmatpush1.bf16.msra.mxu0 0
    %2692 = vmatprep.subr.bf16.mxu0 0
    %2693 = vmatpush1.bf16.msra.mxu0 0
    %2694 = vmatprep.subr.bf16.mxu0 0
    %2695 = vmatpush1.bf16.msra.mxu0 0
    %2696 = vmatprep.subr.bf16.mxu0 0
    %2697 = vmatpush1.bf16.msra.mxu0 0
    %2698 = vmatprep.subr.bf16.mxu0 0
    %2699 = vmatpush1.bf16.msra.mxu0 0
    %2700 = vmatprep.mubr.bf16.mxu0 0
    %2701 = vmatmul.mubr.bf16.gmra.mrb[0].mxu0 %v2660
    %v2702 = vpop.f32.mrb[0].mxu0
    %v2703 = vadd.f32 %v2645, %v2702
    %v2704 = vpop.f32.mrb[0].mxu0
    %v2705 = vpop.f32.mrb[0].mxu0
    %v2706 = vadd.f32 %v2645, %v2705
    %v2707 = vpop.f32.mrb[0].mxu0
    %2708 = vmatprep.mubr.bf16.mxu0 0
    %2709 = vmatmul.mubr.bf16.gmra.mrb[0].mxu0 %v2663
    %v2710 = vpop.f32.mrb[0].mxu0
    %v2711 = vadd.f32 %v2645, %v2710
    %v2712 = vpop.f32.mrb[0].mxu0
    %v2713 = vpop.f32.mrb[0].mxu0
    %v2714 = vadd.f32 %v2645, %v2713
    %v2715 = vpop.f32.mrb[0].mxu0
    %2716 = vmatprep.mubr.bf16.mxu0 0
    %2717 = vmatmul.mubr.bf16.gmra.mrb[0].mxu0 %v2666
    %v2718 = vpop.f32.mrb[0].mxu0
    %v2719 = vadd.f32 %v2645, %v2718
    %v2720 = vpop.f32.mrb[0].mxu0
    %v2721 = vpop.f32.mrb[0].mxu0
    %v2722 = vadd.f32 %v2645, %v2721
    %v2723 = vpop.f32.mrb[0].mxu0
    %2724 = vdwg.mxu0
    %2725 = vst [vmem:[#allocation14] sm:$0xff] %v2703
    %2726 = vst [vmem:[#allocation14 + $0x8] sm:$0xff] %v2706
    %2727 = vst [vmem:[#allocation14 + $0x10] sm:$0xff] %v2711
    %2728 = vst [vmem:[#allocation14 + $0x18] sm:$0xff] %v2714
    %2729 = vst [vmem:[#allocation14 + $0x20] sm:$0xff] %v2719
    %2730 = vst [vmem:[#allocation14 + $0x28] sm:$0xff] %v2722
    // Predicated region
    $region50: #{tpu_custom_call.1} parent=1 // pred_check
      _
    $region51: #{tpu_custom_call.1} parent=1 // pred_check_branch
      %2732 = sbr.rel (0) target = $region53
    $region52: #{tpu_custom_call.1} parent=1 // pred_region
      %s2734 = ssub.s32 768, 768
      %2735 = vsyncadd [#allocation8], %s2734
      %s2736 = sshll.u32 [#allocation14], 4
      %s2737 = int_to_ptr.vmem [resolvable:$true] %s2736
      %2742 = dma.vmem_to_hbm [thread:$0]  %s2737, 768, %s9, [#allocation8], 128, 128, 8
    $region53: #{tpu_custom_call.1} parent=1 // pred_fallthru
      _
    // Predicated region
    $region54: #{tpu_custom_call.1} parent=1 // pred_check
      _
    $region55: #{tpu_custom_call.1} parent=1 // pred_check_branch
      %2744 = sbr.rel (0) target = $region57
    $region56: #{tpu_custom_call.1} parent=1 // pred_region
      %2745 = dma.done [#allocation8], 768
    $region57: #{tpu_custom_call.1} parent=1 // pred_fallthru
      _
    %2746 = vsyncpa [#allocation7], 1
    %2747 = vsyncpa [#allocation10], 1
    %2748 = vsyncpa [#allocation13], 1
    %2749 = vsyncpa [#allocation8], 1

</llo_original>
